<compile_context>
chip_gen: v7x
topology: tpu7x:2x2x1
jax: 0.10.0
libtpu: 0.0.40
codegen_flags: <defaults>
</compile_context>

<pallas_src>
import functools

import jax
import jax.numpy as jnp
from jax import lax
from jax.experimental import pallas as pl
from jax.experimental.pallas import tpu as pltpu


def _round_up(v, m):
    return ((v + m - 1) // m) * m


def _conv3x3_packed(src_ref, w_ref, start, n_rows, W, Cp):
    """3x3 stride-1 conv over a flattened bf16 source buffer, K-packed over the kh taps.

    src_ref: bf16 VMEM ref.  Logical source row i (the n_rows output rows plus one halo row
             above and below) lives at buffer row `start + i`.  Rows start-1 and
             start + (n_rows+2)*W only need to be addressable: every read touching them is
             masked by the column masks below, so their values never matter.
    w_ref:   (3, 3*Cp, Cp) bf16; w_ref[kw, kh*Cp:(kh+1)*Cp, :] is tap (kh, kw), BN folded.
    returns: (n_rows*W, Cp) f32.
    """
    m_out = n_rows * W
    m_src = (n_rows + 2) * W
    col = lax.broadcasted_iota(jnp.int32, (m_src, 1), 0) % W
    acc = None
    for dwi, dw in enumerate((-1, 0, 1)):
        # One (possibly sublane-unaligned) load per dw; sh[q] = src[start + q + dw].
        sh = src_ref[start + dw:start + dw + m_src, :]
        if dw == -1:                      # column 0 has no left neighbour
            sh = jnp.where(col >= 1, sh, jnp.zeros_like(sh))
        elif dw == 1:                     # column W-1 has no right neighbour
            sh = jnp.where(col <= W - 2, sh, jnp.zeros_like(sh))
        # K-pack the three kh shifts (aligned value slices, multiples of W) along lanes:
        # a single K=3*Cp matmul per dw instead of three K=Cp matmuls.
        packed = jnp.concatenate(
            [sh[0:m_out], sh[W:W + m_out], sh[2 * W:2 * W + m_out]], axis=1)
        part = jnp.dot(packed, w_ref[dwi], preferred_element_type=jnp.float32)
        acc = part if acc is None else acc + part
    return acc


def _basic_block_kernel(x_ref, xup_ref, xdn_ref, w1_ref, b1_ref, w2_ref, b2_ref,
                        out_ref, src_ref, *, block_h, W, Cp):
    th = block_h
    j = pl.program_id(1)
    nj = pl.num_programs(1)
    bf16 = jnp.bfloat16
    APR = 16                               # top apron (addressability only, never read unmasked)

    # ---- conv1 source (bf16): [2 halo rows above | th block rows | 2 halo rows below] ----
    x_main = x_ref[0]                                            # (th*W, Cp) bf16, also residual
    src_ref[APR + 2 * W:APR + (th + 2) * W, :] = x_main
    src_ref[APR:APR + 2 * W, :] = xup_ref[0]                     # image rows r0-2, r0-1
    src_ref[APR + (th + 2) * W:APR + (th + 4) * W, :] = xdn_ref[0]   # rows r0+th, r0+th+1

    # "SAME" padding at the image top/bottom: predicated row writes on boundary blocks only.
    @pl.when(j == 0)
    def _():
        src_ref[APR:APR + 2 * W, :] = jnp.zeros((2 * W, Cp), bf16)

    @pl.when(j == nj - 1)
    def _():
        src_ref[APR + (th + 2) * W:APR + (th + 4) * W, :] = jnp.zeros((2 * W, Cp), bf16)

    # ---- conv1 + folded BN1 + ReLU -> th+2 rows (1-row halo recomputed for conv2) ----
    mid = _conv3x3_packed(src_ref, w1_ref, APR, th + 2, W, Cp) + b1_ref[...]
    mid = jnp.maximum(mid, 0.0).astype(bf16)

    # ---- reuse src_ref as the conv2 source (conv1's source is dead once `mid` exists) ----
    src_ref[APR:APR + (th + 2) * W, :] = mid
    # mid rows that fall outside the image are conv2's zero ("SAME") padding.
    @pl.when(j == 0)
    def _():
        src_ref[APR:APR + W, :] = jnp.zeros((W, Cp), bf16)

    @pl.when(j == nj - 1)
    def _():
        src_ref[APR + (th + 1) * W:APR + (th + 2) * W, :] = jnp.zeros((W, Cp), bf16)

    # ---- conv2 + folded BN2 + residual + ReLU (f32 epilogue, bf16 writeback) ----
    out = _conv3x3_packed(src_ref, w2_ref, APR, th, W, Cp) + b2_ref[...]
    out = jnp.maximum(out + x_main.astype(jnp.float32), 0.0)
    out_ref[...] = out.reshape(1, th * W, Cp).astype(out_ref.dtype)


def _prep_conv_bn(w_hwio, gamma, beta, mean, var, cp, eps=1e-5):
    """Fold BN scale into the conv weight, pad channels to cp, K-pack to (3, 3*cp, cp) bf16."""
    scale = gamma / jnp.sqrt(var + eps)                       # (Cout,)
    bias = beta - mean * scale                                # (Cout,)
    w = w_hwio * scale[None, None, None, :]
    _, _, ci, co = w.shape
    w = jnp.pad(w, ((0, 0), (0, 0), (0, cp - ci), (0, cp - co)))   # (kh, kw, cp, cp)
    # packed[kw, kh*cp + ci, co] = w[kh, kw, ci, co]  -> matches the kh-concatenated operand.
    w = jnp.transpose(w, (1, 0, 2, 3)).reshape(3, 3 * cp, cp).astype(jnp.bfloat16)
    b = jnp.pad(bias, (0, cp - co)).reshape(1, cp).astype(jnp.float32)
    return w, b


def basic_block_forward(x_nchw, params, block_h=None):
    """BasicBlock forward. x_nchw: (N, C, H, W) float32 (PyTorch layout)."""
    N, C, H, W = x_nchw.shape
    assert H % 8 == 0 and W % 8 == 0, "spatial dims must be multiples of 8"
    cout = params["w1"].shape[-1]
    assert cout == C, "stride=1 / downsample=None path requires inplanes == planes"
    cp = _round_up(C, 128)

    try:
        vmem_cap = int(pltpu.get_tpu_info().vmem_capacity_bytes)
    except Exception:
        vmem_cap = 64 * 1024 * 1024        # assume the smallest (v7x per-core) budget

    def _kernel_vmem_bytes(th):
        blk = th * W * cp * 2                            # bf16 main block
        halo = 2 * W * cp * 2                            # bf16 2-row halo block
        wts = 2 * (9 * cp * cp * 2 + cp * 4)             # packed weights + biases
        scr = ((th + 4) * W + 32) * cp * 2               # reused bf16 conv-source scratch
        m_src, m_out = (th + 4) * W, (th + 2) * W
        tmp = (m_src * cp * 2 + m_out * 3 * cp * 2       # shifted source + K-packed operand
               + 2 * m_out * cp * 4 + m_out * cp * 2)    # f32 partial sums + bf16 mid
        # factor 2 on pipelined operands = double buffering
        return 2 * blk + 4 * halo + 2 * blk + 2 * wts + scr + tmp

    if block_h is None:
        budget = int(vmem_cap * 0.55)
        cands = sorted({bh for bh in (8, 16, 32, 64, 128, H)
                        if H % bh == 0 and bh % 8 == 0}, reverse=True)
        block_h = next((bh for bh in cands if _kernel_vmem_bytes(bh) <= budget), cands[-1])
    assert block_h % 8 == 0 and H % block_h == 0

    vmem_limit = max(32 << 20,
                     min(_kernel_vmem_bytes(block_h) + (16 << 20), int(vmem_cap * 0.85)))

    # Boundary glue (NCHW interface): channels-last, zero-pad C to a lane-dense multiple of
    # 128, bf16 activations, flatten (H, W) so kernel tiles are (rows, channels).
    x = jnp.transpose(x_nchw, (0, 2, 3, 1))
    x = jnp.pad(x, ((0, 0), (0, 0), (0, 0), (0, cp - C))).astype(jnp.bfloat16)
    x = x.reshape(N, H * W, cp)

    w1, b1 = _prep_conv_bn(params["w1"], params["g1"], params["b1"],
                           params["m1"], params["v1"], cp)
    w2, b2 = _prep_conv_bn(params["w2"], params["g2"], params["b2"],
                           params["m2"], params["v2"], cp)

    th = block_h
    nj = H // th
    half = th // 2          # halo index_maps work in units of 2-row blocks
    kernel = functools.partial(_basic_block_kernel, block_h=th, W=W, Cp=cp)

    flops = 2 * 9 * cp * cp * W * N * (H + nj * (th + 2))
    bytes_accessed = (2 * N * H * W * cp * 2               # x in + out (bf16)
                      + N * nj * 2 * (2 * W) * cp * 2      # halo re-reads
                      + 2 * (9 * cp * cp * 2 + cp * 4))    # folded weights + biases

    out = pl.pallas_call(
        kernel,
        out_shape=jax.ShapeDtypeStruct((N, H * W, cp), jnp.bfloat16),
        grid=(N, nj),
        in_specs=[
            # main row block (conv1 input rows + residual identity)
            pl.BlockSpec((1, th * W, cp), lambda n, j: (n, j, 0)),
            # 2-row block just above (clamped at the top edge; contents zeroed in-kernel there)
            pl.BlockSpec((1, 2 * W, cp),
                         lambda n, j: (n, jnp.maximum(j * half - 1, 0), 0)),
            # 2-row block just below (clamped at the bottom edge)
            pl.BlockSpec((1, 2 * W, cp),
                         lambda n, j: (n, jnp.minimum((j + 1) * half, H // 2 - 1), 0)),
            pl.BlockSpec((3, 3 * cp, cp), lambda n, j: (0, 0, 0)),   # w1 (BN1 folded, K-packed)
            pl.BlockSpec((1, cp), lambda n, j: (0, 0)),              # bias1
            pl.BlockSpec((3, 3 * cp, cp), lambda n, j: (0, 0, 0)),   # w2 (BN2 folded, K-packed)
            pl.BlockSpec((1, cp), lambda n, j: (0, 0)),              # bias2
        ],
        out_specs=pl.BlockSpec((1, th * W, cp), lambda n, j: (n, j, 0)),
        scratch_shapes=[
            pltpu.VMEM(((th + 4) * W + 32, cp), jnp.bfloat16),   # reused conv source (+aprons)
        ],
        compiler_params=pltpu.CompilerParams(
            dimension_semantics=("parallel", "parallel"),
            vmem_limit_bytes=int(vmem_limit),
        ),
        cost_estimate=pl.CostEstimate(flops=int(flops), transcendentals=0,
                                      bytes_accessed=int(bytes_accessed)),
    )(x, x, x, w1, b1, w2, b2)

    out = out.reshape(N, H, W, cp)[..., :C]
    return jnp.transpose(out, (0, 3, 1, 2)).astype(jnp.float32)   # back to NCHW, f32 interface


def _reference_forward(x_nchw, params):
    """Pure-JAX reference (lax conv) with the same bf16 matmul numerics as the kernel."""
    x = jnp.transpose(x_nchw, (0, 2, 3, 1)).astype(jnp.bfloat16).astype(jnp.float32)
    dn = ("NHWC", "HWIO", "NHWC")

    def conv_bn(v, w, g, b, m, var):
        scale = g / jnp.sqrt(var + 1e-5)
        wf = (w * scale[None, None, None, :]).astype(jnp.bfloat16)
        bias = (b - m * scale).astype(jnp.float32)
        y = lax.conv_general_dilated(v.astype(jnp.bfloat16), wf, (1, 1), "SAME",
                                     dimension_numbers=dn,
                                     preferred_element_type=jnp.float32)
        return y + bias

    mid = jnp.maximum(conv_bn(x, params["w1"], params["g1"], params["b1"],
                              params["m1"], params["v1"]), 0.0)
    out = conv_bn(mid, params["w2"], params["g2"], params["b2"],
                  params["m2"], params["v2"])
    out = jnp.maximum(out + x, 0.0)
    return jnp.transpose(out, (0, 3, 1, 2))


def make_params(key, inplanes, planes):
    ks = jax.random.split(key, 8)
    fan1 = 3 * 3 * inplanes
    fan2 = 3 * 3 * planes
    return {
        # conv weights stored in HWIO (kernel layout).
        "w1": jax.random.normal(ks[0], (3, 3, inplanes, planes), jnp.float32)
              * (2.0 / fan1) ** 0.5,
        "w2": jax.random.normal(ks[1], (3, 3, planes, planes), jnp.float32)
              * (2.0 / fan2) ** 0.5,
        # BatchNorm (inference-style: gamma, beta, running mean/var).
        "g1": 1.0 + 0.1 * jax.random.normal(ks[2], (planes,), jnp.float32),
        "b1": 0.1 * jax.random.normal(ks[3], (planes,), jnp.float32),
        "m1": 0.1 * jax.random.normal(ks[4], (planes,), jnp.float32),
        "v1": jax.random.uniform(ks[5], (planes,), jnp.float32, 0.5, 1.5),
        "g2": 1.0 + 0.1 * jax.random.normal(ks[6], (planes,), jnp.float32),
        "b2": 0.1 * jax.random.normal(ks[7], (planes,), jnp.float32),
        "m2": jnp.zeros((planes,), jnp.float32),
        "v2": jnp.ones((planes,), jnp.float32),
    }


if __name__ == "__main__":
    key = jax.random.PRNGKey(0)
    kx, kp = jax.random.split(key)

    N, C, H, W = 2, 8, 16, 16          # inplanes = planes = 8, stride = 1
    x = jax.random.normal(kx, (N, C, H, W), jnp.float32)
    params = make_params(kp, C, C)

    # block_h=8 -> 2 row blocks per image, so the halo / clamped-index path is exercised.
    fwd = jax.jit(functools.partial(basic_block_forward, block_h=8))
    out = jax.block_until_ready(fwd(x, params))
    ref = jax.block_until_ready(_reference_forward(x, params))

    assert out.shape == (N, C, H, W), out.shape
    assert jnp.allclose(out, ref, atol=3e-2, rtol=3e-2), float(jnp.max(jnp.abs(out - ref)))
    print("KERNEL_OK")
</pallas_src>

<mosaic_0001>
module attributes {stable_mosaic.version = 11 : i64} {
  func.func @_basic_block_kernel(%arg0: i32, %arg1: i32, %arg2: memref<1x128x128xbf16, #tpu.memory_space<vmem>>, %arg3: memref<1x32x128xbf16, #tpu.memory_space<vmem>>, %arg4: memref<1x32x128xbf16, #tpu.memory_space<vmem>>, %arg5: memref<3x384x128xbf16, #tpu.memory_space<vmem>>, %arg6: memref<1x128xf32, #tpu.memory_space<vmem>>, %arg7: memref<3x384x128xbf16, #tpu.memory_space<vmem>>, %arg8: memref<1x128xf32, #tpu.memory_space<vmem>>, %arg9: memref<1x128x128xbf16, #tpu.memory_space<vmem>>, %arg10: memref<224x128xbf16, #tpu.memory_space<vmem>>) attributes {dimension_semantics = [#tpu.dimension_semantics<parallel>, #tpu.dimension_semantics<parallel>], iteration_bounds = array<i64: 2, 2>, scalar_prefetch = 0 : i64, scratch_operands = 1 : i64, tpu.core_type = #tpu.core_type<tc>, window_params = [{transform_indices = @transform_0, window_bounds = array<i64: 1, 128, 128>}, {transform_indices = @transform_1, window_bounds = array<i64: 1, 32, 128>}, {transform_indices = @transform_2, window_bounds = array<i64: 1, 32, 128>}, {pipeline_mode = #tpu.pipeline_mode<synchronous>, transform_indices = @transform_3, window_bounds = array<i64: 3, 384, 128>}, {pipeline_mode = #tpu.pipeline_mode<synchronous>, transform_indices = @transform_4, window_bounds = array<i64: 1, 128>}, {pipeline_mode = #tpu.pipeline_mode<synchronous>, transform_indices = @transform_5, window_bounds = array<i64: 3, 384, 128>}, {pipeline_mode = #tpu.pipeline_mode<synchronous>, transform_indices = @transform_6, window_bounds = array<i64: 1, 128>}, {transform_indices = @transform_7, window_bounds = array<i64: 1, 128, 128>}]} {
    %c0 = arith.constant 0 : index
    %c0_0 = arith.constant 0 : index
    %c0_1 = arith.constant 0 : index
    %0 = vector.load %arg2[%c0, %c0_0, %c0_1] : memref<1x128x128xbf16, #tpu.memory_space<vmem>>, vector<1x128x128xbf16>
    %1 = vector.shape_cast %0 : vector<1x128x128xbf16> to vector<128x128xbf16>
    %c48 = arith.constant 48 : index
    %c0_2 = arith.constant 0 : index
    %2 = vector.load %arg10[%c48, %c0_2] : memref<224x128xbf16, #tpu.memory_space<vmem>>, vector<128x128xbf16>
    tpu.vector_store %arg10[%c48, %c0_2], %1 {strides = array<i32>} : memref<224x128xbf16, #tpu.memory_space<vmem>>, vector<128x128xbf16>,
    %c0_3 = arith.constant 0 : index
    %c0_4 = arith.constant 0 : index
    %c0_5 = arith.constant 0 : index
    %3 = vector.load %arg3[%c0_3, %c0_4, %c0_5] : memref<1x32x128xbf16, #tpu.memory_space<vmem>>, vector<1x32x128xbf16>
    %4 = vector.shape_cast %3 : vector<1x32x128xbf16> to vector<32x128xbf16>
    %c16 = arith.constant 16 : index
    %c0_6 = arith.constant 0 : index
    %5 = vector.load %arg10[%c16, %c0_6] : memref<224x128xbf16, #tpu.memory_space<vmem>>, vector<32x128xbf16>
    tpu.vector_store %arg10[%c16, %c0_6], %4 {strides = array<i32>} : memref<224x128xbf16, #tpu.memory_space<vmem>>, vector<32x128xbf16>,
    %c0_7 = arith.constant 0 : index
    %c0_8 = arith.constant 0 : index
    %c0_9 = arith.constant 0 : index
    %6 = vector.load %arg4[%c0_7, %c0_8, %c0_9] : memref<1x32x128xbf16, #tpu.memory_space<vmem>>, vector<1x32x128xbf16>
    %7 = vector.shape_cast %6 : vector<1x32x128xbf16> to vector<32x128xbf16>
    %c176 = arith.constant 176 : index
    %c0_10 = arith.constant 0 : index
    %8 = vector.load %arg10[%c176, %c0_10] : memref<224x128xbf16, #tpu.memory_space<vmem>>, vector<32x128xbf16>
    tpu.vector_store %arg10[%c176, %c0_10], %7 {strides = array<i32>} : memref<224x128xbf16, #tpu.memory_space<vmem>>, vector<32x128xbf16>,
    %c0_i32 = arith.constant 0 : i32
    %9 = arith.cmpi eq, %arg1, %c0_i32 : i32
    %10 = arith.extui %9 : i1 to i32
    %c0_i32_11 = arith.constant 0 : i32
    %11 = arith.cmpi ne, %10, %c0_i32_11 : i32
    scf.if %11 {
      %cst_77 = arith.constant 0.000000e+00 : bf16
      %148 = vector.broadcast %cst_77 : bf16 to vector<32x128xbf16>
      %c16_78 = arith.constant 16 : index
      %c0_79 = arith.constant 0 : index
      %149 = vector.load %arg10[%c16_78, %c0_79] : memref<224x128xbf16, #tpu.memory_space<vmem>>, vector<32x128xbf16>
      tpu.vector_store %arg10[%c16_78, %c0_79], %148 {strides = array<i32>} : memref<224x128xbf16, #tpu.memory_space<vmem>>, vector<32x128xbf16>,
    } else {
    }
    %c1_i32 = arith.constant 1 : i32
    %12 = arith.cmpi eq, %arg1, %c1_i32 : i32
    %13 = arith.extui %12 : i1 to i32
    %c0_i32_12 = arith.constant 0 : i32
    %14 = arith.cmpi ne, %13, %c0_i32_12 : i32
    scf.if %14 {
      %cst_77 = arith.constant 0.000000e+00 : bf16
      %148 = vector.broadcast %cst_77 : bf16 to vector<32x128xbf16>
      %c176_78 = arith.constant 176 : index
      %c0_79 = arith.constant 0 : index
      %149 = vector.load %arg10[%c176_78, %c0_79] : memref<224x128xbf16, #tpu.memory_space<vmem>>, vector<32x128xbf16>
      tpu.vector_store %arg10[%c176_78, %c0_79], %148 {strides = array<i32>} : memref<224x128xbf16, #tpu.memory_space<vmem>>, vector<32x128xbf16>,
    } else {
    }
    %15 = tpu.iota {dimensions = array<i32: 0>} : vector<192x1xi32>
    %c16_i32 = arith.constant 16 : i32
    %c0_i32_13 = arith.constant 0 : i32
    %16 = arith.cmpi eq, %c16_i32, %c0_i32_13 : i32
    %c1_i32_14 = arith.constant 1 : i32
    %17 = arith.select %16, %c1_i32_14, %c16_i32 : i32
    %18 = vector.broadcast %17 : i32 to vector<192x1xi32>
    %19 = arith.remsi %15, %18 : vector<192x1xi32>
    %c0_i32_15 = arith.constant 0 : i32
    %20 = vector.broadcast %c0_i32_15 : i32 to vector<192x1xi32>
    %21 = arith.cmpi ne, %19, %20 : vector<192x1xi32>
    %c0_i32_16 = arith.constant 0 : i32
    %22 = vector.broadcast %c0_i32_16 : i32 to vector<192x1xi32>
    %23 = arith.cmpi slt, %19, %22 : vector<192x1xi32>
    %c0_i32_17 = arith.constant 0 : i32
    %24 = arith.cmpi slt, %17, %c0_i32_17 : i32
    %25 = vector.broadcast %24 : i1 to vector<192x1xi1>
    %26 = vector.broadcast %25 : vector<192x1xi1> to vector<192x1xi1>
    %27 = arith.xori %23, %26 : vector<192x1xi1>
    %28 = arith.andi %27, %21 : vector<192x1xi1>
    %29 = vector.broadcast %17 : i32 to vector<192x1xi32>
    %30 = arith.addi %19, %29 : vector<192x1xi32>
    %31 = arith.select %28, %30, %19 : vector<192x1xi1>, vector<192x1xi32>
    %c15 = arith.constant 15 : index
    %c0_18 = arith.constant 0 : index
    %32 = vector.load %arg10[%c15, %c0_18] : memref<224x128xbf16, #tpu.memory_space<vmem>>, vector<192x128xbf16>
    %c1_i32_19 = arith.constant 1 : i32
    %33 = vector.broadcast %c1_i32_19 : i32 to vector<192x1xi32>
    %34 = arith.cmpi sge, %31, %33 : vector<192x1xi32>
    %cst = arith.constant 0.000000e+00 : bf16
    %35 = vector.broadcast %cst : bf16 to vector<192x128xbf16>
    %36 = vector.shape_cast %34 : vector<192x1xi1> to vector<192x1xi1>
    %37 = vector.broadcast %36 : vector<192x1xi1> to vector<192x128xi1>
    %38 = arith.select %37, %32, %35 : vector<192x128xi1>, vector<192x128xbf16>
    %39 = vector.extract_strided_slice %38 {offsets = [0, 0], sizes = [160, 128], strides = [1, 1]} : vector<192x128xbf16> to vector<160x128xbf16>
    %40 = vector.extract_strided_slice %38 {offsets = [16, 0], sizes = [160, 128], strides = [1, 1]} : vector<192x128xbf16> to vector<160x128xbf16>
    %41 = vector.extract_strided_slice %38 {offsets = [32, 0], sizes = [160, 128], strides = [1, 1]} : vector<192x128xbf16> to vector<160x128xbf16>
    %42 = tpu.concatenate %39, %40, %41 in 1 : vector<160x128xbf16>, vector<160x128xbf16>, vector<160x128xbf16> -> vector<160x384xbf16>
    %c0_20 = arith.constant 0 : index
    %c0_21 = arith.constant 0 : index
    %c0_22 = arith.constant 0 : index
    %43 = vector.load %arg5[%c0_20, %c0_21, %c0_22] : memref<3x384x128xbf16, #tpu.memory_space<vmem>>, vector<1x384x128xbf16>
    %44 = vector.shape_cast %43 : vector<1x384x128xbf16> to vector<384x128xbf16>
    %cst_23 = arith.constant dense<0.000000e+00> : vector<160x128xf32>
    %45 = tpu.matmul %42, %44, %cst_23 {dimension_numbers = #tpu.dot_dimension_numbers<[1], [0], [0], [1], [0, 0, 1, 1], [], []>} : vector<160x384xbf16>, vector<384x128xbf16>, vector<160x128xf32> -> vector<160x128xf32>
    %c16_24 = arith.constant 16 : index
    %c0_25 = arith.constant 0 : index
    %46 = vector.load %arg10[%c16_24, %c0_25] : memref<224x128xbf16, #tpu.memory_space<vmem>>, vector<192x128xbf16>
    %47 = vector.extract_strided_slice %46 {offsets = [0, 0], sizes = [160, 128], strides = [1, 1]} : vector<192x128xbf16> to vector<160x128xbf16>
    %48 = vector.extract_strided_slice %46 {offsets = [16, 0], sizes = [160, 128], strides = [1, 1]} : vector<192x128xbf16> to vector<160x128xbf16>
    %49 = vector.extract_strided_slice %46 {offsets = [32, 0], sizes = [160, 128], strides = [1, 1]} : vector<192x128xbf16> to vector<160x128xbf16>
    %50 = tpu.concatenate %47, %48, %49 in 1 : vector<160x128xbf16>, vector<160x128xbf16>, vector<160x128xbf16> -> vector<160x384xbf16>
    %c1 = arith.constant 1 : index
    %c0_26 = arith.constant 0 : index
    %c0_27 = arith.constant 0 : index
    %51 = vector.load %arg5[%c1, %c0_26, %c0_27] : memref<3x384x128xbf16, #tpu.memory_space<vmem>>, vector<1x384x128xbf16>
    %52 = vector.shape_cast %51 : vector<1x384x128xbf16> to vector<384x128xbf16>
    %cst_28 = arith.constant dense<0.000000e+00> : vector<160x128xf32>
    %53 = tpu.matmul %50, %52, %cst_28 {dimension_numbers = #tpu.dot_dimension_numbers<[1], [0], [0], [1], [0, 0, 1, 1], [], []>} : vector<160x384xbf16>, vector<384x128xbf16>, vector<160x128xf32> -> vector<160x128xf32>
    %54 = arith.addf %45, %53 : vector<160x128xf32>
    %c17 = arith.constant 17 : index
    %c0_29 = arith.constant 0 : index
    %55 = vector.load %arg10[%c17, %c0_29] : memref<224x128xbf16, #tpu.memory_space<vmem>>, vector<192x128xbf16>
    %c14_i32 = arith.constant 14 : i32
    %56 = vector.broadcast %c14_i32 : i32 to vector<192x1xi32>
    %57 = arith.cmpi sle, %31, %56 : vector<192x1xi32>
    %cst_30 = arith.constant 0.000000e+00 : bf16
    %58 = vector.broadcast %cst_30 : bf16 to vector<192x128xbf16>
    %59 = vector.shape_cast %57 : vector<192x1xi1> to vector<192x1xi1>
    %60 = vector.broadcast %59 : vector<192x1xi1> to vector<192x128xi1>
    %61 = arith.select %60, %55, %58 : vector<192x128xi1>, vector<192x128xbf16>
    %62 = vector.extract_strided_slice %61 {offsets = [0, 0], sizes = [160, 128], strides = [1, 1]} : vector<192x128xbf16> to vector<160x128xbf16>
    %63 = vector.extract_strided_slice %61 {offsets = [16, 0], sizes = [160, 128], strides = [1, 1]} : vector<192x128xbf16> to vector<160x128xbf16>
    %64 = vector.extract_strided_slice %61 {offsets = [32, 0], sizes = [160, 128], strides = [1, 1]} : vector<192x128xbf16> to vector<160x128xbf16>
    %65 = tpu.concatenate %62, %63, %64 in 1 : vector<160x128xbf16>, vector<160x128xbf16>, vector<160x128xbf16> -> vector<160x384xbf16>
    %c2 = arith.constant 2 : index
    %c0_31 = arith.constant 0 : index
    %c0_32 = arith.constant 0 : index
    %66 = vector.load %arg5[%c2, %c0_31, %c0_32] : memref<3x384x128xbf16, #tpu.memory_space<vmem>>, vector<1x384x128xbf16>
    %67 = vector.shape_cast %66 : vector<1x384x128xbf16> to vector<384x128xbf16>
    %cst_33 = arith.constant dense<0.000000e+00> : vector<160x128xf32>
    %68 = tpu.matmul %65, %67, %cst_33 {dimension_numbers = #tpu.dot_dimension_numbers<[1], [0], [0], [1], [0, 0, 1, 1], [], []>} : vector<160x384xbf16>, vector<384x128xbf16>, vector<160x128xf32> -> vector<160x128xf32>
    %69 = arith.addf %54, %68 : vector<160x128xf32>
    %c0_34 = arith.constant 0 : index
    %c0_35 = arith.constant 0 : index
    %70 = vector.load %arg6[%c0_34, %c0_35] : memref<1x128xf32, #tpu.memory_space<vmem>>, vector<1x128xf32>
    %71 = vector.broadcast %70 : vector<1x128xf32> to vector<160x128xf32>
    %72 = arith.addf %69, %71 : vector<160x128xf32>
    %cst_36 = arith.constant 0.000000e+00 : f32
    %73 = vector.broadcast %cst_36 : f32 to vector<160x128xf32>
    %74 = arith.maximumf %72, %73 : vector<160x128xf32>
    %75 = arith.truncf %74 : vector<160x128xf32> to vector<160x128xbf16>
    %c16_37 = arith.constant 16 : index
    %c0_38 = arith.constant 0 : index
    %76 = vector.load %arg10[%c16_37, %c0_38] : memref<224x128xbf16, #tpu.memory_space<vmem>>, vector<160x128xbf16>
    tpu.vector_store %arg10[%c16_37, %c0_38], %75 {strides = array<i32>} : memref<224x128xbf16, #tpu.memory_space<vmem>>, vector<160x128xbf16>,
    %c0_i32_39 = arith.constant 0 : i32
    %77 = arith.cmpi eq, %arg1, %c0_i32_39 : i32
    %78 = arith.extui %77 : i1 to i32
    %c0_i32_40 = arith.constant 0 : i32
    %79 = arith.cmpi ne, %78, %c0_i32_40 : i32
    scf.if %79 {
      %cst_77 = arith.constant 0.000000e+00 : bf16
      %148 = vector.broadcast %cst_77 : bf16 to vector<16x128xbf16>
      %c16_78 = arith.constant 16 : index
      %c0_79 = arith.constant 0 : index
      %149 = vector.load %arg10[%c16_78, %c0_79] : memref<224x128xbf16, #tpu.memory_space<vmem>>, vector<16x128xbf16>
      tpu.vector_store %arg10[%c16_78, %c0_79], %148 {strides = array<i32>} : memref<224x128xbf16, #tpu.memory_space<vmem>>, vector<16x128xbf16>,
    } else {
    }
    %c1_i32_41 = arith.constant 1 : i32
    %80 = arith.cmpi eq, %arg1, %c1_i32_41 : i32
    %81 = arith.extui %80 : i1 to i32
    %c0_i32_42 = arith.constant 0 : i32
    %82 = arith.cmpi ne, %81, %c0_i32_42 : i32
    scf.if %82 {
      %cst_77 = arith.constant 0.000000e+00 : bf16
      %148 = vector.broadcast %cst_77 : bf16 to vector<16x128xbf16>
      %c160 = arith.constant 160 : index
      %c0_78 = arith.constant 0 : index
      %149 = vector.load %arg10[%c160, %c0_78] : memref<224x128xbf16, #tpu.memory_space<vmem>>, vector<16x128xbf16>
      tpu.vector_store %arg10[%c160, %c0_78], %148 {strides = array<i32>} : memref<224x128xbf16, #tpu.memory_space<vmem>>, vector<16x128xbf16>,
    } else {
    }
    %83 = tpu.iota {dimensions = array<i32: 0>} : vector<160x1xi32>
    %c16_i32_43 = arith.constant 16 : i32
    %c0_i32_44 = arith.constant 0 : i32
    %84 = arith.cmpi eq, %c16_i32_43, %c0_i32_44 : i32
    %c1_i32_45 = arith.constant 1 : i32
    %85 = arith.select %84, %c1_i32_45, %c16_i32_43 : i32
    %86 = vector.broadcast %85 : i32 to vector<160x1xi32>
    %87 = arith.remsi %83, %86 : vector<160x1xi32>
    %c0_i32_46 = arith.constant 0 : i32
    %88 = vector.broadcast %c0_i32_46 : i32 to vector<160x1xi32>
    %89 = arith.cmpi ne, %87, %88 : vector<160x1xi32>
    %c0_i32_47 = arith.constant 0 : i32
    %90 = vector.broadcast %c0_i32_47 : i32 to vector<160x1xi32>
    %91 = arith.cmpi slt, %87, %90 : vector<160x1xi32>
    %c0_i32_48 = arith.constant 0 : i32
    %92 = arith.cmpi slt, %85, %c0_i32_48 : i32
    %93 = vector.broadcast %92 : i1 to vector<160x1xi1>
    %94 = vector.broadcast %93 : vector<160x1xi1> to vector<160x1xi1>
    %95 = arith.xori %91, %94 : vector<160x1xi1>
    %96 = arith.andi %95, %89 : vector<160x1xi1>
    %97 = vector.broadcast %85 : i32 to vector<160x1xi32>
    %98 = arith.addi %87, %97 : vector<160x1xi32>
    %99 = arith.select %96, %98, %87 : vector<160x1xi1>, vector<160x1xi32>
    %c15_49 = arith.constant 15 : index
    %c0_50 = arith.constant 0 : index
    %100 = vector.load %arg10[%c15_49, %c0_50] : memref<224x128xbf16, #tpu.memory_space<vmem>>, vector<160x128xbf16>
    %c1_i32_51 = arith.constant 1 : i32
    %101 = vector.broadcast %c1_i32_51 : i32 to vector<160x1xi32>
    %102 = arith.cmpi sge, %99, %101 : vector<160x1xi32>
    %cst_52 = arith.constant 0.000000e+00 : bf16
    %103 = vector.broadcast %cst_52 : bf16 to vector<160x128xbf16>
    %104 = vector.shape_cast %102 : vector<160x1xi1> to vector<160x1xi1>
    %105 = vector.broadcast %104 : vector<160x1xi1> to vector<160x128xi1>
    %106 = arith.select %105, %100, %103 : vector<160x128xi1>, vector<160x128xbf16>
    %107 = vector.extract_strided_slice %106 {offsets = [0, 0], sizes = [128, 128], strides = [1, 1]} : vector<160x128xbf16> to vector<128x128xbf16>
    %108 = vector.extract_strided_slice %106 {offsets = [16, 0], sizes = [128, 128], strides = [1, 1]} : vector<160x128xbf16> to vector<128x128xbf16>
    %109 = vector.extract_strided_slice %106 {offsets = [32, 0], sizes = [128, 128], strides = [1, 1]} : vector<160x128xbf16> to vector<128x128xbf16>
    %110 = tpu.concatenate %107, %108, %109 in 1 : vector<128x128xbf16>, vector<128x128xbf16>, vector<128x128xbf16> -> vector<128x384xbf16>
    %c0_53 = arith.constant 0 : index
    %c0_54 = arith.constant 0 : index
    %c0_55 = arith.constant 0 : index
    %111 = vector.load %arg7[%c0_53, %c0_54, %c0_55] : memref<3x384x128xbf16, #tpu.memory_space<vmem>>, vector<1x384x128xbf16>
    %112 = vector.shape_cast %111 : vector<1x384x128xbf16> to vector<384x128xbf16>
    %cst_56 = arith.constant dense<0.000000e+00> : vector<128x128xf32>
    %113 = tpu.matmul %110, %112, %cst_56 {dimension_numbers = #tpu.dot_dimension_numbers<[1], [0], [0], [1], [0, 0, 1, 1], [], []>} : vector<128x384xbf16>, vector<384x128xbf16>, vector<128x128xf32> -> vector<128x128xf32>
    %c16_57 = arith.constant 16 : index
    %c0_58 = arith.constant 0 : index
    %114 = vector.load %arg10[%c16_57, %c0_58] : memref<224x128xbf16, #tpu.memory_space<vmem>>, vector<160x128xbf16>
    %115 = vector.extract_strided_slice %114 {offsets = [0, 0], sizes = [128, 128], strides = [1, 1]} : vector<160x128xbf16> to vector<128x128xbf16>
    %116 = vector.extract_strided_slice %114 {offsets = [16, 0], sizes = [128, 128], strides = [1, 1]} : vector<160x128xbf16> to vector<128x128xbf16>
    %117 = vector.extract_strided_slice %114 {offsets = [32, 0], sizes = [128, 128], strides = [1, 1]} : vector<160x128xbf16> to vector<128x128xbf16>
    %118 = tpu.concatenate %115, %116, %117 in 1 : vector<128x128xbf16>, vector<128x128xbf16>, vector<128x128xbf16> -> vector<128x384xbf16>
    %c1_59 = arith.constant 1 : index
    %c0_60 = arith.constant 0 : index
    %c0_61 = arith.constant 0 : index
    %119 = vector.load %arg7[%c1_59, %c0_60, %c0_61] : memref<3x384x128xbf16, #tpu.memory_space<vmem>>, vector<1x384x128xbf16>
    %120 = vector.shape_cast %119 : vector<1x384x128xbf16> to vector<384x128xbf16>
    %cst_62 = arith.constant dense<0.000000e+00> : vector<128x128xf32>
    %121 = tpu.matmul %118, %120, %cst_62 {dimension_numbers = #tpu.dot_dimension_numbers<[1], [0], [0], [1], [0, 0, 1, 1], [], []>} : vector<128x384xbf16>, vector<384x128xbf16>, vector<128x128xf32> -> vector<128x128xf32>
    %122 = arith.addf %113, %121 : vector<128x128xf32>
    %c17_63 = arith.constant 17 : index
    %c0_64 = arith.constant 0 : index
    %123 = vector.load %arg10[%c17_63, %c0_64] : memref<224x128xbf16, #tpu.memory_space<vmem>>, vector<160x128xbf16>
    %c14_i32_65 = arith.constant 14 : i32
    %124 = vector.broadcast %c14_i32_65 : i32 to vector<160x1xi32>
    %125 = arith.cmpi sle, %99, %124 : vector<160x1xi32>
    %cst_66 = arith.constant 0.000000e+00 : bf16
    %126 = vector.broadcast %cst_66 : bf16 to vector<160x128xbf16>
    %127 = vector.shape_cast %125 : vector<160x1xi1> to vector<160x1xi1>
    %128 = vector.broadcast %127 : vector<160x1xi1> to vector<160x128xi1>
    %129 = arith.select %128, %123, %126 : vector<160x128xi1>, vector<160x128xbf16>
    %130 = vector.extract_strided_slice %129 {offsets = [0, 0], sizes = [128, 128], strides = [1, 1]} : vector<160x128xbf16> to vector<128x128xbf16>
    %131 = vector.extract_strided_slice %129 {offsets = [16, 0], sizes = [128, 128], strides = [1, 1]} : vector<160x128xbf16> to vector<128x128xbf16>
    %132 = vector.extract_strided_slice %129 {offsets = [32, 0], sizes = [128, 128], strides = [1, 1]} : vector<160x128xbf16> to vector<128x128xbf16>
    %133 = tpu.concatenate %130, %131, %132 in 1 : vector<128x128xbf16>, vector<128x128xbf16>, vector<128x128xbf16> -> vector<128x384xbf16>
    %c2_67 = arith.constant 2 : index
    %c0_68 = arith.constant 0 : index
    %c0_69 = arith.constant 0 : index
    %134 = vector.load %arg7[%c2_67, %c0_68, %c0_69] : memref<3x384x128xbf16, #tpu.memory_space<vmem>>, vector<1x384x128xbf16>
    %135 = vector.shape_cast %134 : vector<1x384x128xbf16> to vector<384x128xbf16>
    %cst_70 = arith.constant dense<0.000000e+00> : vector<128x128xf32>
    %136 = tpu.matmul %133, %135, %cst_70 {dimension_numbers = #tpu.dot_dimension_numbers<[1], [0], [0], [1], [0, 0, 1, 1], [], []>} : vector<128x384xbf16>, vector<384x128xbf16>, vector<128x128xf32> -> vector<128x128xf32>
    %137 = arith.addf %122, %136 : vector<128x128xf32>
    %c0_71 = arith.constant 0 : index
    %c0_72 = arith.constant 0 : index
    %138 = vector.load %arg8[%c0_71, %c0_72] : memref<1x128xf32, #tpu.memory_space<vmem>>, vector<1x128xf32>
    %139 = vector.broadcast %138 : vector<1x128xf32> to vector<128x128xf32>
    %140 = arith.addf %137, %139 : vector<128x128xf32>
    %141 = arith.extf %1 : vector<128x128xbf16> to vector<128x128xf32>
    %142 = arith.addf %140, %141 : vector<128x128xf32>
    %cst_73 = arith.constant 0.000000e+00 : f32
    %143 = vector.broadcast %cst_73 : f32 to vector<128x128xf32>
    %144 = arith.maximumf %142, %143 : vector<128x128xf32>
    %145 = vector.shape_cast %144 : vector<128x128xf32> to vector<1x128x128xf32>
    %146 = arith.truncf %145 : vector<1x128x128xf32> to vector<1x128x128xbf16>
    %c0_74 = arith.constant 0 : index
    %c0_75 = arith.constant 0 : index
    %c0_76 = arith.constant 0 : index
    %147 = vector.load %arg9[%c0_74, %c0_75, %c0_76] : memref<1x128x128xbf16, #tpu.memory_space<vmem>>, vector<1x128x128xbf16>
    tpu.vector_store %arg9[%c0_74, %c0_75, %c0_76], %146 {strides = array<i32>} : memref<1x128x128xbf16, #tpu.memory_space<vmem>>, vector<1x128x128xbf16>,
    return
  }
  func.func @transform_0(%arg0: i32, %arg1: i32) -> (i32, i32, i32) {
    %c0_i32 = arith.constant 0 : i32
    %c0_i32_0 = arith.constant 0 : i32
    return %arg0, %arg1, %c0_i32 : i32, i32, i32
  }
  func.func @transform_1(%arg0: i32, %arg1: i32) -> (i32, i32, i32) {
    %c4_i32 = arith.constant 4 : i32
    %0 = arith.muli %arg1, %c4_i32 : i32
    %c1_i32 = arith.constant 1 : i32
    %1 = arith.subi %0, %c1_i32 : i32
    %c0_i32 = arith.constant 0 : i32
    %2 = arith.maxsi %1, %c0_i32 : i32
    %c0_i32_0 = arith.constant 0 : i32
    %c0_i32_1 = arith.constant 0 : i32
    return %arg0, %2, %c0_i32_0 : i32, i32, i32
  }
  func.func @transform_2(%arg0: i32, %arg1: i32) -> (i32, i32, i32) {
    %c1_i32 = arith.constant 1 : i32
    %0 = arith.addi %arg1, %c1_i32 : i32
    %c4_i32 = arith.constant 4 : i32
    %1 = arith.muli %0, %c4_i32 : i32
    %c7_i32 = arith.constant 7 : i32
    %2 = arith.minsi %1, %c7_i32 : i32
    %c0_i32 = arith.constant 0 : i32
    %c0_i32_0 = arith.constant 0 : i32
    return %arg0, %2, %c0_i32 : i32, i32, i32
  }
  func.func @transform_3(%arg0: i32, %arg1: i32) -> (i32, i32, i32) {
    %c0_i32 = arith.constant 0 : i32
    %c0_i32_0 = arith.constant 0 : i32
    %c0_i32_1 = arith.constant 0 : i32
    %c0_i32_2 = arith.constant 0 : i32
    return %c0_i32, %c0_i32_0, %c0_i32_1 : i32, i32, i32
  }
  func.func @transform_4(%arg0: i32, %arg1: i32) -> (i32, i32) {
    %c0_i32 = arith.constant 0 : i32
    %c0_i32_0 = arith.constant 0 : i32
    %c0_i32_1 = arith.constant 0 : i32
    return %c0_i32, %c0_i32_0 : i32, i32
  }
  func.func @transform_5(%arg0: i32, %arg1: i32) -> (i32, i32, i32) {
    %c0_i32 = arith.constant 0 : i32
    %c0_i32_0 = arith.constant 0 : i32
    %c0_i32_1 = arith.constant 0 : i32
    %c0_i32_2 = arith.constant 0 : i32
    return %c0_i32, %c0_i32_0, %c0_i32_1 : i32, i32, i32
  }
  func.func @transform_6(%arg0: i32, %arg1: i32) -> (i32, i32) {
    %c0_i32 = arith.constant 0 : i32
    %c0_i32_0 = arith.constant 0 : i32
    %c0_i32_1 = arith.constant 0 : i32
    return %c0_i32, %c0_i32_0 : i32, i32
  }
  func.func @transform_7(%arg0: i32, %arg1: i32) -> (i32, i32, i32) {
    %c0_i32 = arith.constant 0 : i32
    %c0_i32_0 = arith.constant 0 : i32
    return %arg0, %arg1, %c0_i32 : i32, i32, i32
  }
}

</mosaic_0001>

<llo_original>
// kernel: basic_block_forward.1
$region0: #{basic_block_forward.1}
  #allocation0 [shape = 'u32[]', space=smem, size = 0x4, offset = 0x4, fixed_abs, tag = 'smem constant byte address 0x4 - core index']
  #allocation1 [shape = 'u32[144,128]{1,0:T(1,128)}', space=vmem, size = 0x12000, scoped, tag = 'internal scratch']
  #allocation2 [shape = 'bf16[224,128]{1,0:T(16,128)(2,1)}', space=vmem, size = 0xe000, scoped, tag = 'scratch operand']
  %s0 = inlined_call_operand.vmem [shape: bf16[2,256,128], index: 0, kind: input, shape index: {}, may-alias: {0,1,2}]
  %s1 = inlined_call_operand.vmem [shape: bf16[2,256,128], index: 1, kind: input, shape index: {}, may-alias: {0,1,2}]
  %s2 = inlined_call_operand.vmem [shape: bf16[2,256,128], index: 2, kind: input, shape index: {}, may-alias: {0,1,2}]
  %s3 = inlined_call_operand.vmem [shape: bf16[3,384,128], index: 3, kind: input, shape index: {}]
  %s4 = inlined_call_operand.vmem [shape: f32[1,128], index: 4, kind: input, shape index: {}]
  %s5 = inlined_call_operand.vmem [shape: bf16[3,384,128], index: 5, kind: input, shape index: {}]
  %s6 = inlined_call_operand.vmem [shape: f32[1,128], index: 6, kind: input, shape index: {}]
  %s7 = inlined_call_operand.vmem [shape: bf16[2,256,128], index: 7, kind: output, shape index: {}]
  %s8 = sld [smem:[#allocation0]]
  $region77: #{basic_block_forward.1} parent=0
    _
  %s10 = ssub.s32 1, %s8
  %s11 = scalar_select 0, %s10, %s8
  loop: start=0, step=1, limit=6
  $region2: #{basic_block_forward.1} parent=0 // loop_pre_header
    _
  $region3: #{basic_block_forward.1} parent=0 // loop_header
    %s13 = sphi 0, %s17
    %p14 = scmp.ge.s32.totalorder %s13, 6
    %s20 = sphi 0, %s32
    %s21 = sphi 0, %s28
    %s22 = sphi 0, %s20
    %s23 = sphi 0, %s21
    %s24 = sphi 0, %s22
    %s25 = sphi 0, %s23
    %s37 = sphi 0, %s39
    %s40 = sphi 0, %s37
    %s41 = sphi 0, %s40
    %s57 = sphi 0, %s41
    %s73 = sphi 0, %s75
    %s76 = sphi 0, %s73
    %s77 = sphi 0, %s76
    %s93 = sphi 0, %s77
    %s109 = sphi 0, %s111
    %s112 = sphi 0, %s109
    %s113 = sphi 0, %s112
    %s129 = sphi 0, %s113
    %s133 = sphi 0, %s133
    %s135 = sphi 0, %s133
    %s136 = sphi 0, %s135
    %s150 = sphi 0, %s136
    %s154 = sphi 0, %s154
    %s156 = sphi 0, %s154
    %s157 = sphi 0, %s156
    %s171 = sphi 0, %s157
    %s175 = sphi 0, %s175
    %s177 = sphi 0, %s175
    %s178 = sphi 0, %s177
    %s192 = sphi 0, %s178
    %s196 = sphi 0, %s196
    %s198 = sphi 0, %s196
    %s199 = sphi 0, %s198
    %s213 = sphi 0, %s199
    %s221 = sphi 0, %s223
    %s224 = sphi 0, %s221
    %s225 = sphi 0, %s224
    %s241 = sphi 0, %s225
  $region4: #{basic_block_forward.1} parent=0 // loop_header_branch
    %16 = sbr.rel (%p14) target = $region8
  $region5: #{basic_block_forward.1} parent=0 // loop_body
    %s18 = ssub.s32 %s13, 1
    %s19 = ssub.s32 %s13, 2
    %s26 = sadd.s32 1, %s21
    %p27 = scmp.ge.s32.totalorder %s26, 2
    %s28 = scalar_select %p27, 0, %s26
    %s29 = sadd.s32 1, %s20
    %s30 = scalar_select %p27, %s29, %s20
    %p31 = scmp.ge.s32.totalorder %s30, 2
    %s32 = scalar_select %p31, 0, %s30
    %s33 = ssub.s32 %s20, %s32
    %s34 = ssub.s32 %s21, %s28
    %s35 = sor.u32 %s33, %s34
    %p36 = scmp.eq.s32.totalorder %s35, 0
    %s38 = sadd.s32 %s37, 1
    %s39 = scalar_select %p36, %s37, %s38
    %p42 = pneg %p36
    %p43 = scmp.eq.s32.totalorder %s13, 3
    %p44 = por %p42, %p43
    %p45 = scmp.ne.s32.totalorder %s37, %s40
    %p46 = scmp.eq.s32.totalorder %s13, 0
    %p47 = por %p45, %p46
    %p48 = scmp.ne.s32.totalorder %s37, %s40
    %p49 = scmp.eq.s32.totalorder %s18, 3
    %p50 = por %p48, %p49
    %p51 = scmp.ne.s32.totalorder %s40, %s41
    %p52 = scmp.eq.s32.totalorder %s18, 0
    %p53 = por %p51, %p52
    %p54 = scmp.ne.s32.totalorder %s40, %s41
    %p55 = scmp.eq.s32.totalorder %s19, 3
    %p56 = por %p54, %p55
    %p58 = scmp.ne.s32.totalorder %s41, %s57
    %p59 = scmp.eq.s32.totalorder %s19, 0
    %p60 = por %p58, %p59
    %s61 = smul.u32 %s21, 4
    %s62 = ssub.s32 %s61, 1
    %p63 = scmp.gt.s32.totalorder %s62, 0
    %s64 = scalar_select %p63, %s62, 0
    %s65 = smul.u32 %s28, 4
    %s66 = ssub.s32 %s65, 1
    %p67 = scmp.gt.s32.totalorder %s66, 0
    %s68 = scalar_select %p67, %s66, 0
    %s69 = ssub.s32 %s20, %s32
    %s70 = ssub.s32 %s64, %s68
    %s71 = sor.u32 %s69, %s70
    %p72 = scmp.eq.s32.totalorder %s71, 0
    %s74 = sadd.s32 %s73, 1
    %s75 = scalar_select %p72, %s73, %s74
    %p78 = pneg %p72
    %p79 = scmp.eq.s32.totalorder %s13, 3
    %p80 = por %p78, %p79
    %p81 = scmp.ne.s32.totalorder %s73, %s76
    %p82 = scmp.eq.s32.totalorder %s13, 0
    %p83 = por %p81, %p82
    %p84 = scmp.ne.s32.totalorder %s73, %s76
    %p85 = scmp.eq.s32.totalorder %s18, 3
    %p86 = por %p84, %p85
    %p87 = scmp.ne.s32.totalorder %s76, %s77
    %p88 = scmp.eq.s32.totalorder %s18, 0
    %p89 = por %p87, %p88
    %p90 = scmp.ne.s32.totalorder %s76, %s77
    %p91 = scmp.eq.s32.totalorder %s19, 3
    %p92 = por %p90, %p91
    %p94 = scmp.ne.s32.totalorder %s77, %s93
    %p95 = scmp.eq.s32.totalorder %s19, 0
    %p96 = por %p94, %p95
    %s97 = sadd.s32 %s21, 1
    %s98 = smul.u32 %s97, 4
    %p99 = scmp.lt.s32.totalorder %s98, 7
    %s100 = scalar_select %p99, %s98, 7
    %s101 = sadd.s32 %s28, 1
    %s102 = smul.u32 %s101, 4
    %p103 = scmp.lt.s32.totalorder %s102, 7
    %s104 = scalar_select %p103, %s102, 7
    %s105 = ssub.s32 %s20, %s32
    %s106 = ssub.s32 %s100, %s104
    %s107 = sor.u32 %s105, %s106
    %p108 = scmp.eq.s32.totalorder %s107, 0
    %s110 = sadd.s32 %s109, 1
    %s111 = scalar_select %p108, %s109, %s110
    %p114 = pneg %p108
    %p115 = scmp.eq.s32.totalorder %s13, 3
    %p116 = por %p114, %p115
    %p117 = scmp.ne.s32.totalorder %s109, %s112
    %p118 = scmp.eq.s32.totalorder %s13, 0
    %p119 = por %p117, %p118
    %p120 = scmp.ne.s32.totalorder %s109, %s112
    %p121 = scmp.eq.s32.totalorder %s18, 3
    %p122 = por %p120, %p121
    %p123 = scmp.ne.s32.totalorder %s112, %s113
    %p124 = scmp.eq.s32.totalorder %s18, 0
    %p125 = por %p123, %p124
    %p126 = scmp.ne.s32.totalorder %s112, %s113
    %p127 = scmp.eq.s32.totalorder %s19, 3
    %p128 = por %p126, %p127
    %p130 = scmp.ne.s32.totalorder %s113, %s129
    %p131 = scmp.eq.s32.totalorder %s19, 0
    %p132 = por %p130, %p131
    %s134 = sadd.s32 %s133, 1
    %p137 = scmp.eq.s32.totalorder %s13, 3
    %p138 = scmp.ne.s32.totalorder %s133, %s135
    %p139 = scmp.eq.s32.totalorder %s13, 0
    %p140 = por %p138, %p139
    %p141 = scmp.ne.s32.totalorder %s133, %s135
    %p142 = scmp.eq.s32.totalorder %s18, 3
    %p143 = por %p141, %p142
    %p144 = scmp.ne.s32.totalorder %s135, %s136
    %p145 = scmp.eq.s32.totalorder %s18, 0
    %p146 = por %p144, %p145
    %p147 = scmp.ne.s32.totalorder %s135, %s136
    %p148 = scmp.eq.s32.totalorder %s19, 3
    %p149 = por %p147, %p148
    %p151 = scmp.ne.s32.totalorder %s136, %s150
    %p152 = scmp.eq.s32.totalorder %s19, 0
    %p153 = por %p151, %p152
    %s155 = sadd.s32 %s154, 1
    %p158 = scmp.eq.s32.totalorder %s13, 3
    %p159 = scmp.ne.s32.totalorder %s154, %s156
    %p160 = scmp.eq.s32.totalorder %s13, 0
    %p161 = por %p159, %p160
    %p162 = scmp.ne.s32.totalorder %s154, %s156
    %p163 = scmp.eq.s32.totalorder %s18, 3
    %p164 = por %p162, %p163
    %p165 = scmp.ne.s32.totalorder %s156, %s157
    %p166 = scmp.eq.s32.totalorder %s18, 0
    %p167 = por %p165, %p166
    %p168 = scmp.ne.s32.totalorder %s156, %s157
    %p169 = scmp.eq.s32.totalorder %s19, 3
    %p170 = por %p168, %p169
    %p172 = scmp.ne.s32.totalorder %s157, %s171
    %p173 = scmp.eq.s32.totalorder %s19, 0
    %p174 = por %p172, %p173
    %s176 = sadd.s32 %s175, 1
    %p179 = scmp.eq.s32.totalorder %s13, 3
    %p180 = scmp.ne.s32.totalorder %s175, %s177
    %p181 = scmp.eq.s32.totalorder %s13, 0
    %p182 = por %p180, %p181
    %p183 = scmp.ne.s32.totalorder %s175, %s177
    %p184 = scmp.eq.s32.totalorder %s18, 3
    %p185 = por %p183, %p184
    %p186 = scmp.ne.s32.totalorder %s177, %s178
    %p187 = scmp.eq.s32.totalorder %s18, 0
    %p188 = por %p186, %p187
    %p189 = scmp.ne.s32.totalorder %s177, %s178
    %p190 = scmp.eq.s32.totalorder %s19, 3
    %p191 = por %p189, %p190
    %p193 = scmp.ne.s32.totalorder %s178, %s192
    %p194 = scmp.eq.s32.totalorder %s19, 0
    %p195 = por %p193, %p194
    %s197 = sadd.s32 %s196, 1
    %p200 = scmp.eq.s32.totalorder %s13, 3
    %p201 = scmp.ne.s32.totalorder %s196, %s198
    %p202 = scmp.eq.s32.totalorder %s13, 0
    %p203 = por %p201, %p202
    %p204 = scmp.ne.s32.totalorder %s196, %s198
    %p205 = scmp.eq.s32.totalorder %s18, 3
    %p206 = por %p204, %p205
    %p207 = scmp.ne.s32.totalorder %s198, %s199
    %p208 = scmp.eq.s32.totalorder %s18, 0
    %p209 = por %p207, %p208
    %p210 = scmp.ne.s32.totalorder %s198, %s199
    %p211 = scmp.eq.s32.totalorder %s19, 3
    %p212 = por %p210, %p211
    %p214 = scmp.ne.s32.totalorder %s199, %s213
    %p215 = scmp.eq.s32.totalorder %s19, 0
    %p216 = por %p214, %p215
    %s217 = ssub.s32 %s20, %s32
    %s218 = ssub.s32 %s21, %s28
    %s219 = sor.u32 %s217, %s218
    %p220 = scmp.eq.s32.totalorder %s219, 0
    %s222 = sadd.s32 %s221, 1
    %s223 = scalar_select %p220, %s221, %s222
    %p226 = pneg %p220
    %p227 = scmp.eq.s32.totalorder %s13, 3
    %p228 = por %p226, %p227
    %p229 = scmp.ne.s32.totalorder %s221, %s224
    %p230 = scmp.eq.s32.totalorder %s13, 0
    %p231 = por %p229, %p230
    %p232 = scmp.ne.s32.totalorder %s221, %s224
    %p233 = scmp.eq.s32.totalorder %s18, 3
    %p234 = por %p232, %p233
    %p235 = scmp.ne.s32.totalorder %s224, %s225
    %p236 = scmp.eq.s32.totalorder %s18, 0
    %p237 = por %p235, %p236
    %p238 = scmp.ne.s32.totalorder %s224, %s225
    %p239 = scmp.eq.s32.totalorder %s19, 3
    %p240 = por %p238, %p239
    %p242 = scmp.ne.s32.totalorder %s225, %s241
    %p243 = scmp.eq.s32.totalorder %s19, 0
    %p244 = por %p242, %p243
    %p245 = scmp.le.s32.totalorder 1, %s13
    %p246 = scmp.lt.s32.totalorder %s13, 5
    %p247 = pnand %p245, %p246
    %p248 = pneg %p247
    // Predicated region
    $region9: #{basic_block_forward.1} parent=5 // pred_check
      _
    $region10: #{basic_block_forward.1} parent=5 // pred_check_branch
      %250 = sbr.rel (%p247) target = $region12
    $region11: #{basic_block_forward.1} parent=5 // pred_region
      %s251 = ssub.s32 %s13, 1
      // Predicated region
      $region13: #{basic_block_forward.1} parent=11 // pred_check
        %p252 = pneg %p146
      $region14: #{basic_block_forward.1} parent=11 // pred_check_branch
        %254 = sbr.rel (%p252) target = $region16
      $region15: #{basic_block_forward.1} parent=11 // pred_region
        _
      $region16: #{basic_block_forward.1} parent=11 // pred_fallthru
        _
      // Predicated region
      $region17: #{basic_block_forward.1} parent=11 // pred_check
        %p255 = pneg %p167
      $region18: #{basic_block_forward.1} parent=11 // pred_check_branch
        %257 = sbr.rel (%p255) target = $region20
      $region19: #{basic_block_forward.1} parent=11 // pred_region
        _
      $region20: #{basic_block_forward.1} parent=11 // pred_fallthru
        _
      // Predicated region
      $region21: #{basic_block_forward.1} parent=11 // pred_check
        %p258 = pneg %p188
      $region22: #{basic_block_forward.1} parent=11 // pred_check_branch
        %260 = sbr.rel (%p258) target = $region24
      $region23: #{basic_block_forward.1} parent=11 // pred_region
        _
      $region24: #{basic_block_forward.1} parent=11 // pred_fallthru
        _
      // Predicated region
      $region25: #{basic_block_forward.1} parent=11 // pred_check
        %p261 = pneg %p209
      $region26: #{basic_block_forward.1} parent=11 // pred_check_branch
        %263 = sbr.rel (%p261) target = $region28
      $region27: #{basic_block_forward.1} parent=11 // pred_region
        _
      $region28: #{basic_block_forward.1} parent=11 // pred_fallthru
        _
    $region12: #{basic_block_forward.1} parent=5 // pred_fallthru
      _
    %p264 = scmp.lt.s32.totalorder %s13, 4
    // Predicated region
    $region29: #{basic_block_forward.1} parent=5 // pred_check
      %p265 = pneg %p264
    $region30: #{basic_block_forward.1} parent=5 // pred_check_branch
      %267 = sbr.rel (%p265) target = $region32
    $region31: #{basic_block_forward.1} parent=5 // pred_region
      // Predicated region
      $region33: #{basic_block_forward.1} parent=31 // pred_check
        %p268 = pneg %p47
      $region34: #{basic_block_forward.1} parent=31 // pred_check_branch
        %270 = sbr.rel (%p268) target = $region36
      $region35: #{basic_block_forward.1} parent=31 // pred_region
        %s271 = smul.u32 16, %s21
        %p272 = scmp.lt.s32.totalorder %s20, 1
        %s273 = scalar_select %p272, %s20, 1
        %p274 = scmp.lt.s32.totalorder %s271, 31
        %s275 = scalar_select %p274, %s271, 31
        %s276 = smul.addr %s273, 32
        %s277 = sadd.s32 %s275, %s276
        %s278 = smul.addr %s277, 4
        %s279 = scalar_lea.vmem %s0, %s278
        %s280 = smul.u32 16, %s21
      $region36: #{basic_block_forward.1} parent=31 // pred_fallthru
        _
      // Predicated region
      $region37: #{basic_block_forward.1} parent=31 // pred_check
        %p281 = pneg %p83
      $region38: #{basic_block_forward.1} parent=31 // pred_check_branch
        %283 = sbr.rel (%p281) target = $region40
      $region39: #{basic_block_forward.1} parent=31 // pred_region
        %s284 = smul.u32 %s21, 4
        %s285 = ssub.s32 %s284, 1
        %p286 = scmp.gt.s32.totalorder %s285, 0
        %s287 = scalar_select %p286, %s285, 0
        %s288 = smul.u32 4, %s287
        %p289 = scmp.lt.s32.totalorder %s20, 1
        %s290 = scalar_select %p289, %s20, 1
        %p291 = scmp.lt.s32.totalorder %s288, 31
        %s292 = scalar_select %p291, %s288, 31
        %s293 = smul.addr %s290, 32
        %s294 = sadd.s32 %s292, %s293
        %s295 = smul.addr %s294, 4
        %s296 = scalar_lea.vmem %s1, %s295
        %s297 = smul.u32 %s21, 4
        %s298 = ssub.s32 %s297, 1
        %p299 = scmp.gt.s32.totalorder %s298, 0
        %s300 = scalar_select %p299, %s298, 0
        %s301 = smul.u32 4, %s300
      $region40: #{basic_block_forward.1} parent=31 // pred_fallthru
        _
      // Predicated region
      $region41: #{basic_block_forward.1} parent=31 // pred_check
        %p302 = pneg %p119
      $region42: #{basic_block_forward.1} parent=31 // pred_check_branch
        %304 = sbr.rel (%p302) target = $region44
      $region43: #{basic_block_forward.1} parent=31 // pred_region
        %s305 = sadd.s32 %s21, 1
        %s306 = smul.u32 %s305, 4
        %p307 = scmp.lt.s32.totalorder %s306, 7
        %s308 = scalar_select %p307, %s306, 7
        %s309 = smul.u32 4, %s308
        %p310 = scmp.lt.s32.totalorder %s20, 1
        %s311 = scalar_select %p310, %s20, 1
        %p312 = scmp.lt.s32.totalorder %s309, 31
        %s313 = scalar_select %p312, %s309, 31
        %s314 = smul.addr %s311, 32
        %s315 = sadd.s32 %s313, %s314
        %s316 = smul.addr %s315, 4
        %s317 = scalar_lea.vmem %s2, %s316
        %s318 = sadd.s32 %s21, 1
        %s319 = smul.u32 %s318, 4
        %p320 = scmp.lt.s32.totalorder %s319, 7
        %s321 = scalar_select %p320, %s319, 7
        %s322 = smul.u32 4, %s321
      $region44: #{basic_block_forward.1} parent=31 // pred_fallthru
        _
    $region32: #{basic_block_forward.1} parent=5 // pred_fallthru
      _
    %p323 = scmp.le.s32.totalorder 1, %s13
    %p324 = scmp.lt.s32.totalorder %s13, 5
    %p325 = pnand %p323, %p324
    %p326 = pneg %p325
    // Predicated region
    $region45: #{basic_block_forward.1} parent=5 // pred_check
      _
    $region46: #{basic_block_forward.1} parent=5 // pred_check_branch
      %328 = sbr.rel (%p325) target = $region48
    $region47: #{basic_block_forward.1} parent=5 // pred_region
      %s329 = ssub.s32 %s13, 1
      %s330 = smul.u32 16, %s23
      %p331 = scmp.lt.s32.totalorder %s22, 1
      %s332 = scalar_select %p331, %s22, 1
      %p333 = scmp.lt.s32.totalorder %s330, 31
      %s334 = scalar_select %p333, %s330, 31
      %s335 = smul.addr %s332, 32
      %s336 = sadd.s32 %s334, %s335
      %s337 = smul.addr %s336, 4
      %s338 = scalar_lea.vmem %s0, %s337
      %p339 = pneg %p53
      %p340 = pneg %p50
      %s341 = smul.u32 %s23, 4
      %s342 = ssub.s32 %s341, 1
      %p343 = scmp.gt.s32.totalorder %s342, 0
      %s344 = scalar_select %p343, %s342, 0
      %s345 = smul.u32 4, %s344
      %p346 = scmp.lt.s32.totalorder %s22, 1
      %s347 = scalar_select %p346, %s22, 1
      %p348 = scmp.lt.s32.totalorder %s345, 31
      %s349 = scalar_select %p348, %s345, 31
      %s350 = smul.addr %s347, 32
      %s351 = sadd.s32 %s349, %s350
      %s352 = smul.addr %s351, 4
      %s353 = scalar_lea.vmem %s1, %s352
      %p354 = pneg %p89
      %p355 = pneg %p86
      %s356 = sadd.s32 %s23, 1
      %s357 = smul.u32 %s356, 4
      %p358 = scmp.lt.s32.totalorder %s357, 7
      %s359 = scalar_select %p358, %s357, 7
      %s360 = smul.u32 4, %s359
      %p361 = scmp.lt.s32.totalorder %s22, 1
      %s362 = scalar_select %p361, %s22, 1
      %p363 = scmp.lt.s32.totalorder %s360, 31
      %s364 = scalar_select %p363, %s360, 31
      %s365 = smul.addr %s362, 32
      %s366 = sadd.s32 %s364, %s365
      %s367 = smul.addr %s366, 4
      %s368 = scalar_lea.vmem %s2, %s367
      %p369 = pneg %p125
      %p370 = pneg %p122
      %p371 = pneg %p146
      %p372 = pneg %p143
      %p373 = pneg %p167
      %p374 = pneg %p164
      %p375 = pneg %p188
      %p376 = pneg %p185
      %p377 = pneg %p209
      %p378 = pneg %p206
      %p379 = pneg %p237
      %p380 = pneg %p234
      %s381 = smul.u32 16, %s23
      %p382 = scmp.lt.s32.totalorder %s22, 1
      %s383 = scalar_select %p382, %s22, 1
      %p384 = scmp.lt.s32.totalorder %s381, 31
      %s385 = scalar_select %p384, %s381, 31
      %s386 = smul.addr %s383, 32
      %s387 = sadd.s32 %s385, %s386
      %s388 = smul.addr %s387, 4
      %s389 = scalar_lea.vmem %s7, %s388
      %s390 = smul.u32 16, %s23
      %p391 = scmp.lt.s32.totalorder %s22, 1
      %s392 = scalar_select %p391, %s22, 1
      %p393 = scmp.lt.s32.totalorder %s390, 31
      %s394 = scalar_select %p393, %s390, 31
      %s395 = smul.addr %s392, 32
      %s396 = sadd.s32 %s394, %s395
      %s397 = smul.addr %s396, 4
      %s398 = scalar_lea.vmem %s0, %s397
      %s399 = smul.u32 16, %s23
      %s400 = smul.u32 %s23, 4
      %s401 = ssub.s32 %s400, 1
      %p402 = scmp.gt.s32.totalorder %s401, 0
      %s403 = scalar_select %p402, %s401, 0
      %s404 = smul.u32 4, %s403
      %p405 = scmp.lt.s32.totalorder %s22, 1
      %s406 = scalar_select %p405, %s22, 1
      %p407 = scmp.lt.s32.totalorder %s404, 31
      %s408 = scalar_select %p407, %s404, 31
      %s409 = smul.addr %s406, 32
      %s410 = sadd.s32 %s408, %s409
      %s411 = smul.addr %s410, 4
      %s412 = scalar_lea.vmem %s1, %s411
      %s413 = smul.u32 %s23, 4
      %s414 = ssub.s32 %s413, 1
      %p415 = scmp.gt.s32.totalorder %s414, 0
      %s416 = scalar_select %p415, %s414, 0
      %s417 = smul.u32 4, %s416
      %s418 = sadd.s32 %s23, 1
      %s419 = smul.u32 %s418, 4
      %p420 = scmp.lt.s32.totalorder %s419, 7
      %s421 = scalar_select %p420, %s419, 7
      %s422 = smul.u32 4, %s421
      %p423 = scmp.lt.s32.totalorder %s22, 1
      %s424 = scalar_select %p423, %s22, 1
      %p425 = scmp.lt.s32.totalorder %s422, 31
      %s426 = scalar_select %p425, %s422, 31
      %s427 = smul.addr %s424, 32
      %s428 = sadd.s32 %s426, %s427
      %s429 = smul.addr %s428, 4
      %s430 = scalar_lea.vmem %s2, %s429
      %s431 = sadd.s32 %s23, 1
      %s432 = smul.u32 %s431, 4
      %p433 = scmp.lt.s32.totalorder %s432, 7
      %s434 = scalar_select %p433, %s432, 7
      %s435 = smul.u32 4, %s434
      %s436 = smul.u32 16, %s23
      %p437 = scmp.lt.s32.totalorder %s22, 1
      %s438 = scalar_select %p437, %s22, 1
      %p439 = scmp.lt.s32.totalorder %s436, 31
      %s440 = scalar_select %p439, %s436, 31
      %s441 = smul.addr %s438, 32
      %s442 = sadd.s32 %s440, %s441
      %s443 = smul.addr %s442, 4
      %s444 = scalar_lea.vmem %s7, %s443
      %s445 = smul.u32 16, %s23
      %v449 = vld [vmem:[%s398] sm:$0xf]
      %v450 = vld [vmem:[%s398 + $0x4] sm:$0xf]
      %v451 = vld [vmem:[%s398 + $0x8] sm:$0xf]
      %v452 = vld [vmem:[%s398 + $0xc] sm:$0xf]
      %v453 = vld [vmem:[%s398 + $0x10] sm:$0xf]
      %v454 = vld [vmem:[%s398 + $0x14] sm:$0xf]
      %v455 = vld [vmem:[%s398 + $0x18] sm:$0xf]
      %v456 = vld [vmem:[%s398 + $0x1c] sm:$0xf]
      %v457 = vld [vmem:[%s398 + $0x20] sm:$0xf]
      %v458 = vld [vmem:[%s398 + $0x24] sm:$0xf]
      %v459 = vld [vmem:[%s398 + $0x28] sm:$0xf]
      %v460 = vld [vmem:[%s398 + $0x2c] sm:$0xf]
      %v461 = vld [vmem:[%s398 + $0x30] sm:$0xf]
      %v462 = vld [vmem:[%s398 + $0x34] sm:$0xf]
      %v463 = vld [vmem:[%s398 + $0x38] sm:$0xf]
      %v464 = vld [vmem:[%s398 + $0x3c] sm:$0xf]
      %v481 = vunpack.c.l.b16 %v449
      %v482 = vunpack.c.l.b16 %v450
      %v483 = vunpack.c.l.b16 %v451
      %v484 = vunpack.c.l.b16 %v452
      %v485 = vunpack.c.l.b16 %v453
      %v486 = vunpack.c.l.b16 %v454
      %v487 = vunpack.c.l.b16 %v455
      %v488 = vunpack.c.l.b16 %v456
      %v489 = vunpack.c.l.b16 %v457
      %v490 = vunpack.c.l.b16 %v458
      %v491 = vunpack.c.l.b16 %v459
      %v492 = vunpack.c.l.b16 %v460
      %v493 = vunpack.c.l.b16 %v461
      %v494 = vunpack.c.l.b16 %v462
      %v495 = vunpack.c.l.b16 %v463
      %v496 = vunpack.c.l.b16 %v464
      %v497 = vpack.c.b16 %v482, %v481
      %v498 = vpack.c.b16 %v484, %v483
      %v499 = vpack.c.b16 %v486, %v485
      %v500 = vpack.c.b16 %v488, %v487
      %v501 = vpack.c.b16 %v490, %v489
      %v502 = vpack.c.b16 %v492, %v491
      %v503 = vpack.c.b16 %v494, %v493
      %v504 = vpack.c.b16 %v496, %v495
      %513 = vst [vmem:[#allocation2 + $0x18] sm:$0xff] %v497
      %514 = vst [vmem:[#allocation2 + $0x20] sm:$0xff] %v498
      %515 = vst [vmem:[#allocation2 + $0x28] sm:$0xff] %v499
      %516 = vst [vmem:[#allocation2 + $0x30] sm:$0xff] %v500
      %517 = vst [vmem:[#allocation2 + $0x38] sm:$0xff] %v501
      %518 = vst [vmem:[#allocation2 + $0x40] sm:$0xff] %v502
      %519 = vst [vmem:[#allocation2 + $0x48] sm:$0xff] %v503
      %520 = vst [vmem:[#allocation2 + $0x50] sm:$0xff] %v504
      %v521 = vld [vmem:[%s412] sm:$0xf]
      %v522 = vld [vmem:[%s412 + $0x4] sm:$0xf]
      %v523 = vld [vmem:[%s412 + $0x8] sm:$0xf]
      %v524 = vld [vmem:[%s412 + $0xc] sm:$0xf]
      %v529 = vunpack.c.l.b16 %v521
      %v530 = vunpack.c.l.b16 %v522
      %v531 = vunpack.c.l.b16 %v523
      %v532 = vunpack.c.l.b16 %v524
      %v533 = vpack.c.b16 %v530, %v529
      %v534 = vpack.c.b16 %v532, %v531
      %537 = vst [vmem:[#allocation2 + $0x8] sm:$0xff] %v533
      %538 = vst [vmem:[#allocation2 + $0x10] sm:$0xff] %v534
      %v539 = vld [vmem:[%s430] sm:$0xf]
      %v540 = vld [vmem:[%s430 + $0x4] sm:$0xf]
      %v541 = vld [vmem:[%s430 + $0x8] sm:$0xf]
      %v542 = vld [vmem:[%s430 + $0xc] sm:$0xf]
      %v547 = vunpack.c.l.b16 %v539
      %v548 = vunpack.c.l.b16 %v540
      %v549 = vunpack.c.l.b16 %v541
      %v550 = vunpack.c.l.b16 %v542
      %v551 = vpack.c.b16 %v548, %v547
      %v552 = vpack.c.b16 %v550, %v549
      %555 = vst [vmem:[#allocation2 + $0x58] sm:$0xff] %v551
      %556 = vst [vmem:[#allocation2 + $0x60] sm:$0xff] %v552
      %p557 = scmp.eq.s32.totalorder %s23, 0
      // Predicated region
      $region49: #{basic_block_forward.1} parent=47 // pred_check
        %p558 = pneg %p557
      $region50: #{basic_block_forward.1} parent=47 // pred_check_branch
        %560 = sbr.rel (%p558) target = $region52
      $region51: #{basic_block_forward.1} parent=47 // pred_region
        %561 = vst [vmem:[#allocation2 + $0x8] sm:$0xff] 0
        %562 = vst [vmem:[#allocation2 + $0x10] sm:$0xff] 0
      $region52: #{basic_block_forward.1} parent=47 // pred_fallthru
        _
      %p563 = scmp.eq.s32.totalorder %s23, 1
      // Predicated region
      $region53: #{basic_block_forward.1} parent=47 // pred_check
        %p564 = pneg %p563
      $region54: #{basic_block_forward.1} parent=47 // pred_check_branch
        %566 = sbr.rel (%p564) target = $region56
      $region55: #{basic_block_forward.1} parent=47 // pred_region
        %567 = vst [vmem:[#allocation2 + $0x58] sm:$0xff] 0
        %568 = vst [vmem:[#allocation2 + $0x60] sm:$0xff] 0
      $region56: #{basic_block_forward.1} parent=47 // pred_fallthru
        _
      %v569 = vlaneseq
      %v570 = vshrl.u32 %v569, 7
      %v571 = vadd.s32 %v570, 8
      %v572 = vadd.s32 %v570, 16
      %v573 = vadd.s32 %v570, 24
      %v574 = vadd.s32 %v570, 32
      %v575 = vadd.s32 %v570, 40
      %v576 = vadd.s32 %v570, 48
      %v577 = vadd.s32 %v570, 56
      %v578 = vadd.s32 %v570, 64
      %v579 = vadd.s32 %v570, 72
      %v580 = vadd.s32 %v570, 80
      %v581 = vadd.s32 %v570, 88
      %v582 = vadd.s32 %v570, 96
      %v583 = vadd.s32 %v570, 104
      %v584 = vadd.s32 %v570, 112
      %v585 = vadd.s32 %v570, 120
      %v586 = vadd.s32 %v570, 128
      %v587 = vadd.s32 %v570, 136
      %v588 = vadd.s32 %v570, 144
      %v589 = vadd.s32 %v570, 152
      %v590 = vadd.s32 %v570, 160
      %v591 = vadd.s32 %v570, 168
      %v592 = vadd.s32 %v570, 176
      %v593 = vadd.s32 %v570, 184
      %vm594 = vcmp.lt.s32.totalorder %v570, 0
      %v595 = vsub.s32 0, %v570
      %v596 = vsel %vm594, %v595, %v570
      %v597 = vshrl.u32 %v596, 4
      %v598 = vand.u32 %v596, 15
      %v599 = vsub.s32 0, %v598
      %v600 = vsel %vm594, %v599, %v598
      %vm601 = vcmp.lt.s32.totalorder %v571, 0
      %v602 = vsub.s32 0, %v571
      %v603 = vsel %vm601, %v602, %v571
      %v604 = vshrl.u32 %v603, 4
      %v605 = vand.u32 %v603, 15
      %v606 = vsub.s32 0, %v605
      %v607 = vsel %vm601, %v606, %v605
      %vm608 = vcmp.lt.s32.totalorder %v572, 0
      %v609 = vsub.s32 0, %v572
      %v610 = vsel %vm608, %v609, %v572
      %v611 = vshrl.u32 %v610, 4
      %v612 = vand.u32 %v610, 15
      %v613 = vsub.s32 0, %v612
      %v614 = vsel %vm608, %v613, %v612
      %vm615 = vcmp.lt.s32.totalorder %v573, 0
      %v616 = vsub.s32 0, %v573
      %v617 = vsel %vm615, %v616, %v573
      %v618 = vshrl.u32 %v617, 4
      %v619 = vand.u32 %v617, 15
      %v620 = vsub.s32 0, %v619
      %v621 = vsel %vm615, %v620, %v619
      %vm622 = vcmp.lt.s32.totalorder %v574, 0
      %v623 = vsub.s32 0, %v574
      %v624 = vsel %vm622, %v623, %v574
      %v625 = vshrl.u32 %v624, 4
      %v626 = vand.u32 %v624, 15
      %v627 = vsub.s32 0, %v626
      %v628 = vsel %vm622, %v627, %v626
      %vm629 = vcmp.lt.s32.totalorder %v575, 0
      %v630 = vsub.s32 0, %v575
      %v631 = vsel %vm629, %v630, %v575
      %v632 = vshrl.u32 %v631, 4
      %v633 = vand.u32 %v631, 15
      %v634 = vsub.s32 0, %v633
      %v635 = vsel %vm629, %v634, %v633
      %vm636 = vcmp.lt.s32.totalorder %v576, 0
      %v637 = vsub.s32 0, %v576
      %v638 = vsel %vm636, %v637, %v576
      %v639 = vshrl.u32 %v638, 4
      %v640 = vand.u32 %v638, 15
      %v641 = vsub.s32 0, %v640
      %v642 = vsel %vm636, %v641, %v640
      %vm643 = vcmp.lt.s32.totalorder %v577, 0
      %v644 = vsub.s32 0, %v577
      %v645 = vsel %vm643, %v644, %v577
      %v646 = vshrl.u32 %v645, 4
      %v647 = vand.u32 %v645, 15
      %v648 = vsub.s32 0, %v647
      %v649 = vsel %vm643, %v648, %v647
      %vm650 = vcmp.lt.s32.totalorder %v578, 0
      %v651 = vsub.s32 0, %v578
      %v652 = vsel %vm650, %v651, %v578
      %v653 = vshrl.u32 %v652, 4
      %v654 = vand.u32 %v652, 15
      %v655 = vsub.s32 0, %v654
      %v656 = vsel %vm650, %v655, %v654
      %vm657 = vcmp.lt.s32.totalorder %v579, 0
      %v658 = vsub.s32 0, %v579
      %v659 = vsel %vm657, %v658, %v579
      %v660 = vshrl.u32 %v659, 4
      %v661 = vand.u32 %v659, 15
      %v662 = vsub.s32 0, %v661
      %v663 = vsel %vm657, %v662, %v661
      %vm664 = vcmp.lt.s32.totalorder %v580, 0
      %v665 = vsub.s32 0, %v580
      %v666 = vsel %vm664, %v665, %v580
      %v667 = vshrl.u32 %v666, 4
      %v668 = vand.u32 %v666, 15
      %v669 = vsub.s32 0, %v668
      %v670 = vsel %vm664, %v669, %v668
      %vm671 = vcmp.lt.s32.totalorder %v581, 0
      %v672 = vsub.s32 0, %v581
      %v673 = vsel %vm671, %v672, %v581
      %v674 = vshrl.u32 %v673, 4
      %v675 = vand.u32 %v673, 15
      %v676 = vsub.s32 0, %v675
      %v677 = vsel %vm671, %v676, %v675
      %vm678 = vcmp.lt.s32.totalorder %v582, 0
      %v679 = vsub.s32 0, %v582
      %v680 = vsel %vm678, %v679, %v582
      %v681 = vshrl.u32 %v680, 4
      %v682 = vand.u32 %v680, 15
      %v683 = vsub.s32 0, %v682
      %v684 = vsel %vm678, %v683, %v682
      %vm685 = vcmp.lt.s32.totalorder %v583, 0
      %v686 = vsub.s32 0, %v583
      %v687 = vsel %vm685, %v686, %v583
      %v688 = vshrl.u32 %v687, 4
      %v689 = vand.u32 %v687, 15
      %v690 = vsub.s32 0, %v689
      %v691 = vsel %vm685, %v690, %v689
      %vm692 = vcmp.lt.s32.totalorder %v584, 0
      %v693 = vsub.s32 0, %v584
      %v694 = vsel %vm692, %v693, %v584
      %v695 = vshrl.u32 %v694, 4
      %v696 = vand.u32 %v694, 15
      %v697 = vsub.s32 0, %v696
      %v698 = vsel %vm692, %v697, %v696
      %vm699 = vcmp.lt.s32.totalorder %v585, 0
      %v700 = vsub.s32 0, %v585
      %v701 = vsel %vm699, %v700, %v585
      %v702 = vshrl.u32 %v701, 4
      %v703 = vand.u32 %v701, 15
      %v704 = vsub.s32 0, %v703
      %v705 = vsel %vm699, %v704, %v703
      %vm706 = vcmp.lt.s32.totalorder %v586, 0
      %v707 = vsub.s32 0, %v586
      %v708 = vsel %vm706, %v707, %v586
      %v709 = vshrl.u32 %v708, 4
      %v710 = vand.u32 %v708, 15
      %v711 = vsub.s32 0, %v710
      %v712 = vsel %vm706, %v711, %v710
      %vm713 = vcmp.lt.s32.totalorder %v587, 0
      %v714 = vsub.s32 0, %v587
      %v715 = vsel %vm713, %v714, %v587
      %v716 = vshrl.u32 %v715, 4
      %v717 = vand.u32 %v715, 15
      %v718 = vsub.s32 0, %v717
      %v719 = vsel %vm713, %v718, %v717
      %vm720 = vcmp.lt.s32.totalorder %v588, 0
      %v721 = vsub.s32 0, %v588
      %v722 = vsel %vm720, %v721, %v588
      %v723 = vshrl.u32 %v722, 4
      %v724 = vand.u32 %v722, 15
      %v725 = vsub.s32 0, %v724
      %v726 = vsel %vm720, %v725, %v724
      %vm727 = vcmp.lt.s32.totalorder %v589, 0
      %v728 = vsub.s32 0, %v589
      %v729 = vsel %vm727, %v728, %v589
      %v730 = vshrl.u32 %v729, 4
      %v731 = vand.u32 %v729, 15
      %v732 = vsub.s32 0, %v731
      %v733 = vsel %vm727, %v732, %v731
      %vm734 = vcmp.lt.s32.totalorder %v590, 0
      %v735 = vsub.s32 0, %v590
      %v736 = vsel %vm734, %v735, %v590
      %v737 = vshrl.u32 %v736, 4
      %v738 = vand.u32 %v736, 15
      %v739 = vsub.s32 0, %v738
      %v740 = vsel %vm734, %v739, %v738
      %vm741 = vcmp.lt.s32.totalorder %v591, 0
      %v742 = vsub.s32 0, %v591
      %v743 = vsel %vm741, %v742, %v591
      %v744 = vshrl.u32 %v743, 4
      %v745 = vand.u32 %v743, 15
      %v746 = vsub.s32 0, %v745
      %v747 = vsel %vm741, %v746, %v745
      %vm748 = vcmp.lt.s32.totalorder %v592, 0
      %v749 = vsub.s32 0, %v592
      %v750 = vsel %vm748, %v749, %v592
      %v751 = vshrl.u32 %v750, 4
      %v752 = vand.u32 %v750, 15
      %v753 = vsub.s32 0, %v752
      %v754 = vsel %vm748, %v753, %v752
      %vm755 = vcmp.lt.s32.totalorder %v593, 0
      %v756 = vsub.s32 0, %v593
      %v757 = vsel %vm755, %v756, %v593
      %v758 = vshrl.u32 %v757, 4
      %v759 = vand.u32 %v757, 15
      %v760 = vsub.s32 0, %v759
      %v761 = vsel %vm755, %v760, %v759
      %vm762 = vcmp.ne.s32.totalorder %v600, 0
      %vm763 = vcmp.ne.s32.totalorder %v607, 0
      %vm764 = vcmp.ne.s32.totalorder %v614, 0
      %vm765 = vcmp.ne.s32.totalorder %v621, 0
      %vm766 = vcmp.ne.s32.totalorder %v628, 0
      %vm767 = vcmp.ne.s32.totalorder %v635, 0
      %vm768 = vcmp.ne.s32.totalorder %v642, 0
      %vm769 = vcmp.ne.s32.totalorder %v649, 0
      %vm770 = vcmp.ne.s32.totalorder %v656, 0
      %vm771 = vcmp.ne.s32.totalorder %v663, 0
      %vm772 = vcmp.ne.s32.totalorder %v670, 0
      %vm773 = vcmp.ne.s32.totalorder %v677, 0
      %vm774 = vcmp.ne.s32.totalorder %v684, 0
      %vm775 = vcmp.ne.s32.totalorder %v691, 0
      %vm776 = vcmp.ne.s32.totalorder %v698, 0
      %vm777 = vcmp.ne.s32.totalorder %v705, 0
      %vm778 = vcmp.ne.s32.totalorder %v712, 0
      %vm779 = vcmp.ne.s32.totalorder %v719, 0
      %vm780 = vcmp.ne.s32.totalorder %v726, 0
      %vm781 = vcmp.ne.s32.totalorder %v733, 0
      %vm782 = vcmp.ne.s32.totalorder %v740, 0
      %vm783 = vcmp.ne.s32.totalorder %v747, 0
      %vm784 = vcmp.ne.s32.totalorder %v754, 0
      %vm785 = vcmp.ne.s32.totalorder %v761, 0
      %vm786 = vcmp.lt.s32.totalorder %v600, 0
      %vm787 = vcmp.lt.s32.totalorder %v607, 0
      %vm788 = vcmp.lt.s32.totalorder %v614, 0
      %vm789 = vcmp.lt.s32.totalorder %v621, 0
      %vm790 = vcmp.lt.s32.totalorder %v628, 0
      %vm791 = vcmp.lt.s32.totalorder %v635, 0
      %vm792 = vcmp.lt.s32.totalorder %v642, 0
      %vm793 = vcmp.lt.s32.totalorder %v649, 0
      %vm794 = vcmp.lt.s32.totalorder %v656, 0
      %vm795 = vcmp.lt.s32.totalorder %v663, 0
      %vm796 = vcmp.lt.s32.totalorder %v670, 0
      %vm797 = vcmp.lt.s32.totalorder %v677, 0
      %vm798 = vcmp.lt.s32.totalorder %v684, 0
      %vm799 = vcmp.lt.s32.totalorder %v691, 0
      %vm800 = vcmp.lt.s32.totalorder %v698, 0
      %vm801 = vcmp.lt.s32.totalorder %v705, 0
      %vm802 = vcmp.lt.s32.totalorder %v712, 0
      %vm803 = vcmp.lt.s32.totalorder %v719, 0
      %vm804 = vcmp.lt.s32.totalorder %v726, 0
      %vm805 = vcmp.lt.s32.totalorder %v733, 0
      %vm806 = vcmp.lt.s32.totalorder %v740, 0
      %vm807 = vcmp.lt.s32.totalorder %v747, 0
      %vm808 = vcmp.lt.s32.totalorder %v754, 0
      %vm809 = vcmp.lt.s32.totalorder %v761, 0
      %vm810 = vmand %vm786, %vm762
      %vm811 = vmand %vm787, %vm763
      %vm812 = vmand %vm788, %vm764
      %vm813 = vmand %vm789, %vm765
      %vm814 = vmand %vm790, %vm766
      %vm815 = vmand %vm791, %vm767
      %vm816 = vmand %vm792, %vm768
      %vm817 = vmand %vm793, %vm769
      %vm818 = vmand %vm794, %vm770
      %vm819 = vmand %vm795, %vm771
      %vm820 = vmand %vm796, %vm772
      %vm821 = vmand %vm797, %vm773
      %vm822 = vmand %vm798, %vm774
      %vm823 = vmand %vm799, %vm775
      %vm824 = vmand %vm800, %vm776
      %vm825 = vmand %vm801, %vm777
      %vm826 = vmand %vm802, %vm778
      %vm827 = vmand %vm803, %vm779
      %vm828 = vmand %vm804, %vm780
      %vm829 = vmand %vm805, %vm781
      %vm830 = vmand %vm806, %vm782
      %vm831 = vmand %vm807, %vm783
      %vm832 = vmand %vm808, %vm784
      %vm833 = vmand %vm809, %vm785
      %v834 = vadd.s32 %v600, 16
      %v835 = vadd.s32 %v607, 16
      %v836 = vadd.s32 %v614, 16
      %v837 = vadd.s32 %v621, 16
      %v838 = vadd.s32 %v628, 16
      %v839 = vadd.s32 %v635, 16
      %v840 = vadd.s32 %v642, 16
      %v841 = vadd.s32 %v649, 16
      %v842 = vadd.s32 %v656, 16
      %v843 = vadd.s32 %v663, 16
      %v844 = vadd.s32 %v670, 16
      %v845 = vadd.s32 %v677, 16
      %v846 = vadd.s32 %v684, 16
      %v847 = vadd.s32 %v691, 16
      %v848 = vadd.s32 %v698, 16
      %v849 = vadd.s32 %v705, 16
      %v850 = vadd.s32 %v712, 16
      %v851 = vadd.s32 %v719, 16
      %v852 = vadd.s32 %v726, 16
      %v853 = vadd.s32 %v733, 16
      %v854 = vadd.s32 %v740, 16
      %v855 = vadd.s32 %v747, 16
      %v856 = vadd.s32 %v754, 16
      %v857 = vadd.s32 %v761, 16
      %v858 = vsel %vm810, %v834, %v600
      %v859 = vsel %vm811, %v835, %v607
      %v860 = vsel %vm812, %v836, %v614
      %v861 = vsel %vm813, %v837, %v621
      %v862 = vsel %vm814, %v838, %v628
      %v863 = vsel %vm815, %v839, %v635
      %v864 = vsel %vm816, %v840, %v642
      %v865 = vsel %vm817, %v841, %v649
      %v866 = vsel %vm818, %v842, %v656
      %v867 = vsel %vm819, %v843, %v663
      %v868 = vsel %vm820, %v844, %v670
      %v869 = vsel %vm821, %v845, %v677
      %v870 = vsel %vm822, %v846, %v684
      %v871 = vsel %vm823, %v847, %v691
      %v872 = vsel %vm824, %v848, %v698
      %v873 = vsel %vm825, %v849, %v705
      %v874 = vsel %vm826, %v850, %v712
      %v875 = vsel %vm827, %v851, %v719
      %v876 = vsel %vm828, %v852, %v726
      %v877 = vsel %vm829, %v853, %v733
      %v878 = vsel %vm830, %v854, %v740
      %v879 = vsel %vm831, %v855, %v747
      %v880 = vsel %vm832, %v856, %v754
      %v881 = vsel %vm833, %v857, %v761
      %v882 = vld [vmem:[#allocation2] sm:$0x80]
      %v883 = vld [vmem:[#allocation2 + $0x8] sm:$0xff]
      %v884 = vld [vmem:[#allocation2 + $0x10] sm:$0xff]
      %v885 = vld [vmem:[#allocation2 + $0x18] sm:$0xff]
      %v886 = vld [vmem:[#allocation2 + $0x20] sm:$0xff]
      %v887 = vld [vmem:[#allocation2 + $0x28] sm:$0xff]
      %v888 = vld [vmem:[#allocation2 + $0x30] sm:$0xff]
      %v889 = vld [vmem:[#allocation2 + $0x38] sm:$0xff]
      %v890 = vld [vmem:[#allocation2 + $0x40] sm:$0xff]
      %v891 = vld [vmem:[#allocation2 + $0x48] sm:$0xff]
      %v892 = vld [vmem:[#allocation2 + $0x50] sm:$0xff]
      %v893 = vld [vmem:[#allocation2 + $0x58] sm:$0xff]
      %v894 = vld [vmem:[#allocation2 + $0x60] sm:$0xff]
      %vm895 = vcmp.ge.s32.totalorder %v858, 1
      %vm896 = vcmp.ge.s32.totalorder %v859, 1
      %vm897 = vcmp.ge.s32.totalorder %v860, 1
      %vm898 = vcmp.ge.s32.totalorder %v861, 1
      %vm899 = vcmp.ge.s32.totalorder %v862, 1
      %vm900 = vcmp.ge.s32.totalorder %v863, 1
      %vm901 = vcmp.ge.s32.totalorder %v864, 1
      %vm902 = vcmp.ge.s32.totalorder %v865, 1
      %vm903 = vcmp.ge.s32.totalorder %v866, 1
      %vm904 = vcmp.ge.s32.totalorder %v867, 1
      %vm905 = vcmp.ge.s32.totalorder %v868, 1
      %vm906 = vcmp.ge.s32.totalorder %v869, 1
      %vm907 = vcmp.ge.s32.totalorder %v870, 1
      %vm908 = vcmp.ge.s32.totalorder %v871, 1
      %vm909 = vcmp.ge.s32.totalorder %v872, 1
      %vm910 = vcmp.ge.s32.totalorder %v873, 1
      %vm911 = vcmp.ge.s32.totalorder %v874, 1
      %vm912 = vcmp.ge.s32.totalorder %v875, 1
      %vm913 = vcmp.ge.s32.totalorder %v876, 1
      %vm914 = vcmp.ge.s32.totalorder %v877, 1
      %vm915 = vcmp.ge.s32.totalorder %v878, 1
      %vm916 = vcmp.ge.s32.totalorder %v879, 1
      %vm917 = vcmp.ge.s32.totalorder %v880, 1
      %vm918 = vcmp.ge.s32.totalorder %v881, 1
      %v919 = vsel %vm895, 1, 0
      %v920 = vsel %vm896, 1, 0
      %v921 = vsel %vm897, 1, 0
      %v922 = vsel %vm898, 1, 0
      %v923 = vsel %vm899, 1, 0
      %v924 = vsel %vm900, 1, 0
      %v925 = vsel %vm901, 1, 0
      %v926 = vsel %vm902, 1, 0
      %v927 = vsel %vm903, 1, 0
      %v928 = vsel %vm904, 1, 0
      %v929 = vsel %vm905, 1, 0
      %v930 = vsel %vm906, 1, 0
      %v931 = vsel %vm907, 1, 0
      %v932 = vsel %vm908, 1, 0
      %v933 = vsel %vm909, 1, 0
      %v934 = vsel %vm910, 1, 0
      %v935 = vsel %vm911, 1, 0
      %v936 = vsel %vm912, 1, 0
      %v937 = vsel %vm913, 1, 0
      %v938 = vsel %vm914, 1, 0
      %v939 = vsel %vm915, 1, 0
      %v940 = vsel %vm916, 1, 0
      %v941 = vsel %vm917, 1, 0
      %v942 = vsel %vm918, 1, 0
      %vm943 = vcmp.eq.s32.totalorder %v919, 1
      %vm944 = vcmp.eq.s32.totalorder %v920, 1
      %vm945 = vcmp.eq.s32.totalorder %v921, 1
      %vm946 = vcmp.eq.s32.totalorder %v922, 1
      %vm947 = vcmp.eq.s32.totalorder %v923, 1
      %vm948 = vcmp.eq.s32.totalorder %v924, 1
      %vm949 = vcmp.eq.s32.totalorder %v925, 1
      %vm950 = vcmp.eq.s32.totalorder %v926, 1
      %vm951 = vcmp.eq.s32.totalorder %v927, 1
      %vm952 = vcmp.eq.s32.totalorder %v928, 1
      %vm953 = vcmp.eq.s32.totalorder %v929, 1
      %vm954 = vcmp.eq.s32.totalorder %v930, 1
      %vm955 = vcmp.eq.s32.totalorder %v931, 1
      %vm956 = vcmp.eq.s32.totalorder %v932, 1
      %vm957 = vcmp.eq.s32.totalorder %v933, 1
      %vm958 = vcmp.eq.s32.totalorder %v934, 1
      %vm959 = vcmp.eq.s32.totalorder %v935, 1
      %vm960 = vcmp.eq.s32.totalorder %v936, 1
      %vm961 = vcmp.eq.s32.totalorder %v937, 1
      %vm962 = vcmp.eq.s32.totalorder %v938, 1
      %vm963 = vcmp.eq.s32.totalorder %v939, 1
      %vm964 = vcmp.eq.s32.totalorder %v940, 1
      %vm965 = vcmp.eq.s32.totalorder %v941, 1
      %vm966 = vcmp.eq.s32.totalorder %v942, 1
      %vm967 = vmpackc.low %vm943, %vm943
      %vm968 = vmpackc.low %vm944, %vm944
      %vm969 = vmpackc.low %vm945, %vm945
      %vm970 = vmpackc.low %vm946, %vm946
      %vm971 = vmpackc.low %vm947, %vm947
      %vm972 = vmpackc.low %vm948, %vm948
      %vm973 = vmpackc.low %vm949, %vm949
      %vm974 = vmpackc.low %vm950, %vm950
      %vm975 = vmpackc.low %vm951, %vm951
      %vm976 = vmpackc.low %vm952, %vm952
      %vm977 = vmpackc.low %vm953, %vm953
      %vm978 = vmpackc.low %vm954, %vm954
      %vm979 = vmpackc.low %vm955, %vm955
      %vm980 = vmpackc.low %vm956, %vm956
      %vm981 = vmpackc.low %vm957, %vm957
      %vm982 = vmpackc.low %vm958, %vm958
      %vm983 = vmpackc.low %vm959, %vm959
      %vm984 = vmpackc.low %vm960, %vm960
      %vm985 = vmpackc.low %vm961, %vm961
      %vm986 = vmpackc.low %vm962, %vm962
      %vm987 = vmpackc.low %vm963, %vm963
      %vm988 = vmpackc.low %vm964, %vm964
      %vm989 = vmpackc.low %vm965, %vm965
      %vm990 = vmpackc.low %vm966, %vm966
      %v991 = vsel %vm967, 65537, 0
      %v992 = vsel %vm968, 65537, 0
      %v993 = vsel %vm969, 65537, 0
      %v994 = vsel %vm970, 65537, 0
      %v995 = vsel %vm971, 65537, 0
      %v996 = vsel %vm972, 65537, 0
      %v997 = vsel %vm973, 65537, 0
      %v998 = vsel %vm974, 65537, 0
      %v999 = vsel %vm975, 65537, 0
      %v1000 = vsel %vm976, 65537, 0
      %v1001 = vsel %vm977, 65537, 0
      %v1002 = vsel %vm978, 65537, 0
      %v1003 = vsel %vm979, 65537, 0
      %v1004 = vsel %vm980, 65537, 0
      %v1005 = vsel %vm981, 65537, 0
      %v1006 = vsel %vm982, 65537, 0
      %v1007 = vsel %vm983, 65537, 0
      %v1008 = vsel %vm984, 65537, 0
      %v1009 = vsel %vm985, 65537, 0
      %v1010 = vsel %vm986, 65537, 0
      %v1011 = vsel %vm987, 65537, 0
      %v1012 = vsel %vm988, 65537, 0
      %v1013 = vsel %vm989, 65537, 0
      %v1014 = vsel %vm990, 65537, 0
      %v1015 = vunpack.c.l.b16 %v991
      %v1016 = vunpack.c.l.b16 %v992
      %v1017 = vunpack.c.l.b16 %v993
      %v1018 = vunpack.c.l.b16 %v994
      %v1019 = vunpack.c.l.b16 %v995
      %v1020 = vunpack.c.l.b16 %v996
      %v1021 = vunpack.c.l.b16 %v997
      %v1022 = vunpack.c.l.b16 %v998
      %v1023 = vunpack.c.l.b16 %v999
      %v1024 = vunpack.c.l.b16 %v1000
      %v1025 = vunpack.c.l.b16 %v1001
      %v1026 = vunpack.c.l.b16 %v1002
      %v1027 = vunpack.c.l.b16 %v1003
      %v1028 = vunpack.c.l.b16 %v1004
      %v1029 = vunpack.c.l.b16 %v1005
      %v1030 = vunpack.c.l.b16 %v1006
      %v1031 = vunpack.c.l.b16 %v1007
      %v1032 = vunpack.c.l.b16 %v1008
      %v1033 = vunpack.c.l.b16 %v1009
      %v1034 = vunpack.c.l.b16 %v1010
      %v1035 = vunpack.c.l.b16 %v1011
      %v1036 = vunpack.c.l.b16 %v1012
      %v1037 = vunpack.c.l.b16 %v1013
      %v1038 = vunpack.c.l.b16 %v1014
      %v1039 = vpack.c.b16 %v1016, %v1015
      %v1040 = vpack.c.b16 %v1018, %v1017
      %v1041 = vpack.c.b16 %v1020, %v1019
      %v1042 = vpack.c.b16 %v1022, %v1021
      %v1043 = vpack.c.b16 %v1024, %v1023
      %v1044 = vpack.c.b16 %v1026, %v1025
      %v1045 = vpack.c.b16 %v1028, %v1027
      %v1046 = vpack.c.b16 %v1030, %v1029
      %v1047 = vpack.c.b16 %v1032, %v1031
      %v1048 = vpack.c.b16 %v1034, %v1033
      %v1049 = vpack.c.b16 %v1036, %v1035
      %v1050 = vpack.c.b16 %v1038, %v1037
      %vm1051 = vsmask.f32 7424
      %v1053 = vshll.u32 %v1039, 16
      %v1055 = vrot.slane %v1053, 1
      %v1056 = vshrl.u32 %v1039, 16
      %v1058 = vor.u32 %v1056, %v1055
      %v1060 = vshll.u32 %v1040, 16
      %v1062 = vrot.slane %v1060, 1
      %v1063 = vsel %vm1051, %v1058, %v1062
      %v1064 = vshrl.u32 %v1040, 16
      %v1066 = vor.u32 %v1064, %v1062
      %v1068 = vshll.u32 %v1041, 16
      %v1070 = vrot.slane %v1068, 1
      %v1071 = vsel %vm1051, %v1066, %v1070
      %v1072 = vshrl.u32 %v1041, 16
      %v1074 = vor.u32 %v1072, %v1070
      %v1076 = vshll.u32 %v1042, 16
      %v1078 = vrot.slane %v1076, 1
      %v1079 = vsel %vm1051, %v1074, %v1078
      %v1080 = vshrl.u32 %v1042, 16
      %v1082 = vor.u32 %v1080, %v1078
      %v1084 = vshll.u32 %v1043, 16
      %v1086 = vrot.slane %v1084, 1
      %v1087 = vsel %vm1051, %v1082, %v1086
      %v1088 = vshrl.u32 %v1043, 16
      %v1090 = vor.u32 %v1088, %v1086
      %v1092 = vshll.u32 %v1044, 16
      %v1094 = vrot.slane %v1092, 1
      %v1095 = vsel %vm1051, %v1090, %v1094
      %v1096 = vshrl.u32 %v1044, 16
      %v1098 = vor.u32 %v1096, %v1094
      %v1100 = vshll.u32 %v1045, 16
      %v1102 = vrot.slane %v1100, 1
      %v1103 = vsel %vm1051, %v1098, %v1102
      %v1104 = vshrl.u32 %v1045, 16
      %v1106 = vor.u32 %v1104, %v1102
      %v1108 = vshll.u32 %v1046, 16
      %v1110 = vrot.slane %v1108, 1
      %v1111 = vsel %vm1051, %v1106, %v1110
      %v1112 = vshrl.u32 %v1046, 16
      %v1114 = vor.u32 %v1112, %v1110
      %v1116 = vshll.u32 %v1047, 16
      %v1118 = vrot.slane %v1116, 1
      %v1119 = vsel %vm1051, %v1114, %v1118
      %v1120 = vshrl.u32 %v1047, 16
      %v1122 = vor.u32 %v1120, %v1118
      %v1124 = vshll.u32 %v1048, 16
      %v1126 = vrot.slane %v1124, 1
      %v1127 = vsel %vm1051, %v1122, %v1126
      %v1128 = vshrl.u32 %v1048, 16
      %v1130 = vor.u32 %v1128, %v1126
      %v1132 = vshll.u32 %v1049, 16
      %v1134 = vrot.slane %v1132, 1
      %v1135 = vsel %vm1051, %v1130, %v1134
      %v1136 = vshrl.u32 %v1049, 16
      %v1138 = vor.u32 %v1136, %v1134
      %v1140 = vshll.u32 %v1050, 16
      %v1142 = vrot.slane %v1140, 1
      %v1143 = vsel %vm1051, %v1138, %v1142
      %v1144 = vshrl.u32 %v1050, 16
      %v1146 = vor.u32 %v1144, %v1142
      %vm1147 = vcmp.ne.s16.totalorder %v1055, 0
      %vm1148 = vcmp.ne.s16.totalorder %v1063, 0
      %vm1149 = vcmp.ne.s16.totalorder %v1071, 0
      %vm1150 = vcmp.ne.s16.totalorder %v1079, 0
      %vm1151 = vcmp.ne.s16.totalorder %v1087, 0
      %vm1152 = vcmp.ne.s16.totalorder %v1095, 0
      %vm1153 = vcmp.ne.s16.totalorder %v1103, 0
      %vm1154 = vcmp.ne.s16.totalorder %v1111, 0
      %vm1155 = vcmp.ne.s16.totalorder %v1119, 0
      %vm1156 = vcmp.ne.s16.totalorder %v1127, 0
      %vm1157 = vcmp.ne.s16.totalorder %v1135, 0
      %vm1158 = vcmp.ne.s16.totalorder %v1143, 0
      %vm1159 = vcmp.ne.s16.totalorder %v1146, 0
      %v1160 = vsel %vm1147, %v882, 0
      %v1161 = vsel %vm1148, %v883, 0
      %v1162 = vsel %vm1149, %v884, 0
      %v1163 = vsel %vm1150, %v885, 0
      %v1164 = vsel %vm1151, %v886, 0
      %v1165 = vsel %vm1152, %v887, 0
      %v1166 = vsel %vm1153, %v888, 0
      %v1167 = vsel %vm1154, %v889, 0
      %v1168 = vsel %vm1155, %v890, 0
      %v1169 = vsel %vm1156, %v891, 0
      %v1170 = vsel %vm1157, %v892, 0
      %v1171 = vsel %vm1158, %v893, 0
      %v1172 = vsel %vm1159, %v894, 0
      %v1173 = vld [vmem:[%s3] sm:$0xf]
      %v1174 = vld [vmem:[%s3 + $0x4] sm:$0xf]
      %v1175 = vld [vmem:[%s3 + $0x8] sm:$0xf]
      %v1176 = vld [vmem:[%s3 + $0xc] sm:$0xf]
      %v1177 = vld [vmem:[%s3 + $0x10] sm:$0xf]
      %v1178 = vld [vmem:[%s3 + $0x14] sm:$0xf]
      %v1179 = vld [vmem:[%s3 + $0x18] sm:$0xf]
      %v1180 = vld [vmem:[%s3 + $0x1c] sm:$0xf]
      %v1181 = vld [vmem:[%s3 + $0x20] sm:$0xf]
      %v1182 = vld [vmem:[%s3 + $0x24] sm:$0xf]
      %v1183 = vld [vmem:[%s3 + $0x28] sm:$0xf]
      %v1184 = vld [vmem:[%s3 + $0x2c] sm:$0xf]
      %v1185 = vld [vmem:[%s3 + $0x30] sm:$0xf]
      %v1186 = vld [vmem:[%s3 + $0x34] sm:$0xf]
      %v1187 = vld [vmem:[%s3 + $0x38] sm:$0xf]
      %v1188 = vld [vmem:[%s3 + $0x3c] sm:$0xf]
      %v1189 = vld [vmem:[%s3 + $0x40] sm:$0xf]
      %v1190 = vld [vmem:[%s3 + $0x44] sm:$0xf]
      %v1191 = vld [vmem:[%s3 + $0x48] sm:$0xf]
      %v1192 = vld [vmem:[%s3 + $0x4c] sm:$0xf]
      %v1193 = vld [vmem:[%s3 + $0x50] sm:$0xf]
      %v1194 = vld [vmem:[%s3 + $0x54] sm:$0xf]
      %v1195 = vld [vmem:[%s3 + $0x58] sm:$0xf]
      %v1196 = vld [vmem:[%s3 + $0x5c] sm:$0xf]
      %v1197 = vld [vmem:[%s3 + $0x60] sm:$0xf]
      %v1198 = vld [vmem:[%s3 + $0x64] sm:$0xf]
      %v1199 = vld [vmem:[%s3 + $0x68] sm:$0xf]
      %v1200 = vld [vmem:[%s3 + $0x6c] sm:$0xf]
      %v1201 = vld [vmem:[%s3 + $0x70] sm:$0xf]
      %v1202 = vld [vmem:[%s3 + $0x74] sm:$0xf]
      %v1203 = vld [vmem:[%s3 + $0x78] sm:$0xf]
      %v1204 = vld [vmem:[%s3 + $0x7c] sm:$0xf]
      %v1205 = vld [vmem:[%s3 + $0x80] sm:$0xf]
      %v1206 = vld [vmem:[%s3 + $0x84] sm:$0xf]
      %v1207 = vld [vmem:[%s3 + $0x88] sm:$0xf]
      %v1208 = vld [vmem:[%s3 + $0x8c] sm:$0xf]
      %v1209 = vld [vmem:[%s3 + $0x90] sm:$0xf]
      %v1210 = vld [vmem:[%s3 + $0x94] sm:$0xf]
      %v1211 = vld [vmem:[%s3 + $0x98] sm:$0xf]
      %v1212 = vld [vmem:[%s3 + $0x9c] sm:$0xf]
      %v1213 = vld [vmem:[%s3 + $0xa0] sm:$0xf]
      %v1214 = vld [vmem:[%s3 + $0xa4] sm:$0xf]
      %v1215 = vld [vmem:[%s3 + $0xa8] sm:$0xf]
      %v1216 = vld [vmem:[%s3 + $0xac] sm:$0xf]
      %v1217 = vld [vmem:[%s3 + $0xb0] sm:$0xf]
      %v1218 = vld [vmem:[%s3 + $0xb4] sm:$0xf]
      %v1219 = vld [vmem:[%s3 + $0xb8] sm:$0xf]
      %v1220 = vld [vmem:[%s3 + $0xbc] sm:$0xf]
      %s1221 = scalar_lea.vmem %s3, 192
      %v1222 = vld [vmem:[%s1221] sm:$0xf]
      %v1223 = vld [vmem:[%s1221 + $0x4] sm:$0xf]
      %v1224 = vld [vmem:[%s1221 + $0x8] sm:$0xf]
      %v1225 = vld [vmem:[%s1221 + $0xc] sm:$0xf]
      %v1226 = vld [vmem:[%s1221 + $0x10] sm:$0xf]
      %v1227 = vld [vmem:[%s1221 + $0x14] sm:$0xf]
      %v1228 = vld [vmem:[%s1221 + $0x18] sm:$0xf]
      %v1229 = vld [vmem:[%s1221 + $0x1c] sm:$0xf]
      %v1230 = vld [vmem:[%s1221 + $0x20] sm:$0xf]
      %v1231 = vld [vmem:[%s1221 + $0x24] sm:$0xf]
      %v1232 = vld [vmem:[%s1221 + $0x28] sm:$0xf]
      %v1233 = vld [vmem:[%s1221 + $0x2c] sm:$0xf]
      %v1234 = vld [vmem:[%s1221 + $0x30] sm:$0xf]
      %v1235 = vld [vmem:[%s1221 + $0x34] sm:$0xf]
      %v1236 = vld [vmem:[%s1221 + $0x38] sm:$0xf]
      %v1237 = vld [vmem:[%s1221 + $0x3c] sm:$0xf]
      %v1238 = vld [vmem:[%s1221 + $0x40] sm:$0xf]
      %v1239 = vld [vmem:[%s1221 + $0x44] sm:$0xf]
      %v1240 = vld [vmem:[%s1221 + $0x48] sm:$0xf]
      %v1241 = vld [vmem:[%s1221 + $0x4c] sm:$0xf]
      %v1242 = vld [vmem:[%s1221 + $0x50] sm:$0xf]
      %v1243 = vld [vmem:[%s1221 + $0x54] sm:$0xf]
      %v1244 = vld [vmem:[%s1221 + $0x58] sm:$0xf]
      %v1245 = vld [vmem:[%s1221 + $0x5c] sm:$0xf]
      %v1246 = vld [vmem:[%s1221 + $0x60] sm:$0xf]
      %v1247 = vld [vmem:[%s1221 + $0x64] sm:$0xf]
      %v1248 = vld [vmem:[%s1221 + $0x68] sm:$0xf]
      %v1249 = vld [vmem:[%s1221 + $0x6c] sm:$0xf]
      %v1250 = vld [vmem:[%s1221 + $0x70] sm:$0xf]
      %v1251 = vld [vmem:[%s1221 + $0x74] sm:$0xf]
      %v1252 = vld [vmem:[%s1221 + $0x78] sm:$0xf]
      %v1253 = vld [vmem:[%s1221 + $0x7c] sm:$0xf]
      %v1254 = vld [vmem:[%s1221 + $0x80] sm:$0xf]
      %v1255 = vld [vmem:[%s1221 + $0x84] sm:$0xf]
      %v1256 = vld [vmem:[%s1221 + $0x88] sm:$0xf]
      %v1257 = vld [vmem:[%s1221 + $0x8c] sm:$0xf]
      %v1258 = vld [vmem:[%s1221 + $0x90] sm:$0xf]
      %v1259 = vld [vmem:[%s1221 + $0x94] sm:$0xf]
      %v1260 = vld [vmem:[%s1221 + $0x98] sm:$0xf]
      %v1261 = vld [vmem:[%s1221 + $0x9c] sm:$0xf]
      %v1262 = vld [vmem:[%s1221 + $0xa0] sm:$0xf]
      %v1263 = vld [vmem:[%s1221 + $0xa4] sm:$0xf]
      %v1264 = vld [vmem:[%s1221 + $0xa8] sm:$0xf]
      %v1265 = vld [vmem:[%s1221 + $0xac] sm:$0xf]
      %v1266 = vld [vmem:[%s1221 + $0xb0] sm:$0xf]
      %v1267 = vld [vmem:[%s1221 + $0xb4] sm:$0xf]
      %v1268 = vld [vmem:[%s1221 + $0xb8] sm:$0xf]
      %v1269 = vld [vmem:[%s1221 + $0xbc] sm:$0xf]
      %v1318 = vunpack.c.l.b16 %v1222
      %v1319 = vunpack.c.l.b16 %v1223
      %v1320 = vunpack.c.l.b16 %v1224
      %v1321 = vunpack.c.l.b16 %v1225
      %v1322 = vunpack.c.l.b16 %v1226
      %v1323 = vunpack.c.l.b16 %v1227
      %v1324 = vunpack.c.l.b16 %v1228
      %v1325 = vunpack.c.l.b16 %v1229
      %v1326 = vunpack.c.l.b16 %v1230
      %v1327 = vunpack.c.l.b16 %v1231
      %v1328 = vunpack.c.l.b16 %v1232
      %v1329 = vunpack.c.l.b16 %v1233
      %v1330 = vunpack.c.l.b16 %v1234
      %v1331 = vunpack.c.l.b16 %v1235
      %v1332 = vunpack.c.l.b16 %v1236
      %v1333 = vunpack.c.l.b16 %v1237
      %v1334 = vunpack.c.l.b16 %v1238
      %v1335 = vunpack.c.l.b16 %v1239
      %v1336 = vunpack.c.l.b16 %v1240
      %v1337 = vunpack.c.l.b16 %v1241
      %v1338 = vunpack.c.l.b16 %v1242
      %v1339 = vunpack.c.l.b16 %v1243
      %v1340 = vunpack.c.l.b16 %v1244
      %v1341 = vunpack.c.l.b16 %v1245
      %v1342 = vunpack.c.l.b16 %v1246
      %v1343 = vunpack.c.l.b16 %v1247
      %v1344 = vunpack.c.l.b16 %v1248
      %v1345 = vunpack.c.l.b16 %v1249
      %v1346 = vunpack.c.l.b16 %v1250
      %v1347 = vunpack.c.l.b16 %v1251
      %v1348 = vunpack.c.l.b16 %v1252
      %v1349 = vunpack.c.l.b16 %v1253
      %v1350 = vunpack.c.l.b16 %v1254
      %v1351 = vunpack.c.l.b16 %v1255
      %v1352 = vunpack.c.l.b16 %v1256
      %v1353 = vunpack.c.l.b16 %v1257
      %v1354 = vunpack.c.l.b16 %v1258
      %v1355 = vunpack.c.l.b16 %v1259
      %v1356 = vunpack.c.l.b16 %v1260
      %v1357 = vunpack.c.l.b16 %v1261
      %v1358 = vunpack.c.l.b16 %v1262
      %v1359 = vunpack.c.l.b16 %v1263
      %v1360 = vunpack.c.l.b16 %v1264
      %v1361 = vunpack.c.l.b16 %v1265
      %v1362 = vunpack.c.l.b16 %v1266
      %v1363 = vunpack.c.l.b16 %v1267
      %v1364 = vunpack.c.l.b16 %v1268
      %v1365 = vunpack.c.l.b16 %v1269
      %v1366 = vpack.c.b16 %v1319, %v1318
      %v1367 = vpack.c.b16 %v1321, %v1320
      %v1368 = vpack.c.b16 %v1323, %v1322
      %v1369 = vpack.c.b16 %v1325, %v1324
      %v1370 = vpack.c.b16 %v1327, %v1326
      %v1371 = vpack.c.b16 %v1329, %v1328
      %v1372 = vpack.c.b16 %v1331, %v1330
      %v1373 = vpack.c.b16 %v1333, %v1332
      %v1374 = vpack.c.b16 %v1335, %v1334
      %v1375 = vpack.c.b16 %v1337, %v1336
      %v1376 = vpack.c.b16 %v1339, %v1338
      %v1377 = vpack.c.b16 %v1341, %v1340
      %v1378 = vpack.c.b16 %v1343, %v1342
      %v1379 = vpack.c.b16 %v1345, %v1344
      %v1380 = vpack.c.b16 %v1347, %v1346
      %v1381 = vpack.c.b16 %v1349, %v1348
      %v1382 = vpack.c.b16 %v1351, %v1350
      %v1383 = vpack.c.b16 %v1353, %v1352
      %v1384 = vpack.c.b16 %v1355, %v1354
      %v1385 = vpack.c.b16 %v1357, %v1356
      %v1386 = vpack.c.b16 %v1359, %v1358
      %v1387 = vpack.c.b16 %v1361, %v1360
      %v1388 = vpack.c.b16 %v1363, %v1362
      %v1389 = vpack.c.b16 %v1365, %v1364
      %1414 = vmatprep.subr.bf16.mxu0 0
      %1415 = vmatpush1.bf16.msra.mxu0 %v1366
      %1416 = vmatprep.subr.bf16.mxu0 0
      %1417 = vmatpush1.bf16.msra.mxu0 %v1367
      %1418 = vmatprep.subr.bf16.mxu0 0
      %1419 = vmatpush1.bf16.msra.mxu0 %v1368
      %1420 = vmatprep.subr.bf16.mxu0 0
      %1421 = vmatpush1.bf16.msra.mxu0 %v1369
      %1422 = vmatprep.subr.bf16.mxu0 0
      %1423 = vmatpush1.bf16.msra.mxu0 %v1370
      %1424 = vmatprep.subr.bf16.mxu0 0
      %1425 = vmatpush1.bf16.msra.mxu0 %v1371
      %1426 = vmatprep.subr.bf16.mxu0 0
      %1427 = vmatpush1.bf16.msra.mxu0 %v1372
      %1428 = vmatprep.subr.bf16.mxu0 0
      %1429 = vmatpush1.bf16.msra.mxu0 %v1373
      %1430 = vmatprep.subr.bf16.mxu0 0
      %1431 = vmatpush1.bf16.msra.mxu0 %v1374
      %1432 = vmatprep.subr.bf16.mxu0 0
      %1433 = vmatpush1.bf16.msra.mxu0 %v1375
      %1434 = vmatprep.subr.bf16.mxu0 0
      %1435 = vmatpush1.bf16.msra.mxu0 %v1376
      %1436 = vmatprep.subr.bf16.mxu0 0
      %1437 = vmatpush1.bf16.msra.mxu0 %v1377
      %1438 = vmatprep.subr.bf16.mxu0 0
      %1439 = vmatpush1.bf16.msra.mxu0 %v1378
      %1440 = vmatprep.subr.bf16.mxu0 0
      %1441 = vmatpush1.bf16.msra.mxu0 %v1379
      %1442 = vmatprep.subr.bf16.mxu0 0
      %1443 = vmatpush1.bf16.msra.mxu0 %v1380
      %1444 = vmatprep.subr.bf16.mxu0 0
      %1445 = vmatpush1.bf16.msra.mxu0 %v1381
      %1446 = vmatprep.mubr.bf16.mxu0 %v884
      %1447 = vmatmul.mubr.bf16.gmra.mrb[0].mxu0 %v883
      %v1448 = vpop.f32.mrb[0].mxu0
      %v1449 = vadd.f32 0.0, %v1448
      %v1450 = vpop.f32.mrb[0].mxu0
      %v1451 = vpop.f32.mrb[0].mxu0
      %v1452 = vadd.f32 0.0, %v1451
      %v1453 = vpop.f32.mrb[0].mxu0
      %1454 = vmatprep.mubr.bf16.mxu0 %v885
      %1455 = vmatmul.mubr.bf16.gmra.mrb[0].mxu0 %v884
      %v1456 = vpop.f32.mrb[0].mxu0
      %v1457 = vadd.f32 0.0, %v1456
      %v1458 = vpop.f32.mrb[0].mxu0
      %v1459 = vpop.f32.mrb[0].mxu0
      %v1460 = vadd.f32 0.0, %v1459
      %v1461 = vpop.f32.mrb[0].mxu0
      %1462 = vmatprep.mubr.bf16.mxu0 %v886
      %1463 = vmatmul.mubr.bf16.gmra.mrb[0].mxu0 %v885
      %v1464 = vpop.f32.mrb[0].mxu0
      %v1465 = vadd.f32 0.0, %v1464
      %v1466 = vpop.f32.mrb[0].mxu0
      %v1467 = vpop.f32.mrb[0].mxu0
      %v1468 = vadd.f32 0.0, %v1467
      %v1469 = vpop.f32.mrb[0].mxu0
      %1470 = vmatprep.mubr.bf16.mxu0 %v887
      %1471 = vmatmul.mubr.bf16.gmra.mrb[0].mxu0 %v886
      %v1472 = vpop.f32.mrb[0].mxu0
      %v1473 = vadd.f32 0.0, %v1472
      %v1474 = vpop.f32.mrb[0].mxu0
      %v1475 = vpop.f32.mrb[0].mxu0
      %v1476 = vadd.f32 0.0, %v1475
      %v1477 = vpop.f32.mrb[0].mxu0
      %1478 = vmatprep.mubr.bf16.mxu0 %v888
      %1479 = vmatmul.mubr.bf16.gmra.mrb[0].mxu0 %v887
      %v1480 = vpop.f32.mrb[0].mxu0
      %v1481 = vadd.f32 0.0, %v1480
      %v1482 = vpop.f32.mrb[0].mxu0
      %v1483 = vpop.f32.mrb[0].mxu0
      %v1484 = vadd.f32 0.0, %v1483
      %v1485 = vpop.f32.mrb[0].mxu0
      %1486 = vmatprep.mubr.bf16.mxu0 %v889
      %1487 = vmatmul.mubr.bf16.gmra.mrb[0].mxu0 %v888
      %v1488 = vpop.f32.mrb[0].mxu0
      %v1489 = vadd.f32 0.0, %v1488
      %v1490 = vpop.f32.mrb[0].mxu0
      %v1491 = vpop.f32.mrb[0].mxu0
      %v1492 = vadd.f32 0.0, %v1491
      %v1493 = vpop.f32.mrb[0].mxu0
      %1494 = vmatprep.mubr.bf16.mxu0 %v890
      %1495 = vmatmul.mubr.bf16.gmra.mrb[0].mxu0 %v889
      %v1496 = vpop.f32.mrb[0].mxu0
      %v1497 = vadd.f32 0.0, %v1496
      %v1498 = vpop.f32.mrb[0].mxu0
      %v1499 = vpop.f32.mrb[0].mxu0
      %v1500 = vadd.f32 0.0, %v1499
      %v1501 = vpop.f32.mrb[0].mxu0
      %1502 = vmatprep.mubr.bf16.mxu0 %v891
      %1503 = vmatmul.mubr.bf16.gmra.mrb[0].mxu0 %v890
      %v1504 = vpop.f32.mrb[0].mxu0
      %v1505 = vadd.f32 0.0, %v1504
      %v1506 = vpop.f32.mrb[0].mxu0
      %v1507 = vpop.f32.mrb[0].mxu0
      %v1508 = vadd.f32 0.0, %v1507
      %v1509 = vpop.f32.mrb[0].mxu0
      %1510 = vmatprep.mubr.bf16.mxu0 %v892
      %1511 = vmatmul.mubr.bf16.gmra.mrb[0].mxu0 %v891
      %v1512 = vpop.f32.mrb[0].mxu0
      %v1513 = vadd.f32 0.0, %v1512
      %v1514 = vpop.f32.mrb[0].mxu0
      %v1515 = vpop.f32.mrb[0].mxu0
      %v1516 = vadd.f32 0.0, %v1515
      %v1517 = vpop.f32.mrb[0].mxu0
      %1518 = vmatprep.mubr.bf16.mxu0 %v893
      %1519 = vmatmul.mubr.bf16.gmra.mrb[0].mxu0 %v892
      %v1520 = vpop.f32.mrb[0].mxu0
      %v1521 = vadd.f32 0.0, %v1520
      %v1522 = vpop.f32.mrb[0].mxu0
      %v1523 = vpop.f32.mrb[0].mxu0
      %v1524 = vadd.f32 0.0, %v1523
      %v1525 = vpop.f32.mrb[0].mxu0
      %1526 = vdwg.mxu0
      %1527 = vmatprep.subr.bf16.mxu0 0
      %1528 = vmatpush1.bf16.msra.mxu0 %v1382
      %1529 = vmatprep.subr.bf16.mxu0 0
      %1530 = vmatpush1.bf16.msra.mxu0 %v1383
      %1531 = vmatprep.subr.bf16.mxu0 0
      %1532 = vmatpush1.bf16.msra.mxu0 %v1384
      %1533 = vmatprep.subr.bf16.mxu0 0
      %1534 = vmatpush1.bf16.msra.mxu0 %v1385
      %1535 = vmatprep.subr.bf16.mxu0 0
      %1536 = vmatpush1.bf16.msra.mxu0 %v1386
      %1537 = vmatprep.subr.bf16.mxu0 0
      %1538 = vmatpush1.bf16.msra.mxu0 %v1387
      %1539 = vmatprep.subr.bf16.mxu0 0
      %1540 = vmatpush1.bf16.msra.mxu0 %v1388
      %1541 = vmatprep.subr.bf16.mxu0 0
      %1542 = vmatpush1.bf16.msra.mxu0 %v1389
      %1543 = vmatprep.subr.bf16.mxu0 0
      %1544 = vmatpush1.bf16.msra.mxu0 0
      %1545 = vmatprep.subr.bf16.mxu0 0
      %1546 = vmatpush1.bf16.msra.mxu0 0
      %1547 = vmatprep.subr.bf16.mxu0 0
      %1548 = vmatpush1.bf16.msra.mxu0 0
      %1549 = vmatprep.subr.bf16.mxu0 0
      %1550 = vmatpush1.bf16.msra.mxu0 0
      %1551 = vmatprep.subr.bf16.mxu0 0
      %1552 = vmatpush1.bf16.msra.mxu0 0
      %1553 = vmatprep.subr.bf16.mxu0 0
      %1554 = vmatpush1.bf16.msra.mxu0 0
      %1555 = vmatprep.subr.bf16.mxu0 0
      %1556 = vmatpush1.bf16.msra.mxu0 0
      %1557 = vmatprep.subr.bf16.mxu0 0
      %1558 = vmatpush1.bf16.msra.mxu0 0
      %1559 = vmatprep.mubr.bf16.mxu0 0
      %1560 = vmatmul.mubr.bf16.gmra.mrb[0].mxu0 %v885
      %v1561 = vpop.f32.mrb[0].mxu0
      %v1562 = vadd.f32 %v1449, %v1561
      %v1563 = vpop.f32.mrb[0].mxu0
      %v1564 = vpop.f32.mrb[0].mxu0
      %v1565 = vadd.f32 %v1452, %v1564
      %v1566 = vpop.f32.mrb[0].mxu0
      %1567 = vmatprep.mubr.bf16.mxu0 0
      %1568 = vmatmul.mubr.bf16.gmra.mrb[0].mxu0 %v886
      %v1569 = vpop.f32.mrb[0].mxu0
      %v1570 = vadd.f32 %v1457, %v1569
      %v1571 = vpop.f32.mrb[0].mxu0
      %v1572 = vpop.f32.mrb[0].mxu0
      %v1573 = vadd.f32 %v1460, %v1572
      %v1574 = vpop.f32.mrb[0].mxu0
      %1575 = vmatprep.mubr.bf16.mxu0 0
      %1576 = vmatmul.mubr.bf16.gmra.mrb[0].mxu0 %v887
      %v1577 = vpop.f32.mrb[0].mxu0
      %v1578 = vadd.f32 %v1465, %v1577
      %v1579 = vpop.f32.mrb[0].mxu0
      %v1580 = vpop.f32.mrb[0].mxu0
      %v1581 = vadd.f32 %v1468, %v1580
      %v1582 = vpop.f32.mrb[0].mxu0
      %1583 = vmatprep.mubr.bf16.mxu0 0
      %1584 = vmatmul.mubr.bf16.gmra.mrb[0].mxu0 %v888
      %v1585 = vpop.f32.mrb[0].mxu0
      %v1586 = vadd.f32 %v1473, %v1585
      %v1587 = vpop.f32.mrb[0].mxu0
      %v1588 = vpop.f32.mrb[0].mxu0
      %v1589 = vadd.f32 %v1476, %v1588
      %v1590 = vpop.f32.mrb[0].mxu0
      %1591 = vmatprep.mubr.bf16.mxu0 0
      %1592 = vmatmul.mubr.bf16.gmra.mrb[0].mxu0 %v889
      %v1593 = vpop.f32.mrb[0].mxu0
      %v1594 = vadd.f32 %v1481, %v1593
      %v1595 = vpop.f32.mrb[0].mxu0
      %v1596 = vpop.f32.mrb[0].mxu0
      %v1597 = vadd.f32 %v1484, %v1596
      %v1598 = vpop.f32.mrb[0].mxu0
      %1599 = vmatprep.mubr.bf16.mxu0 0
      %1600 = vmatmul.mubr.bf16.gmra.mrb[0].mxu0 %v890
      %v1601 = vpop.f32.mrb[0].mxu0
      %v1602 = vadd.f32 %v1489, %v1601
      %v1603 = vpop.f32.mrb[0].mxu0
      %v1604 = vpop.f32.mrb[0].mxu0
      %v1605 = vadd.f32 %v1492, %v1604
      %v1606 = vpop.f32.mrb[0].mxu0
      %1607 = vmatprep.mubr.bf16.mxu0 0
      %1608 = vmatmul.mubr.bf16.gmra.mrb[0].mxu0 %v891
      %v1609 = vpop.f32.mrb[0].mxu0
      %v1610 = vadd.f32 %v1497, %v1609
      %v1611 = vpop.f32.mrb[0].mxu0
      %v1612 = vpop.f32.mrb[0].mxu0
      %v1613 = vadd.f32 %v1500, %v1612
      %v1614 = vpop.f32.mrb[0].mxu0
      %1615 = vmatprep.mubr.bf16.mxu0 0
      %1616 = vmatmul.mubr.bf16.gmra.mrb[0].mxu0 %v892
      %v1617 = vpop.f32.mrb[0].mxu0
      %v1618 = vadd.f32 %v1505, %v1617
      %v1619 = vpop.f32.mrb[0].mxu0
      %v1620 = vpop.f32.mrb[0].mxu0
      %v1621 = vadd.f32 %v1508, %v1620
      %v1622 = vpop.f32.mrb[0].mxu0
      %1623 = vmatprep.mubr.bf16.mxu0 0
      %1624 = vmatmul.mubr.bf16.gmra.mrb[0].mxu0 %v893
      %v1625 = vpop.f32.mrb[0].mxu0
      %v1626 = vadd.f32 %v1513, %v1625
      %v1627 = vpop.f32.mrb[0].mxu0
      %v1628 = vpop.f32.mrb[0].mxu0
      %v1629 = vadd.f32 %v1516, %v1628
      %v1630 = vpop.f32.mrb[0].mxu0
      %1631 = vmatprep.mubr.bf16.mxu0 0
      %1632 = vmatmul.mubr.bf16.gmra.mrb[0].mxu0 %v894
      %v1633 = vpop.f32.mrb[0].mxu0
      %v1634 = vadd.f32 %v1521, %v1633
      %v1635 = vpop.f32.mrb[0].mxu0
      %v1636 = vpop.f32.mrb[0].mxu0
      %v1637 = vadd.f32 %v1524, %v1636
      %v1638 = vpop.f32.mrb[0].mxu0
      %1639 = vdwg.mxu0
      %vm1640 = vsmask.f32 256
      %v1642 = vshrl.u32 %v1160, 16
      %v1644 = vrot.slane %v1642, 7
      %v1646 = vshrl.u32 %v1161, 16
      %v1648 = vrot.slane %v1646, 7
      %v1649 = vshll.u32 %v1161, 16
      %v1651 = vor.u32 %v1648, %v1649
      %v1652 = vsel %vm1640, %v1644, %v1651
      %v1654 = vshrl.u32 %v1162, 16
      %v1656 = vrot.slane %v1654, 7
      %v1657 = vshll.u32 %v1162, 16
      %v1659 = vor.u32 %v1656, %v1657
      %v1660 = vsel %vm1640, %v1648, %v1659
      %v1662 = vshrl.u32 %v1163, 16
      %v1664 = vrot.slane %v1662, 7
      %v1665 = vshll.u32 %v1163, 16
      %v1667 = vor.u32 %v1664, %v1665
      %v1668 = vsel %vm1640, %v1656, %v1667
      %v1670 = vshrl.u32 %v1164, 16
      %v1672 = vrot.slane %v1670, 7
      %v1673 = vshll.u32 %v1164, 16
      %v1675 = vor.u32 %v1672, %v1673
      %v1676 = vsel %vm1640, %v1664, %v1675
      %v1678 = vshrl.u32 %v1165, 16
      %v1680 = vrot.slane %v1678, 7
      %v1681 = vshll.u32 %v1165, 16
      %v1683 = vor.u32 %v1680, %v1681
      %v1684 = vsel %vm1640, %v1672, %v1683
      %v1686 = vshrl.u32 %v1166, 16
      %v1688 = vrot.slane %v1686, 7
      %v1689 = vshll.u32 %v1166, 16
      %v1691 = vor.u32 %v1688, %v1689
      %v1692 = vsel %vm1640, %v1680, %v1691
      %v1694 = vshrl.u32 %v1167, 16
      %v1696 = vrot.slane %v1694, 7
      %v1697 = vshll.u32 %v1167, 16
      %v1699 = vor.u32 %v1696, %v1697
      %v1700 = vsel %vm1640, %v1688, %v1699
      %v1702 = vshrl.u32 %v1168, 16
      %v1704 = vrot.slane %v1702, 7
      %v1705 = vshll.u32 %v1168, 16
      %v1707 = vor.u32 %v1704, %v1705
      %v1708 = vsel %vm1640, %v1696, %v1707
      %v1710 = vshrl.u32 %v1169, 16
      %v1712 = vrot.slane %v1710, 7
      %v1713 = vshll.u32 %v1169, 16
      %v1715 = vor.u32 %v1712, %v1713
      %v1716 = vsel %vm1640, %v1704, %v1715
      %v1718 = vshrl.u32 %v1170, 16
      %v1720 = vrot.slane %v1718, 7
      %v1721 = vshll.u32 %v1170, 16
      %v1723 = vor.u32 %v1720, %v1721
      %v1724 = vsel %vm1640, %v1712, %v1723
      %v1726 = vshrl.u32 %v1171, 16
      %v1728 = vrot.slane %v1726, 7
      %v1729 = vshll.u32 %v1171, 16
      %v1731 = vor.u32 %v1728, %v1729
      %v1732 = vsel %vm1640, %v1720, %v1731
      %v1734 = vshrl.u32 %v1172, 16
      %v1736 = vrot.slane %v1734, 7
      %v1737 = vshll.u32 %v1172, 16
      %v1739 = vor.u32 %v1736, %v1737
      %v1740 = vsel %vm1640, %v1728, %v1739
      %v1801 = vunpack.c.l.b16 %v1173
      %v1802 = vunpack.c.l.b16 %v1174
      %v1803 = vunpack.c.l.b16 %v1175
      %v1804 = vunpack.c.l.b16 %v1176
      %v1805 = vunpack.c.l.b16 %v1177
      %v1806 = vunpack.c.l.b16 %v1178
      %v1807 = vunpack.c.l.b16 %v1179
      %v1808 = vunpack.c.l.b16 %v1180
      %v1809 = vunpack.c.l.b16 %v1181
      %v1810 = vunpack.c.l.b16 %v1182
      %v1811 = vunpack.c.l.b16 %v1183
      %v1812 = vunpack.c.l.b16 %v1184
      %v1813 = vunpack.c.l.b16 %v1185
      %v1814 = vunpack.c.l.b16 %v1186
      %v1815 = vunpack.c.l.b16 %v1187
      %v1816 = vunpack.c.l.b16 %v1188
      %v1817 = vunpack.c.l.b16 %v1189
      %v1818 = vunpack.c.l.b16 %v1190
      %v1819 = vunpack.c.l.b16 %v1191
      %v1820 = vunpack.c.l.b16 %v1192
      %v1821 = vunpack.c.l.b16 %v1193
      %v1822 = vunpack.c.l.b16 %v1194
      %v1823 = vunpack.c.l.b16 %v1195
      %v1824 = vunpack.c.l.b16 %v1196
      %v1825 = vunpack.c.l.b16 %v1197
      %v1826 = vunpack.c.l.b16 %v1198
      %v1827 = vunpack.c.l.b16 %v1199
      %v1828 = vunpack.c.l.b16 %v1200
      %v1829 = vunpack.c.l.b16 %v1201
      %v1830 = vunpack.c.l.b16 %v1202
      %v1831 = vunpack.c.l.b16 %v1203
      %v1832 = vunpack.c.l.b16 %v1204
      %v1833 = vunpack.c.l.b16 %v1205
      %v1834 = vunpack.c.l.b16 %v1206
      %v1835 = vunpack.c.l.b16 %v1207
      %v1836 = vunpack.c.l.b16 %v1208
      %v1837 = vunpack.c.l.b16 %v1209
      %v1838 = vunpack.c.l.b16 %v1210
      %v1839 = vunpack.c.l.b16 %v1211
      %v1840 = vunpack.c.l.b16 %v1212
      %v1841 = vunpack.c.l.b16 %v1213
      %v1842 = vunpack.c.l.b16 %v1214
      %v1843 = vunpack.c.l.b16 %v1215
      %v1844 = vunpack.c.l.b16 %v1216
      %v1845 = vunpack.c.l.b16 %v1217
      %v1846 = vunpack.c.l.b16 %v1218
      %v1847 = vunpack.c.l.b16 %v1219
      %v1848 = vunpack.c.l.b16 %v1220
      %v1849 = vpack.c.b16 %v1802, %v1801
      %v1850 = vpack.c.b16 %v1804, %v1803
      %v1851 = vpack.c.b16 %v1806, %v1805
      %v1852 = vpack.c.b16 %v1808, %v1807
      %v1853 = vpack.c.b16 %v1810, %v1809
      %v1854 = vpack.c.b16 %v1812, %v1811
      %v1855 = vpack.c.b16 %v1814, %v1813
      %v1856 = vpack.c.b16 %v1816, %v1815
      %v1857 = vpack.c.b16 %v1818, %v1817
      %v1858 = vpack.c.b16 %v1820, %v1819
      %v1859 = vpack.c.b16 %v1822, %v1821
      %v1860 = vpack.c.b16 %v1824, %v1823
      %v1861 = vpack.c.b16 %v1826, %v1825
      %v1862 = vpack.c.b16 %v1828, %v1827
      %v1863 = vpack.c.b16 %v1830, %v1829
      %v1864 = vpack.c.b16 %v1832, %v1831
      %v1865 = vpack.c.b16 %v1834, %v1833
      %v1866 = vpack.c.b16 %v1836, %v1835
      %v1867 = vpack.c.b16 %v1838, %v1837
      %v1868 = vpack.c.b16 %v1840, %v1839
      %v1869 = vpack.c.b16 %v1842, %v1841
      %v1870 = vpack.c.b16 %v1844, %v1843
      %v1871 = vpack.c.b16 %v1846, %v1845
      %v1872 = vpack.c.b16 %v1848, %v1847
      %1897 = vmatprep.subr.bf16.mxu0 0
      %1898 = vmatpush1.bf16.msra.mxu0 %v1849
      %1899 = vmatprep.subr.bf16.mxu0 0
      %1900 = vmatpush1.bf16.msra.mxu0 %v1850
      %1901 = vmatprep.subr.bf16.mxu0 0
      %1902 = vmatpush1.bf16.msra.mxu0 %v1851
      %1903 = vmatprep.subr.bf16.mxu0 0
      %1904 = vmatpush1.bf16.msra.mxu0 %v1852
      %1905 = vmatprep.subr.bf16.mxu0 0
      %1906 = vmatpush1.bf16.msra.mxu0 %v1853
      %1907 = vmatprep.subr.bf16.mxu0 0
      %1908 = vmatpush1.bf16.msra.mxu0 %v1854
      %1909 = vmatprep.subr.bf16.mxu0 0
      %1910 = vmatpush1.bf16.msra.mxu0 %v1855
      %1911 = vmatprep.subr.bf16.mxu0 0
      %1912 = vmatpush1.bf16.msra.mxu0 %v1856
      %1913 = vmatprep.subr.bf16.mxu0 0
      %1914 = vmatpush1.bf16.msra.mxu0 %v1857
      %1915 = vmatprep.subr.bf16.mxu0 0
      %1916 = vmatpush1.bf16.msra.mxu0 %v1858
      %1917 = vmatprep.subr.bf16.mxu0 0
      %1918 = vmatpush1.bf16.msra.mxu0 %v1859
      %1919 = vmatprep.subr.bf16.mxu0 0
      %1920 = vmatpush1.bf16.msra.mxu0 %v1860
      %1921 = vmatprep.subr.bf16.mxu0 0
      %1922 = vmatpush1.bf16.msra.mxu0 %v1861
      %1923 = vmatprep.subr.bf16.mxu0 0
      %1924 = vmatpush1.bf16.msra.mxu0 %v1862
      %1925 = vmatprep.subr.bf16.mxu0 0
      %1926 = vmatpush1.bf16.msra.mxu0 %v1863
      %1927 = vmatprep.subr.bf16.mxu0 0
      %1928 = vmatpush1.bf16.msra.mxu0 %v1864
      %1929 = vmatprep.mubr.bf16.mxu0 %v1660
      %1930 = vmatmul.mubr.bf16.gmra.mrb[0].mxu0 %v1652
      %v1931 = vpop.f32.mrb[0].mxu0
      %v1932 = vadd.f32 %v1562, %v1931
      %v1933 = vpop.f32.mrb[0].mxu0
      %v1934 = vpop.f32.mrb[0].mxu0
      %v1935 = vadd.f32 %v1565, %v1934
      %v1936 = vpop.f32.mrb[0].mxu0
      %1937 = vmatprep.mubr.bf16.mxu0 %v1668
      %1938 = vmatmul.mubr.bf16.gmra.mrb[0].mxu0 %v1660
      %v1939 = vpop.f32.mrb[0].mxu0
      %v1940 = vadd.f32 %v1570, %v1939
      %v1941 = vpop.f32.mrb[0].mxu0
      %v1942 = vpop.f32.mrb[0].mxu0
      %v1943 = vadd.f32 %v1573, %v1942
      %v1944 = vpop.f32.mrb[0].mxu0
      %1945 = vmatprep.mubr.bf16.mxu0 %v1676
      %1946 = vmatmul.mubr.bf16.gmra.mrb[0].mxu0 %v1668
      %v1947 = vpop.f32.mrb[0].mxu0
      %v1948 = vadd.f32 %v1578, %v1947
      %v1949 = vpop.f32.mrb[0].mxu0
      %v1950 = vpop.f32.mrb[0].mxu0
      %v1951 = vadd.f32 %v1581, %v1950
      %v1952 = vpop.f32.mrb[0].mxu0
      %1953 = vmatprep.mubr.bf16.mxu0 %v1684
      %1954 = vmatmul.mubr.bf16.gmra.mrb[0].mxu0 %v1676
      %v1955 = vpop.f32.mrb[0].mxu0
      %v1956 = vadd.f32 %v1586, %v1955
      %v1957 = vpop.f32.mrb[0].mxu0
      %v1958 = vpop.f32.mrb[0].mxu0
      %v1959 = vadd.f32 %v1589, %v1958
      %v1960 = vpop.f32.mrb[0].mxu0
      %1961 = vmatprep.mubr.bf16.mxu0 %v1692
      %1962 = vmatmul.mubr.bf16.gmra.mrb[0].mxu0 %v1684
      %v1963 = vpop.f32.mrb[0].mxu0
      %v1964 = vadd.f32 %v1594, %v1963
      %v1965 = vpop.f32.mrb[0].mxu0
      %v1966 = vpop.f32.mrb[0].mxu0
      %v1967 = vadd.f32 %v1597, %v1966
      %v1968 = vpop.f32.mrb[0].mxu0
      %1969 = vmatprep.mubr.bf16.mxu0 %v1700
      %1970 = vmatmul.mubr.bf16.gmra.mrb[0].mxu0 %v1692
      %v1971 = vpop.f32.mrb[0].mxu0
      %v1972 = vadd.f32 %v1602, %v1971
      %v1973 = vpop.f32.mrb[0].mxu0
      %v1974 = vpop.f32.mrb[0].mxu0
      %v1975 = vadd.f32 %v1605, %v1974
      %v1976 = vpop.f32.mrb[0].mxu0
      %1977 = vmatprep.mubr.bf16.mxu0 %v1708
      %1978 = vmatmul.mubr.bf16.gmra.mrb[0].mxu0 %v1700
      %v1979 = vpop.f32.mrb[0].mxu0
      %v1980 = vadd.f32 %v1610, %v1979
      %v1981 = vpop.f32.mrb[0].mxu0
      %v1982 = vpop.f32.mrb[0].mxu0
      %v1983 = vadd.f32 %v1613, %v1982
      %v1984 = vpop.f32.mrb[0].mxu0
      %1985 = vmatprep.mubr.bf16.mxu0 %v1716
      %1986 = vmatmul.mubr.bf16.gmra.mrb[0].mxu0 %v1708
      %v1987 = vpop.f32.mrb[0].mxu0
      %v1988 = vadd.f32 %v1618, %v1987
      %v1989 = vpop.f32.mrb[0].mxu0
      %v1990 = vpop.f32.mrb[0].mxu0
      %v1991 = vadd.f32 %v1621, %v1990
      %v1992 = vpop.f32.mrb[0].mxu0
      %1993 = vmatprep.mubr.bf16.mxu0 %v1724
      %1994 = vmatmul.mubr.bf16.gmra.mrb[0].mxu0 %v1716
      %v1995 = vpop.f32.mrb[0].mxu0
      %v1996 = vadd.f32 %v1626, %v1995
      %v1997 = vpop.f32.mrb[0].mxu0
      %v1998 = vpop.f32.mrb[0].mxu0
      %v1999 = vadd.f32 %v1629, %v1998
      %v2000 = vpop.f32.mrb[0].mxu0
      %2001 = vmatprep.mubr.bf16.mxu0 %v1732
      %2002 = vmatmul.mubr.bf16.gmra.mrb[0].mxu0 %v1724
      %v2003 = vpop.f32.mrb[0].mxu0
      %v2004 = vadd.f32 %v1634, %v2003
      %v2005 = vpop.f32.mrb[0].mxu0
      %v2006 = vpop.f32.mrb[0].mxu0
      %v2007 = vadd.f32 %v1637, %v2006
      %v2008 = vpop.f32.mrb[0].mxu0
      %2009 = vdwg.mxu0
      %2010 = vmatprep.subr.bf16.mxu0 0
      %2011 = vmatpush1.bf16.msra.mxu0 %v1865
      %2012 = vmatprep.subr.bf16.mxu0 0
      %2013 = vmatpush1.bf16.msra.mxu0 %v1866
      %2014 = vmatprep.subr.bf16.mxu0 0
      %2015 = vmatpush1.bf16.msra.mxu0 %v1867
      %2016 = vmatprep.subr.bf16.mxu0 0
      %2017 = vmatpush1.bf16.msra.mxu0 %v1868
      %2018 = vmatprep.subr.bf16.mxu0 0
      %2019 = vmatpush1.bf16.msra.mxu0 %v1869
      %2020 = vmatprep.subr.bf16.mxu0 0
      %2021 = vmatpush1.bf16.msra.mxu0 %v1870
      %2022 = vmatprep.subr.bf16.mxu0 0
      %2023 = vmatpush1.bf16.msra.mxu0 %v1871
      %2024 = vmatprep.subr.bf16.mxu0 0
      %2025 = vmatpush1.bf16.msra.mxu0 %v1872
      %2026 = vmatprep.subr.bf16.mxu0 0
      %2027 = vmatpush1.bf16.msra.mxu0 0
      %2028 = vmatprep.subr.bf16.mxu0 0
      %2029 = vmatpush1.bf16.msra.mxu0 0
      %2030 = vmatprep.subr.bf16.mxu0 0
      %2031 = vmatpush1.bf16.msra.mxu0 0
      %2032 = vmatprep.subr.bf16.mxu0 0
      %2033 = vmatpush1.bf16.msra.mxu0 0
      %2034 = vmatprep.subr.bf16.mxu0 0
      %2035 = vmatpush1.bf16.msra.mxu0 0
      %2036 = vmatprep.subr.bf16.mxu0 0
      %2037 = vmatpush1.bf16.msra.mxu0 0
      %2038 = vmatprep.subr.bf16.mxu0 0
      %2039 = vmatpush1.bf16.msra.mxu0 0
      %2040 = vmatprep.subr.bf16.mxu0 0
      %2041 = vmatpush1.bf16.msra.mxu0 0
      %2042 = vmatprep.mubr.bf16.mxu0 0
      %2043 = vmatmul.mubr.bf16.gmra.mrb[0].mxu0 %v1668
      %v2044 = vpop.f32.mrb[0].mxu0
      %v2045 = vadd.f32 %v1932, %v2044
      %v2046 = vpop.f32.mrb[0].mxu0
      %v2047 = vpop.f32.mrb[0].mxu0
      %v2048 = vadd.f32 %v1935, %v2047
      %v2049 = vpop.f32.mrb[0].mxu0
      %2050 = vmatprep.mubr.bf16.mxu0 0
      %2051 = vmatmul.mubr.bf16.gmra.mrb[0].mxu0 %v1676
      %v2052 = vpop.f32.mrb[0].mxu0
      %v2053 = vadd.f32 %v1940, %v2052
      %v2054 = vpop.f32.mrb[0].mxu0
      %v2055 = vpop.f32.mrb[0].mxu0
      %v2056 = vadd.f32 %v1943, %v2055
      %v2057 = vpop.f32.mrb[0].mxu0
      %2058 = vmatprep.mubr.bf16.mxu0 0
      %2059 = vmatmul.mubr.bf16.gmra.mrb[0].mxu0 %v1684
      %v2060 = vpop.f32.mrb[0].mxu0
      %v2061 = vadd.f32 %v1948, %v2060
      %v2062 = vpop.f32.mrb[0].mxu0
      %v2063 = vpop.f32.mrb[0].mxu0
      %v2064 = vadd.f32 %v1951, %v2063
      %v2065 = vpop.f32.mrb[0].mxu0
      %2066 = vmatprep.mubr.bf16.mxu0 0
      %2067 = vmatmul.mubr.bf16.gmra.mrb[0].mxu0 %v1692
      %v2068 = vpop.f32.mrb[0].mxu0
      %v2069 = vadd.f32 %v1956, %v2068
      %v2070 = vpop.f32.mrb[0].mxu0
      %v2071 = vpop.f32.mrb[0].mxu0
      %v2072 = vadd.f32 %v1959, %v2071
      %v2073 = vpop.f32.mrb[0].mxu0
      %2074 = vmatprep.mubr.bf16.mxu0 0
      %2075 = vmatmul.mubr.bf16.gmra.mrb[0].mxu0 %v1700
      %v2076 = vpop.f32.mrb[0].mxu0
      %v2077 = vadd.f32 %v1964, %v2076
      %v2078 = vpop.f32.mrb[0].mxu0
      %v2079 = vpop.f32.mrb[0].mxu0
      %v2080 = vadd.f32 %v1967, %v2079
      %v2081 = vpop.f32.mrb[0].mxu0
      %2082 = vmatprep.mubr.bf16.mxu0 0
      %2083 = vmatmul.mubr.bf16.gmra.mrb[0].mxu0 %v1708
      %v2084 = vpop.f32.mrb[0].mxu0
      %v2085 = vadd.f32 %v1972, %v2084
      %v2086 = vpop.f32.mrb[0].mxu0
      %v2087 = vpop.f32.mrb[0].mxu0
      %v2088 = vadd.f32 %v1975, %v2087
      %v2089 = vpop.f32.mrb[0].mxu0
      %2090 = vmatprep.mubr.bf16.mxu0 0
      %2091 = vmatmul.mubr.bf16.gmra.mrb[0].mxu0 %v1716
      %v2092 = vpop.f32.mrb[0].mxu0
      %v2093 = vadd.f32 %v1980, %v2092
      %v2094 = vpop.f32.mrb[0].mxu0
      %v2095 = vpop.f32.mrb[0].mxu0
      %v2096 = vadd.f32 %v1983, %v2095
      %v2097 = vpop.f32.mrb[0].mxu0
      %2098 = vmatprep.mubr.bf16.mxu0 0
      %2099 = vmatmul.mubr.bf16.gmra.mrb[0].mxu0 %v1724
      %v2100 = vpop.f32.mrb[0].mxu0
      %v2101 = vadd.f32 %v1988, %v2100
      %v2102 = vpop.f32.mrb[0].mxu0
      %v2103 = vpop.f32.mrb[0].mxu0
      %v2104 = vadd.f32 %v1991, %v2103
      %v2105 = vpop.f32.mrb[0].mxu0
      %2106 = vmatprep.mubr.bf16.mxu0 0
      %2107 = vmatmul.mubr.bf16.gmra.mrb[0].mxu0 %v1732
      %v2108 = vpop.f32.mrb[0].mxu0
      %v2109 = vadd.f32 %v1996, %v2108
      %v2110 = vpop.f32.mrb[0].mxu0
      %v2111 = vpop.f32.mrb[0].mxu0
      %v2112 = vadd.f32 %v1999, %v2111
      %v2113 = vpop.f32.mrb[0].mxu0
      %2114 = vmatprep.mubr.bf16.mxu0 0
      %2115 = vmatmul.mubr.bf16.gmra.mrb[0].mxu0 %v1740
      %v2116 = vpop.f32.mrb[0].mxu0
      %v2117 = vadd.f32 %v2004, %v2116
      %v2118 = vpop.f32.mrb[0].mxu0
      %v2119 = vpop.f32.mrb[0].mxu0
      %v2120 = vadd.f32 %v2007, %v2119
      %v2121 = vpop.f32.mrb[0].mxu0
      %2122 = vdwg.mxu0
      %v2123 = vld [vmem:[#allocation2 + $0x8] sm:$0xff]
      %v2124 = vld [vmem:[#allocation2 + $0x10] sm:$0xff]
      %v2125 = vld [vmem:[#allocation2 + $0x18] sm:$0xff]
      %v2126 = vld [vmem:[#allocation2 + $0x20] sm:$0xff]
      %v2127 = vld [vmem:[#allocation2 + $0x28] sm:$0xff]
      %v2128 = vld [vmem:[#allocation2 + $0x30] sm:$0xff]
      %v2129 = vld [vmem:[#allocation2 + $0x38] sm:$0xff]
      %v2130 = vld [vmem:[#allocation2 + $0x40] sm:$0xff]
      %v2131 = vld [vmem:[#allocation2 + $0x48] sm:$0xff]
      %v2132 = vld [vmem:[#allocation2 + $0x50] sm:$0xff]
      %v2133 = vld [vmem:[#allocation2 + $0x58] sm:$0xff]
      %v2134 = vld [vmem:[#allocation2 + $0x60] sm:$0xff]
      %v2135 = vld [vmem:[#allocation2 + $0x68] sm:$0x1]
      %vm2136 = vcmp.le.s32.totalorder %v858, 14
      %vm2137 = vcmp.le.s32.totalorder %v859, 14
      %vm2138 = vcmp.le.s32.totalorder %v860, 14
      %vm2139 = vcmp.le.s32.totalorder %v861, 14
      %vm2140 = vcmp.le.s32.totalorder %v862, 14
      %vm2141 = vcmp.le.s32.totalorder %v863, 14
      %vm2142 = vcmp.le.s32.totalorder %v864, 14
      %vm2143 = vcmp.le.s32.totalorder %v865, 14
      %vm2144 = vcmp.le.s32.totalorder %v866, 14
      %vm2145 = vcmp.le.s32.totalorder %v867, 14
      %vm2146 = vcmp.le.s32.totalorder %v868, 14
      %vm2147 = vcmp.le.s32.totalorder %v869, 14
      %vm2148 = vcmp.le.s32.totalorder %v870, 14
      %vm2149 = vcmp.le.s32.totalorder %v871, 14
      %vm2150 = vcmp.le.s32.totalorder %v872, 14
      %vm2151 = vcmp.le.s32.totalorder %v873, 14
      %vm2152 = vcmp.le.s32.totalorder %v874, 14
      %vm2153 = vcmp.le.s32.totalorder %v875, 14
      %vm2154 = vcmp.le.s32.totalorder %v876, 14
      %vm2155 = vcmp.le.s32.totalorder %v877, 14
      %vm2156 = vcmp.le.s32.totalorder %v878, 14
      %vm2157 = vcmp.le.s32.totalorder %v879, 14
      %vm2158 = vcmp.le.s32.totalorder %v880, 14
      %vm2159 = vcmp.le.s32.totalorder %v881, 14
      %v2160 = vsel %vm2136, 1, 0
      %v2161 = vsel %vm2137, 1, 0
      %v2162 = vsel %vm2138, 1, 0
      %v2163 = vsel %vm2139, 1, 0
      %v2164 = vsel %vm2140, 1, 0
      %v2165 = vsel %vm2141, 1, 0
      %v2166 = vsel %vm2142, 1, 0
      %v2167 = vsel %vm2143, 1, 0
      %v2168 = vsel %vm2144, 1, 0
      %v2169 = vsel %vm2145, 1, 0
      %v2170 = vsel %vm2146, 1, 0
      %v2171 = vsel %vm2147, 1, 0
      %v2172 = vsel %vm2148, 1, 0
      %v2173 = vsel %vm2149, 1, 0
      %v2174 = vsel %vm2150, 1, 0
      %v2175 = vsel %vm2151, 1, 0
      %v2176 = vsel %vm2152, 1, 0
      %v2177 = vsel %vm2153, 1, 0
      %v2178 = vsel %vm2154, 1, 0
      %v2179 = vsel %vm2155, 1, 0
      %v2180 = vsel %vm2156, 1, 0
      %v2181 = vsel %vm2157, 1, 0
      %v2182 = vsel %vm2158, 1, 0
      %v2183 = vsel %vm2159, 1, 0
      %vm2184 = vcmp.eq.s32.totalorder %v2160, 1
      %vm2185 = vcmp.eq.s32.totalorder %v2161, 1
      %vm2186 = vcmp.eq.s32.totalorder %v2162, 1
      %vm2187 = vcmp.eq.s32.totalorder %v2163, 1
      %vm2188 = vcmp.eq.s32.totalorder %v2164, 1
      %vm2189 = vcmp.eq.s32.totalorder %v2165, 1
      %vm2190 = vcmp.eq.s32.totalorder %v2166, 1
      %vm2191 = vcmp.eq.s32.totalorder %v2167, 1
      %vm2192 = vcmp.eq.s32.totalorder %v2168, 1
      %vm2193 = vcmp.eq.s32.totalorder %v2169, 1
      %vm2194 = vcmp.eq.s32.totalorder %v2170, 1
      %vm2195 = vcmp.eq.s32.totalorder %v2171, 1
      %vm2196 = vcmp.eq.s32.totalorder %v2172, 1
      %vm2197 = vcmp.eq.s32.totalorder %v2173, 1
      %vm2198 = vcmp.eq.s32.totalorder %v2174, 1
      %vm2199 = vcmp.eq.s32.totalorder %v2175, 1
      %vm2200 = vcmp.eq.s32.totalorder %v2176, 1
      %vm2201 = vcmp.eq.s32.totalorder %v2177, 1
      %vm2202 = vcmp.eq.s32.totalorder %v2178, 1
      %vm2203 = vcmp.eq.s32.totalorder %v2179, 1
      %vm2204 = vcmp.eq.s32.totalorder %v2180, 1
      %vm2205 = vcmp.eq.s32.totalorder %v2181, 1
      %vm2206 = vcmp.eq.s32.totalorder %v2182, 1
      %vm2207 = vcmp.eq.s32.totalorder %v2183, 1
      %vm2208 = vmpackc.low %vm2184, %vm2184
      %vm2209 = vmpackc.low %vm2185, %vm2185
      %vm2210 = vmpackc.low %vm2186, %vm2186
      %vm2211 = vmpackc.low %vm2187, %vm2187
      %vm2212 = vmpackc.low %vm2188, %vm2188
      %vm2213 = vmpackc.low %vm2189, %vm2189
      %vm2214 = vmpackc.low %vm2190, %vm2190
      %vm2215 = vmpackc.low %vm2191, %vm2191
      %vm2216 = vmpackc.low %vm2192, %vm2192
      %vm2217 = vmpackc.low %vm2193, %vm2193
      %vm2218 = vmpackc.low %vm2194, %vm2194
      %vm2219 = vmpackc.low %vm2195, %vm2195
      %vm2220 = vmpackc.low %vm2196, %vm2196
      %vm2221 = vmpackc.low %vm2197, %vm2197
      %vm2222 = vmpackc.low %vm2198, %vm2198
      %vm2223 = vmpackc.low %vm2199, %vm2199
      %vm2224 = vmpackc.low %vm2200, %vm2200
      %vm2225 = vmpackc.low %vm2201, %vm2201
      %vm2226 = vmpackc.low %vm2202, %vm2202
      %vm2227 = vmpackc.low %vm2203, %vm2203
      %vm2228 = vmpackc.low %vm2204, %vm2204
      %vm2229 = vmpackc.low %vm2205, %vm2205
      %vm2230 = vmpackc.low %vm2206, %vm2206
      %vm2231 = vmpackc.low %vm2207, %vm2207
      %v2232 = vsel %vm2208, 65537, 0
      %v2233 = vsel %vm2209, 65537, 0
      %v2234 = vsel %vm2210, 65537, 0
      %v2235 = vsel %vm2211, 65537, 0
      %v2236 = vsel %vm2212, 65537, 0
      %v2237 = vsel %vm2213, 65537, 0
      %v2238 = vsel %vm2214, 65537, 0
      %v2239 = vsel %vm2215, 65537, 0
      %v2240 = vsel %vm2216, 65537, 0
      %v2241 = vsel %vm2217, 65537, 0
      %v2242 = vsel %vm2218, 65537, 0
      %v2243 = vsel %vm2219, 65537, 0
      %v2244 = vsel %vm2220, 65537, 0
      %v2245 = vsel %vm2221, 65537, 0
      %v2246 = vsel %vm2222, 65537, 0
      %v2247 = vsel %vm2223, 65537, 0
      %v2248 = vsel %vm2224, 65537, 0
      %v2249 = vsel %vm2225, 65537, 0
      %v2250 = vsel %vm2226, 65537, 0
      %v2251 = vsel %vm2227, 65537, 0
      %v2252 = vsel %vm2228, 65537, 0
      %v2253 = vsel %vm2229, 65537, 0
      %v2254 = vsel %vm2230, 65537, 0
      %v2255 = vsel %vm2231, 65537, 0
      %v2256 = vunpack.c.l.b16 %v2232
      %v2257 = vunpack.c.l.b16 %v2233
      %v2258 = vunpack.c.l.b16 %v2234
      %v2259 = vunpack.c.l.b16 %v2235
      %v2260 = vunpack.c.l.b16 %v2236
      %v2261 = vunpack.c.l.b16 %v2237
      %v2262 = vunpack.c.l.b16 %v2238
      %v2263 = vunpack.c.l.b16 %v2239
      %v2264 = vunpack.c.l.b16 %v2240
      %v2265 = vunpack.c.l.b16 %v2241
      %v2266 = vunpack.c.l.b16 %v2242
      %v2267 = vunpack.c.l.b16 %v2243
      %v2268 = vunpack.c.l.b16 %v2244
      %v2269 = vunpack.c.l.b16 %v2245
      %v2270 = vunpack.c.l.b16 %v2246
      %v2271 = vunpack.c.l.b16 %v2247
      %v2272 = vunpack.c.l.b16 %v2248
      %v2273 = vunpack.c.l.b16 %v2249
      %v2274 = vunpack.c.l.b16 %v2250
      %v2275 = vunpack.c.l.b16 %v2251
      %v2276 = vunpack.c.l.b16 %v2252
      %v2277 = vunpack.c.l.b16 %v2253
      %v2278 = vunpack.c.l.b16 %v2254
      %v2279 = vunpack.c.l.b16 %v2255
      %v2280 = vpack.c.b16 %v2257, %v2256
      %v2281 = vpack.c.b16 %v2259, %v2258
      %v2282 = vpack.c.b16 %v2261, %v2260
      %v2283 = vpack.c.b16 %v2263, %v2262
      %v2284 = vpack.c.b16 %v2265, %v2264
      %v2285 = vpack.c.b16 %v2267, %v2266
      %v2286 = vpack.c.b16 %v2269, %v2268
      %v2287 = vpack.c.b16 %v2271, %v2270
      %v2288 = vpack.c.b16 %v2273, %v2272
      %v2289 = vpack.c.b16 %v2275, %v2274
      %v2290 = vpack.c.b16 %v2277, %v2276
      %v2291 = vpack.c.b16 %v2279, %v2278
      %v2293 = vshrl.u32 %v2280, 16
      %v2295 = vrot.slane %v2293, 7
      %v2296 = vshll.u32 %v2280, 16
      %v2298 = vor.u32 %v2295, %v2296
      %v2300 = vshrl.u32 %v2281, 16
      %v2302 = vrot.slane %v2300, 7
      %v2303 = vshll.u32 %v2281, 16
      %v2305 = vor.u32 %v2302, %v2303
      %v2306 = vsel %vm1640, %v2295, %v2305
      %v2308 = vshrl.u32 %v2282, 16
      %v2310 = vrot.slane %v2308, 7
      %v2311 = vshll.u32 %v2282, 16
      %v2313 = vor.u32 %v2310, %v2311
      %v2314 = vsel %vm1640, %v2302, %v2313
      %v2316 = vshrl.u32 %v2283, 16
      %v2318 = vrot.slane %v2316, 7
      %v2319 = vshll.u32 %v2283, 16
      %v2321 = vor.u32 %v2318, %v2319
      %v2322 = vsel %vm1640, %v2310, %v2321
      %v2324 = vshrl.u32 %v2284, 16
      %v2326 = vrot.slane %v2324, 7
      %v2327 = vshll.u32 %v2284, 16
      %v2329 = vor.u32 %v2326, %v2327
      %v2330 = vsel %vm1640, %v2318, %v2329
      %v2332 = vshrl.u32 %v2285, 16
      %v2334 = vrot.slane %v2332, 7
      %v2335 = vshll.u32 %v2285, 16
      %v2337 = vor.u32 %v2334, %v2335
      %v2338 = vsel %vm1640, %v2326, %v2337
      %v2340 = vshrl.u32 %v2286, 16
      %v2342 = vrot.slane %v2340, 7
      %v2343 = vshll.u32 %v2286, 16
      %v2345 = vor.u32 %v2342, %v2343
      %v2346 = vsel %vm1640, %v2334, %v2345
      %v2348 = vshrl.u32 %v2287, 16
      %v2350 = vrot.slane %v2348, 7
      %v2351 = vshll.u32 %v2287, 16
      %v2353 = vor.u32 %v2350, %v2351
      %v2354 = vsel %vm1640, %v2342, %v2353
      %v2356 = vshrl.u32 %v2288, 16
      %v2358 = vrot.slane %v2356, 7
      %v2359 = vshll.u32 %v2288, 16
      %v2361 = vor.u32 %v2358, %v2359
      %v2362 = vsel %vm1640, %v2350, %v2361
      %v2364 = vshrl.u32 %v2289, 16
      %v2366 = vrot.slane %v2364, 7
      %v2367 = vshll.u32 %v2289, 16
      %v2369 = vor.u32 %v2366, %v2367
      %v2370 = vsel %vm1640, %v2358, %v2369
      %v2372 = vshrl.u32 %v2290, 16
      %v2374 = vrot.slane %v2372, 7
      %v2375 = vshll.u32 %v2290, 16
      %v2377 = vor.u32 %v2374, %v2375
      %v2378 = vsel %vm1640, %v2366, %v2377
      %v2380 = vshrl.u32 %v2291, 16
      %v2382 = vrot.slane %v2380, 7
      %v2383 = vshll.u32 %v2291, 16
      %v2385 = vor.u32 %v2382, %v2383
      %v2386 = vsel %vm1640, %v2374, %v2385
      %vm2387 = vcmp.ne.s16.totalorder %v2298, 0
      %vm2388 = vcmp.ne.s16.totalorder %v2306, 0
      %vm2389 = vcmp.ne.s16.totalorder %v2314, 0
      %vm2390 = vcmp.ne.s16.totalorder %v2322, 0
      %vm2391 = vcmp.ne.s16.totalorder %v2330, 0
      %vm2392 = vcmp.ne.s16.totalorder %v2338, 0
      %vm2393 = vcmp.ne.s16.totalorder %v2346, 0
      %vm2394 = vcmp.ne.s16.totalorder %v2354, 0
      %vm2395 = vcmp.ne.s16.totalorder %v2362, 0
      %vm2396 = vcmp.ne.s16.totalorder %v2370, 0
      %vm2397 = vcmp.ne.s16.totalorder %v2378, 0
      %vm2398 = vcmp.ne.s16.totalorder %v2386, 0
      %vm2399 = vcmp.ne.s16.totalorder %v2382, 0
      %v2400 = vsel %vm2387, %v2123, 0
      %v2401 = vsel %vm2388, %v2124, 0
      %v2402 = vsel %vm2389, %v2125, 0
      %v2403 = vsel %vm2390, %v2126, 0
      %v2404 = vsel %vm2391, %v2127, 0
      %v2405 = vsel %vm2392, %v2128, 0
      %v2406 = vsel %vm2393, %v2129, 0
      %v2407 = vsel %vm2394, %v2130, 0
      %v2408 = vsel %vm2395, %v2131, 0
      %v2409 = vsel %vm2396, %v2132, 0
      %v2410 = vsel %vm2397, %v2133, 0
      %v2411 = vsel %vm2398, %v2134, 0
      %v2412 = vsel %vm2399, %v2135, 0
      %s2413 = scalar_lea.vmem %s3, 384
      %v2414 = vld [vmem:[%s2413] sm:$0xf]
      %v2415 = vld [vmem:[%s2413 + $0x4] sm:$0xf]
      %v2416 = vld [vmem:[%s2413 + $0x8] sm:$0xf]
      %v2417 = vld [vmem:[%s2413 + $0xc] sm:$0xf]
      %v2418 = vld [vmem:[%s2413 + $0x10] sm:$0xf]
      %v2419 = vld [vmem:[%s2413 + $0x14] sm:$0xf]
      %v2420 = vld [vmem:[%s2413 + $0x18] sm:$0xf]
      %v2421 = vld [vmem:[%s2413 + $0x1c] sm:$0xf]
      %v2422 = vld [vmem:[%s2413 + $0x20] sm:$0xf]
      %v2423 = vld [vmem:[%s2413 + $0x24] sm:$0xf]
      %v2424 = vld [vmem:[%s2413 + $0x28] sm:$0xf]
      %v2425 = vld [vmem:[%s2413 + $0x2c] sm:$0xf]
      %v2426 = vld [vmem:[%s2413 + $0x30] sm:$0xf]
      %v2427 = vld [vmem:[%s2413 + $0x34] sm:$0xf]
      %v2428 = vld [vmem:[%s2413 + $0x38] sm:$0xf]
      %v2429 = vld [vmem:[%s2413 + $0x3c] sm:$0xf]
      %v2430 = vld [vmem:[%s2413 + $0x40] sm:$0xf]
      %v2431 = vld [vmem:[%s2413 + $0x44] sm:$0xf]
      %v2432 = vld [vmem:[%s2413 + $0x48] sm:$0xf]
      %v2433 = vld [vmem:[%s2413 + $0x4c] sm:$0xf]
      %v2434 = vld [vmem:[%s2413 + $0x50] sm:$0xf]
      %v2435 = vld [vmem:[%s2413 + $0x54] sm:$0xf]
      %v2436 = vld [vmem:[%s2413 + $0x58] sm:$0xf]
      %v2437 = vld [vmem:[%s2413 + $0x5c] sm:$0xf]
      %v2438 = vld [vmem:[%s2413 + $0x60] sm:$0xf]
      %v2439 = vld [vmem:[%s2413 + $0x64] sm:$0xf]
      %v2440 = vld [vmem:[%s2413 + $0x68] sm:$0xf]
      %v2441 = vld [vmem:[%s2413 + $0x6c] sm:$0xf]
      %v2442 = vld [vmem:[%s2413 + $0x70] sm:$0xf]
      %v2443 = vld [vmem:[%s2413 + $0x74] sm:$0xf]
      %v2444 = vld [vmem:[%s2413 + $0x78] sm:$0xf]
      %v2445 = vld [vmem:[%s2413 + $0x7c] sm:$0xf]
      %v2446 = vld [vmem:[%s2413 + $0x80] sm:$0xf]
      %v2447 = vld [vmem:[%s2413 + $0x84] sm:$0xf]
      %v2448 = vld [vmem:[%s2413 + $0x88] sm:$0xf]
      %v2449 = vld [vmem:[%s2413 + $0x8c] sm:$0xf]
      %v2450 = vld [vmem:[%s2413 + $0x90] sm:$0xf]
      %v2451 = vld [vmem:[%s2413 + $0x94] sm:$0xf]
      %v2452 = vld [vmem:[%s2413 + $0x98] sm:$0xf]
      %v2453 = vld [vmem:[%s2413 + $0x9c] sm:$0xf]
      %v2454 = vld [vmem:[%s2413 + $0xa0] sm:$0xf]
      %v2455 = vld [vmem:[%s2413 + $0xa4] sm:$0xf]
      %v2456 = vld [vmem:[%s2413 + $0xa8] sm:$0xf]
      %v2457 = vld [vmem:[%s2413 + $0xac] sm:$0xf]
      %v2458 = vld [vmem:[%s2413 + $0xb0] sm:$0xf]
      %v2459 = vld [vmem:[%s2413 + $0xb4] sm:$0xf]
      %v2460 = vld [vmem:[%s2413 + $0xb8] sm:$0xf]
      %v2461 = vld [vmem:[%s2413 + $0xbc] sm:$0xf]
      %v2463 = vshrl.u32 %v2400, 16
      %v2465 = vshll.u32 %v2400, 16
      %v2467 = vrot.slane %v2465, 1
      %v2468 = vor.u32 %v2463, %v2467
      %v2470 = vshll.u32 %v2401, 16
      %v2472 = vrot.slane %v2470, 1
      %v2473 = vsel %vm1051, %v2468, %v2472
      %v2474 = vshrl.u32 %v2401, 16
      %v2476 = vor.u32 %v2474, %v2472
      %v2478 = vshll.u32 %v2402, 16
      %v2480 = vrot.slane %v2478, 1
      %v2481 = vsel %vm1051, %v2476, %v2480
      %v2482 = vshrl.u32 %v2402, 16
      %v2484 = vor.u32 %v2482, %v2480
      %v2486 = vshll.u32 %v2403, 16
      %v2488 = vrot.slane %v2486, 1
      %v2489 = vsel %vm1051, %v2484, %v2488
      %v2490 = vshrl.u32 %v2403, 16
      %v2492 = vor.u32 %v2490, %v2488
      %v2494 = vshll.u32 %v2404, 16
      %v2496 = vrot.slane %v2494, 1
      %v2497 = vsel %vm1051, %v2492, %v2496
      %v2498 = vshrl.u32 %v2404, 16
      %v2500 = vor.u32 %v2498, %v2496
      %v2502 = vshll.u32 %v2405, 16
      %v2504 = vrot.slane %v2502, 1
      %v2505 = vsel %vm1051, %v2500, %v2504
      %v2506 = vshrl.u32 %v2405, 16
      %v2508 = vor.u32 %v2506, %v2504
      %v2510 = vshll.u32 %v2406, 16
      %v2512 = vrot.slane %v2510, 1
      %v2513 = vsel %vm1051, %v2508, %v2512
      %v2514 = vshrl.u32 %v2406, 16
      %v2516 = vor.u32 %v2514, %v2512
      %v2518 = vshll.u32 %v2407, 16
      %v2520 = vrot.slane %v2518, 1
      %v2521 = vsel %vm1051, %v2516, %v2520
      %v2522 = vshrl.u32 %v2407, 16
      %v2524 = vor.u32 %v2522, %v2520
      %v2526 = vshll.u32 %v2408, 16
      %v2528 = vrot.slane %v2526, 1
      %v2529 = vsel %vm1051, %v2524, %v2528
      %v2530 = vshrl.u32 %v2408, 16
      %v2532 = vor.u32 %v2530, %v2528
      %v2534 = vshll.u32 %v2409, 16
      %v2536 = vrot.slane %v2534, 1
      %v2537 = vsel %vm1051, %v2532, %v2536
      %v2538 = vshrl.u32 %v2409, 16
      %v2540 = vor.u32 %v2538, %v2536
      %v2542 = vshll.u32 %v2410, 16
      %v2544 = vrot.slane %v2542, 1
      %v2545 = vsel %vm1051, %v2540, %v2544
      %v2546 = vshrl.u32 %v2410, 16
      %v2548 = vor.u32 %v2546, %v2544
      %v2550 = vshll.u32 %v2411, 16
      %v2552 = vrot.slane %v2550, 1
      %v2553 = vsel %vm1051, %v2548, %v2552
      %v2554 = vshrl.u32 %v2411, 16
      %v2556 = vor.u32 %v2554, %v2552
      %v2558 = vshll.u32 %v2412, 16
      %v2560 = vrot.slane %v2558, 1
      %v2561 = vsel %vm1051, %v2556, %v2560
      %v2622 = vunpack.c.l.b16 %v2414
      %v2623 = vunpack.c.l.b16 %v2415
      %v2624 = vunpack.c.l.b16 %v2416
      %v2625 = vunpack.c.l.b16 %v2417
      %v2626 = vunpack.c.l.b16 %v2418
      %v2627 = vunpack.c.l.b16 %v2419
      %v2628 = vunpack.c.l.b16 %v2420
      %v2629 = vunpack.c.l.b16 %v2421
      %v2630 = vunpack.c.l.b16 %v2422
      %v2631 = vunpack.c.l.b16 %v2423
      %v2632 = vunpack.c.l.b16 %v2424
      %v2633 = vunpack.c.l.b16 %v2425
      %v2634 = vunpack.c.l.b16 %v2426
      %v2635 = vunpack.c.l.b16 %v2427
      %v2636 = vunpack.c.l.b16 %v2428
      %v2637 = vunpack.c.l.b16 %v2429
      %v2638 = vunpack.c.l.b16 %v2430
      %v2639 = vunpack.c.l.b16 %v2431
      %v2640 = vunpack.c.l.b16 %v2432
      %v2641 = vunpack.c.l.b16 %v2433
      %v2642 = vunpack.c.l.b16 %v2434
      %v2643 = vunpack.c.l.b16 %v2435
      %v2644 = vunpack.c.l.b16 %v2436
      %v2645 = vunpack.c.l.b16 %v2437
      %v2646 = vunpack.c.l.b16 %v2438
      %v2647 = vunpack.c.l.b16 %v2439
      %v2648 = vunpack.c.l.b16 %v2440
      %v2649 = vunpack.c.l.b16 %v2441
      %v2650 = vunpack.c.l.b16 %v2442
      %v2651 = vunpack.c.l.b16 %v2443
      %v2652 = vunpack.c.l.b16 %v2444
      %v2653 = vunpack.c.l.b16 %v2445
      %v2654 = vunpack.c.l.b16 %v2446
      %v2655 = vunpack.c.l.b16 %v2447
      %v2656 = vunpack.c.l.b16 %v2448
      %v2657 = vunpack.c.l.b16 %v2449
      %v2658 = vunpack.c.l.b16 %v2450
      %v2659 = vunpack.c.l.b16 %v2451
      %v2660 = vunpack.c.l.b16 %v2452
      %v2661 = vunpack.c.l.b16 %v2453
      %v2662 = vunpack.c.l.b16 %v2454
      %v2663 = vunpack.c.l.b16 %v2455
      %v2664 = vunpack.c.l.b16 %v2456
      %v2665 = vunpack.c.l.b16 %v2457
      %v2666 = vunpack.c.l.b16 %v2458
      %v2667 = vunpack.c.l.b16 %v2459
      %v2668 = vunpack.c.l.b16 %v2460
      %v2669 = vunpack.c.l.b16 %v2461
      %v2670 = vpack.c.b16 %v2623, %v2622
      %v2671 = vpack.c.b16 %v2625, %v2624
      %v2672 = vpack.c.b16 %v2627, %v2626
      %v2673 = vpack.c.b16 %v2629, %v2628
      %v2674 = vpack.c.b16 %v2631, %v2630
      %v2675 = vpack.c.b16 %v2633, %v2632
      %v2676 = vpack.c.b16 %v2635, %v2634
      %v2677 = vpack.c.b16 %v2637, %v2636
      %v2678 = vpack.c.b16 %v2639, %v2638
      %v2679 = vpack.c.b16 %v2641, %v2640
      %v2680 = vpack.c.b16 %v2643, %v2642
      %v2681 = vpack.c.b16 %v2645, %v2644
      %v2682 = vpack.c.b16 %v2647, %v2646
      %v2683 = vpack.c.b16 %v2649, %v2648
      %v2684 = vpack.c.b16 %v2651, %v2650
      %v2685 = vpack.c.b16 %v2653, %v2652
      %v2686 = vpack.c.b16 %v2655, %v2654
      %v2687 = vpack.c.b16 %v2657, %v2656
      %v2688 = vpack.c.b16 %v2659, %v2658
      %v2689 = vpack.c.b16 %v2661, %v2660
      %v2690 = vpack.c.b16 %v2663, %v2662
      %v2691 = vpack.c.b16 %v2665, %v2664
      %v2692 = vpack.c.b16 %v2667, %v2666
      %v2693 = vpack.c.b16 %v2669, %v2668
      %2718 = vmatprep.subr.bf16.mxu0 0
      %2719 = vmatpush1.bf16.msra.mxu0 %v2670
      %2720 = vmatprep.subr.bf16.mxu0 0
      %2721 = vmatpush1.bf16.msra.mxu0 %v2671
      %2722 = vmatprep.subr.bf16.mxu0 0
      %2723 = vmatpush1.bf16.msra.mxu0 %v2672
      %2724 = vmatprep.subr.bf16.mxu0 0
      %2725 = vmatpush1.bf16.msra.mxu0 %v2673
      %2726 = vmatprep.subr.bf16.mxu0 0
      %2727 = vmatpush1.bf16.msra.mxu0 %v2674
      %2728 = vmatprep.subr.bf16.mxu0 0
      %2729 = vmatpush1.bf16.msra.mxu0 %v2675
      %2730 = vmatprep.subr.bf16.mxu0 0
      %2731 = vmatpush1.bf16.msra.mxu0 %v2676
      %2732 = vmatprep.subr.bf16.mxu0 0
      %2733 = vmatpush1.bf16.msra.mxu0 %v2677
      %2734 = vmatprep.subr.bf16.mxu0 0
      %2735 = vmatpush1.bf16.msra.mxu0 %v2678
      %2736 = vmatprep.subr.bf16.mxu0 0
      %2737 = vmatpush1.bf16.msra.mxu0 %v2679
      %2738 = vmatprep.subr.bf16.mxu0 0
      %2739 = vmatpush1.bf16.msra.mxu0 %v2680
      %2740 = vmatprep.subr.bf16.mxu0 0
      %2741 = vmatpush1.bf16.msra.mxu0 %v2681
      %2742 = vmatprep.subr.bf16.mxu0 0
      %2743 = vmatpush1.bf16.msra.mxu0 %v2682
      %2744 = vmatprep.subr.bf16.mxu0 0
      %2745 = vmatpush1.bf16.msra.mxu0 %v2683
      %2746 = vmatprep.subr.bf16.mxu0 0
      %2747 = vmatpush1.bf16.msra.mxu0 %v2684
      %2748 = vmatprep.subr.bf16.mxu0 0
      %2749 = vmatpush1.bf16.msra.mxu0 %v2685
      %2750 = vmatprep.mubr.bf16.mxu0 %v2481
      %2751 = vmatmul.mubr.bf16.gmra.mrb[0].mxu0 %v2473
      %v2752 = vpop.f32.mrb[0].mxu0
      %v2753 = vadd.f32 0.0, %v2752
      %v2754 = vpop.f32.mrb[0].mxu0
      %v2755 = vpop.f32.mrb[0].mxu0
      %v2756 = vadd.f32 0.0, %v2755
      %v2757 = vpop.f32.mrb[0].mxu0
      %2758 = vmatprep.mubr.bf16.mxu0 %v2489
      %2759 = vmatmul.mubr.bf16.gmra.mrb[0].mxu0 %v2481
      %v2760 = vpop.f32.mrb[0].mxu0
      %v2761 = vadd.f32 0.0, %v2760
      %v2762 = vpop.f32.mrb[0].mxu0
      %v2763 = vpop.f32.mrb[0].mxu0
      %v2764 = vadd.f32 0.0, %v2763
      %v2765 = vpop.f32.mrb[0].mxu0
      %2766 = vmatprep.mubr.bf16.mxu0 %v2497
      %2767 = vmatmul.mubr.bf16.gmra.mrb[0].mxu0 %v2489
      %v2768 = vpop.f32.mrb[0].mxu0
      %v2769 = vadd.f32 0.0, %v2768
      %v2770 = vpop.f32.mrb[0].mxu0
      %v2771 = vpop.f32.mrb[0].mxu0
      %v2772 = vadd.f32 0.0, %v2771
      %v2773 = vpop.f32.mrb[0].mxu0
      %2774 = vmatprep.mubr.bf16.mxu0 %v2505
      %2775 = vmatmul.mubr.bf16.gmra.mrb[0].mxu0 %v2497
      %v2776 = vpop.f32.mrb[0].mxu0
      %v2777 = vadd.f32 0.0, %v2776
      %v2778 = vpop.f32.mrb[0].mxu0
      %v2779 = vpop.f32.mrb[0].mxu0
      %v2780 = vadd.f32 0.0, %v2779
      %v2781 = vpop.f32.mrb[0].mxu0
      %2782 = vmatprep.mubr.bf16.mxu0 %v2513
      %2783 = vmatmul.mubr.bf16.gmra.mrb[0].mxu0 %v2505
      %v2784 = vpop.f32.mrb[0].mxu0
      %v2785 = vadd.f32 0.0, %v2784
      %v2786 = vpop.f32.mrb[0].mxu0
      %v2787 = vpop.f32.mrb[0].mxu0
      %v2788 = vadd.f32 0.0, %v2787
      %v2789 = vpop.f32.mrb[0].mxu0
      %2790 = vmatprep.mubr.bf16.mxu0 %v2521
      %2791 = vmatmul.mubr.bf16.gmra.mrb[0].mxu0 %v2513
      %v2792 = vpop.f32.mrb[0].mxu0
      %v2793 = vadd.f32 0.0, %v2792
      %v2794 = vpop.f32.mrb[0].mxu0
      %v2795 = vpop.f32.mrb[0].mxu0
      %v2796 = vadd.f32 0.0, %v2795
      %v2797 = vpop.f32.mrb[0].mxu0
      %2798 = vmatprep.mubr.bf16.mxu0 %v2529
      %2799 = vmatmul.mubr.bf16.gmra.mrb[0].mxu0 %v2521
      %v2800 = vpop.f32.mrb[0].mxu0
      %v2801 = vadd.f32 0.0, %v2800
      %v2802 = vpop.f32.mrb[0].mxu0
      %v2803 = vpop.f32.mrb[0].mxu0
      %v2804 = vadd.f32 0.0, %v2803
      %v2805 = vpop.f32.mrb[0].mxu0
      %2806 = vmatprep.mubr.bf16.mxu0 %v2537
      %2807 = vmatmul.mubr.bf16.gmra.mrb[0].mxu0 %v2529
      %v2808 = vpop.f32.mrb[0].mxu0
      %v2809 = vadd.f32 0.0, %v2808
      %v2810 = vpop.f32.mrb[0].mxu0
      %v2811 = vpop.f32.mrb[0].mxu0
      %v2812 = vadd.f32 0.0, %v2811
      %v2813 = vpop.f32.mrb[0].mxu0
      %2814 = vmatprep.mubr.bf16.mxu0 %v2545
      %2815 = vmatmul.mubr.bf16.gmra.mrb[0].mxu0 %v2537
      %v2816 = vpop.f32.mrb[0].mxu0
      %v2817 = vadd.f32 0.0, %v2816
      %v2818 = vpop.f32.mrb[0].mxu0
      %v2819 = vpop.f32.mrb[0].mxu0
      %v2820 = vadd.f32 0.0, %v2819
      %v2821 = vpop.f32.mrb[0].mxu0
      %2822 = vmatprep.mubr.bf16.mxu0 %v2553
      %2823 = vmatmul.mubr.bf16.gmra.mrb[0].mxu0 %v2545
      %v2824 = vpop.f32.mrb[0].mxu0
      %v2825 = vadd.f32 0.0, %v2824
      %v2826 = vpop.f32.mrb[0].mxu0
      %v2827 = vpop.f32.mrb[0].mxu0
      %v2828 = vadd.f32 0.0, %v2827
      %v2829 = vpop.f32.mrb[0].mxu0
      %2830 = vdwg.mxu0
      %2831 = vmatprep.subr.bf16.mxu0 0
      %2832 = vmatpush1.bf16.msra.mxu0 %v2686
      %2833 = vmatprep.subr.bf16.mxu0 0
      %2834 = vmatpush1.bf16.msra.mxu0 %v2687
      %2835 = vmatprep.subr.bf16.mxu0 0
      %2836 = vmatpush1.bf16.msra.mxu0 %v2688
      %2837 = vmatprep.subr.bf16.mxu0 0
      %2838 = vmatpush1.bf16.msra.mxu0 %v2689
      %2839 = vmatprep.subr.bf16.mxu0 0
      %2840 = vmatpush1.bf16.msra.mxu0 %v2690
      %2841 = vmatprep.subr.bf16.mxu0 0
      %2842 = vmatpush1.bf16.msra.mxu0 %v2691
      %2843 = vmatprep.subr.bf16.mxu0 0
      %2844 = vmatpush1.bf16.msra.mxu0 %v2692
      %2845 = vmatprep.subr.bf16.mxu0 0
      %2846 = vmatpush1.bf16.msra.mxu0 %v2693
      %2847 = vmatprep.subr.bf16.mxu0 0
      %2848 = vmatpush1.bf16.msra.mxu0 0
      %2849 = vmatprep.subr.bf16.mxu0 0
      %2850 = vmatpush1.bf16.msra.mxu0 0
      %2851 = vmatprep.subr.bf16.mxu0 0
      %2852 = vmatpush1.bf16.msra.mxu0 0
      %2853 = vmatprep.subr.bf16.mxu0 0
      %2854 = vmatpush1.bf16.msra.mxu0 0
      %2855 = vmatprep.subr.bf16.mxu0 0
      %2856 = vmatpush1.bf16.msra.mxu0 0
      %2857 = vmatprep.subr.bf16.mxu0 0
      %2858 = vmatpush1.bf16.msra.mxu0 0
      %2859 = vmatprep.subr.bf16.mxu0 0
      %2860 = vmatpush1.bf16.msra.mxu0 0
      %2861 = vmatprep.subr.bf16.mxu0 0
      %2862 = vmatpush1.bf16.msra.mxu0 0
      %2863 = vmatprep.mubr.bf16.mxu0 0
      %2864 = vmatmul.mubr.bf16.gmra.mrb[0].mxu0 %v2489
      %v2865 = vpop.f32.mrb[0].mxu0
      %v2866 = vadd.f32 %v2753, %v2865
      %v2867 = vpop.f32.mrb[0].mxu0
      %v2868 = vpop.f32.mrb[0].mxu0
      %v2869 = vadd.f32 %v2756, %v2868
      %v2870 = vpop.f32.mrb[0].mxu0
      %2871 = vmatprep.mubr.bf16.mxu0 0
      %2872 = vmatmul.mubr.bf16.gmra.mrb[0].mxu0 %v2497
      %v2873 = vpop.f32.mrb[0].mxu0
      %v2874 = vadd.f32 %v2761, %v2873
      %v2875 = vpop.f32.mrb[0].mxu0
      %v2876 = vpop.f32.mrb[0].mxu0
      %v2877 = vadd.f32 %v2764, %v2876
      %v2878 = vpop.f32.mrb[0].mxu0
      %2879 = vmatprep.mubr.bf16.mxu0 0
      %2880 = vmatmul.mubr.bf16.gmra.mrb[0].mxu0 %v2505
      %v2881 = vpop.f32.mrb[0].mxu0
      %v2882 = vadd.f32 %v2769, %v2881
      %v2883 = vpop.f32.mrb[0].mxu0
      %v2884 = vpop.f32.mrb[0].mxu0
      %v2885 = vadd.f32 %v2772, %v2884
      %v2886 = vpop.f32.mrb[0].mxu0
      %2887 = vmatprep.mubr.bf16.mxu0 0
      %2888 = vmatmul.mubr.bf16.gmra.mrb[0].mxu0 %v2513
      %v2889 = vpop.f32.mrb[0].mxu0
      %v2890 = vadd.f32 %v2777, %v2889
      %v2891 = vpop.f32.mrb[0].mxu0
      %v2892 = vpop.f32.mrb[0].mxu0
      %v2893 = vadd.f32 %v2780, %v2892
      %v2894 = vpop.f32.mrb[0].mxu0
      %2895 = vmatprep.mubr.bf16.mxu0 0
      %2896 = vmatmul.mubr.bf16.gmra.mrb[0].mxu0 %v2521
      %v2897 = vpop.f32.mrb[0].mxu0
      %v2898 = vadd.f32 %v2785, %v2897
      %v2899 = vpop.f32.mrb[0].mxu0
      %v2900 = vpop.f32.mrb[0].mxu0
      %v2901 = vadd.f32 %v2788, %v2900
      %v2902 = vpop.f32.mrb[0].mxu0
      %2903 = vmatprep.mubr.bf16.mxu0 0
      %2904 = vmatmul.mubr.bf16.gmra.mrb[0].mxu0 %v2529
      %v2905 = vpop.f32.mrb[0].mxu0
      %v2906 = vadd.f32 %v2793, %v2905
      %v2907 = vpop.f32.mrb[0].mxu0
      %v2908 = vpop.f32.mrb[0].mxu0
      %v2909 = vadd.f32 %v2796, %v2908
      %v2910 = vpop.f32.mrb[0].mxu0
      %2911 = vmatprep.mubr.bf16.mxu0 0
      %2912 = vmatmul.mubr.bf16.gmra.mrb[0].mxu0 %v2537
      %v2913 = vpop.f32.mrb[0].mxu0
      %v2914 = vadd.f32 %v2801, %v2913
      %v2915 = vpop.f32.mrb[0].mxu0
      %v2916 = vpop.f32.mrb[0].mxu0
      %v2917 = vadd.f32 %v2804, %v2916
      %v2918 = vpop.f32.mrb[0].mxu0
      %2919 = vmatprep.mubr.bf16.mxu0 0
      %2920 = vmatmul.mubr.bf16.gmra.mrb[0].mxu0 %v2545
      %v2921 = vpop.f32.mrb[0].mxu0
      %v2922 = vadd.f32 %v2809, %v2921
      %v2923 = vpop.f32.mrb[0].mxu0
      %v2924 = vpop.f32.mrb[0].mxu0
      %v2925 = vadd.f32 %v2812, %v2924
      %v2926 = vpop.f32.mrb[0].mxu0
      %2927 = vmatprep.mubr.bf16.mxu0 0
      %2928 = vmatmul.mubr.bf16.gmra.mrb[0].mxu0 %v2553
      %v2929 = vpop.f32.mrb[0].mxu0
      %v2930 = vadd.f32 %v2817, %v2929
      %v2931 = vpop.f32.mrb[0].mxu0
      %v2932 = vpop.f32.mrb[0].mxu0
      %v2933 = vadd.f32 %v2820, %v2932
      %v2934 = vpop.f32.mrb[0].mxu0
      %2935 = vmatprep.mubr.bf16.mxu0 0
      %2936 = vmatmul.mubr.bf16.gmra.mrb[0].mxu0 %v2561
      %v2937 = vpop.f32.mrb[0].mxu0
      %v2938 = vadd.f32 %v2825, %v2937
      %v2939 = vpop.f32.mrb[0].mxu0
      %v2940 = vpop.f32.mrb[0].mxu0
      %v2941 = vadd.f32 %v2828, %v2940
      %v2942 = vpop.f32.mrb[0].mxu0
      %2943 = vdwg.mxu0
      %v2944 = vadd.f32 %v2045, %v2866
      %v2945 = vadd.f32 %v2048, %v2869
      %v2946 = vadd.f32 %v2053, %v2874
      %v2947 = vadd.f32 %v2056, %v2877
      %v2948 = vadd.f32 %v2061, %v2882
      %v2949 = vadd.f32 %v2064, %v2885
      %v2950 = vadd.f32 %v2069, %v2890
      %v2951 = vadd.f32 %v2072, %v2893
      %v2952 = vadd.f32 %v2077, %v2898
      %v2953 = vadd.f32 %v2080, %v2901
      %v2954 = vadd.f32 %v2085, %v2906
      %v2955 = vadd.f32 %v2088, %v2909
      %v2956 = vadd.f32 %v2093, %v2914
      %v2957 = vadd.f32 %v2096, %v2917
      %v2958 = vadd.f32 %v2101, %v2922
      %v2959 = vadd.f32 %v2104, %v2925
      %v2960 = vadd.f32 %v2109, %v2930
      %v2961 = vadd.f32 %v2112, %v2933
      %v2962 = vadd.f32 %v2117, %v2938
      %v2963 = vadd.f32 %v2120, %v2941
      %v2964 = vld [vmem:[%s4] sm:$0x1]
      %v2966 = vlaneseq
      %v2967 = vshrl.u32 %v2966, 7
      %v2968 = vsub.s32 0, %v2967
      %v2969 = vrot.slane %v2964, %v2968
      %v2971 = vadd.f32 %v2944, %v2969
      %v2972 = vadd.f32 %v2945, %v2969
      %v2973 = vadd.f32 %v2946, %v2969
      %v2974 = vadd.f32 %v2947, %v2969
      %v2975 = vadd.f32 %v2948, %v2969
      %v2976 = vadd.f32 %v2949, %v2969
      %v2977 = vadd.f32 %v2950, %v2969
      %v2978 = vadd.f32 %v2951, %v2969
      %v2979 = vadd.f32 %v2952, %v2969
      %v2980 = vadd.f32 %v2953, %v2969
      %v2981 = vadd.f32 %v2954, %v2969
      %v2982 = vadd.f32 %v2955, %v2969
      %v2983 = vadd.f32 %v2956, %v2969
      %v2984 = vadd.f32 %v2957, %v2969
      %v2985 = vadd.f32 %v2958, %v2969
      %v2986 = vadd.f32 %v2959, %v2969
      %v2987 = vadd.f32 %v2960, %v2969
      %v2988 = vadd.f32 %v2961, %v2969
      %v2989 = vadd.f32 %v2962, %v2969
      %v2990 = vadd.f32 %v2963, %v2969
      %v2991 = vmax.f32 %v2971, 0.0
      %v2992 = vmax.f32 %v2972, 0.0
      %v2993 = vmax.f32 %v2973, 0.0
      %v2994 = vmax.f32 %v2974, 0.0
      %v2995 = vmax.f32 %v2975, 0.0
      %v2996 = vmax.f32 %v2976, 0.0
      %v2997 = vmax.f32 %v2977, 0.0
      %v2998 = vmax.f32 %v2978, 0.0
      %v2999 = vmax.f32 %v2979, 0.0
      %v3000 = vmax.f32 %v2980, 0.0
      %v3001 = vmax.f32 %v2981, 0.0
      %v3002 = vmax.f32 %v2982, 0.0
      %v3003 = vmax.f32 %v2983, 0.0
      %v3004 = vmax.f32 %v2984, 0.0
      %v3005 = vmax.f32 %v2985, 0.0
      %v3006 = vmax.f32 %v2986, 0.0
      %v3007 = vmax.f32 %v2987, 0.0
      %v3008 = vmax.f32 %v2988, 0.0
      %v3009 = vmax.f32 %v2989, 0.0
      %v3010 = vmax.f32 %v2990, 0.0
      %v3011 = vpack.c.bf16 %v2992, %v2991
      %v3012 = vpack.c.bf16 %v2994, %v2993
      %v3013 = vpack.c.bf16 %v2996, %v2995
      %v3014 = vpack.c.bf16 %v2998, %v2997
      %v3015 = vpack.c.bf16 %v3000, %v2999
      %v3016 = vpack.c.bf16 %v3002, %v3001
      %v3017 = vpack.c.bf16 %v3004, %v3003
      %v3018 = vpack.c.bf16 %v3006, %v3005
      %v3019 = vpack.c.bf16 %v3008, %v3007
      %v3020 = vpack.c.bf16 %v3010, %v3009
      %3021 = vst [vmem:[#allocation2 + $0x8] sm:$0xff] %v3011
      %3022 = vst [vmem:[#allocation2 + $0x10] sm:$0xff] %v3012
      %3023 = vst [vmem:[#allocation2 + $0x18] sm:$0xff] %v3013
      %3024 = vst [vmem:[#allocation2 + $0x20] sm:$0xff] %v3014
      %3025 = vst [vmem:[#allocation2 + $0x28] sm:$0xff] %v3015
      %3026 = vst [vmem:[#allocation2 + $0x30] sm:$0xff] %v3016
      %3027 = vst [vmem:[#allocation2 + $0x38] sm:$0xff] %v3017
      %3028 = vst [vmem:[#allocation2 + $0x40] sm:$0xff] %v3018
      %3029 = vst [vmem:[#allocation2 + $0x48] sm:$0xff] %v3019
      %3030 = vst [vmem:[#allocation2 + $0x50] sm:$0xff] %v3020
      // Predicated region
      $region57: #{basic_block_forward.1} parent=47 // pred_check
        %p3031 = pneg %p557
      $region58: #{basic_block_forward.1} parent=47 // pred_check_branch
        %3033 = sbr.rel (%p3031) target = $region60
      $region59: #{basic_block_forward.1} parent=47 // pred_region
        %3034 = vst [vmem:[#allocation2 + $0x8] sm:$0xff] 0
      $region60: #{basic_block_forward.1} parent=47 // pred_fallthru
        _
      // Predicated region
      $region61: #{basic_block_forward.1} parent=47 // pred_check
        %p3035 = pneg %p563
      $region62: #{basic_block_forward.1} parent=47 // pred_check_branch
        %3037 = sbr.rel (%p3035) target = $region64
      $region63: #{basic_block_forward.1} parent=47 // pred_region
        %3038 = vst [vmem:[#allocation2 + $0x50] sm:$0xff] 0
      $region64: #{basic_block_forward.1} parent=47 // pred_fallthru
        _
      %v3039 = vld [vmem:[#allocation2] sm:$0x80]
      %v3040 = vld [vmem:[#allocation2 + $0x8] sm:$0xff]
      %v3041 = vld [vmem:[#allocation2 + $0x10] sm:$0xff]
      %v3042 = vld [vmem:[#allocation2 + $0x18] sm:$0xff]
      %v3043 = vld [vmem:[#allocation2 + $0x20] sm:$0xff]
      %v3044 = vld [vmem:[#allocation2 + $0x28] sm:$0xff]
      %v3045 = vld [vmem:[#allocation2 + $0x30] sm:$0xff]
      %v3046 = vld [vmem:[#allocation2 + $0x38] sm:$0xff]
      %v3047 = vld [vmem:[#allocation2 + $0x40] sm:$0xff]
      %v3048 = vld [vmem:[#allocation2 + $0x48] sm:$0xff]
      %v3049 = vld [vmem:[#allocation2 + $0x50] sm:$0xff]
      %vm3050 = vcmp.ne.s16.totalorder %v1130, 0
      %v3051 = vsel %vm1147, %v3039, 0
      %v3052 = vsel %vm1148, %v3040, 0
      %v3053 = vsel %vm1149, %v3041, 0
      %v3054 = vsel %vm1150, %v3042, 0
      %v3055 = vsel %vm1151, %v3043, 0
      %v3056 = vsel %vm1152, %v3044, 0
      %v3057 = vsel %vm1153, %v3045, 0
      %v3058 = vsel %vm1154, %v3046, 0
      %v3059 = vsel %vm1155, %v3047, 0
      %v3060 = vsel %vm1156, %v3048, 0
      %v3061 = vsel %vm3050, %v3049, 0
      %v3062 = vld [vmem:[%s5] sm:$0xf]
      %v3063 = vld [vmem:[%s5 + $0x4] sm:$0xf]
      %v3064 = vld [vmem:[%s5 + $0x8] sm:$0xf]
      %v3065 = vld [vmem:[%s5 + $0xc] sm:$0xf]
      %v3066 = vld [vmem:[%s5 + $0x10] sm:$0xf]
      %v3067 = vld [vmem:[%s5 + $0x14] sm:$0xf]
      %v3068 = vld [vmem:[%s5 + $0x18] sm:$0xf]
      %v3069 = vld [vmem:[%s5 + $0x1c] sm:$0xf]
      %v3070 = vld [vmem:[%s5 + $0x20] sm:$0xf]
      %v3071 = vld [vmem:[%s5 + $0x24] sm:$0xf]
      %v3072 = vld [vmem:[%s5 + $0x28] sm:$0xf]
      %v3073 = vld [vmem:[%s5 + $0x2c] sm:$0xf]
      %v3074 = vld [vmem:[%s5 + $0x30] sm:$0xf]
      %v3075 = vld [vmem:[%s5 + $0x34] sm:$0xf]
      %v3076 = vld [vmem:[%s5 + $0x38] sm:$0xf]
      %v3077 = vld [vmem:[%s5 + $0x3c] sm:$0xf]
      %v3078 = vld [vmem:[%s5 + $0x40] sm:$0xf]
      %v3079 = vld [vmem:[%s5 + $0x44] sm:$0xf]
      %v3080 = vld [vmem:[%s5 + $0x48] sm:$0xf]
      %v3081 = vld [vmem:[%s5 + $0x4c] sm:$0xf]
      %v3082 = vld [vmem:[%s5 + $0x50] sm:$0xf]
      %v3083 = vld [vmem:[%s5 + $0x54] sm:$0xf]
      %v3084 = vld [vmem:[%s5 + $0x58] sm:$0xf]
      %v3085 = vld [vmem:[%s5 + $0x5c] sm:$0xf]
      %v3086 = vld [vmem:[%s5 + $0x60] sm:$0xf]
      %v3087 = vld [vmem:[%s5 + $0x64] sm:$0xf]
      %v3088 = vld [vmem:[%s5 + $0x68] sm:$0xf]
      %v3089 = vld [vmem:[%s5 + $0x6c] sm:$0xf]
      %v3090 = vld [vmem:[%s5 + $0x70] sm:$0xf]
      %v3091 = vld [vmem:[%s5 + $0x74] sm:$0xf]
      %v3092 = vld [vmem:[%s5 + $0x78] sm:$0xf]
      %v3093 = vld [vmem:[%s5 + $0x7c] sm:$0xf]
      %v3094 = vld [vmem:[%s5 + $0x80] sm:$0xf]
      %v3095 = vld [vmem:[%s5 + $0x84] sm:$0xf]
      %v3096 = vld [vmem:[%s5 + $0x88] sm:$0xf]
      %v3097 = vld [vmem:[%s5 + $0x8c] sm:$0xf]
      %v3098 = vld [vmem:[%s5 + $0x90] sm:$0xf]
      %v3099 = vld [vmem:[%s5 + $0x94] sm:$0xf]
      %v3100 = vld [vmem:[%s5 + $0x98] sm:$0xf]
      %v3101 = vld [vmem:[%s5 + $0x9c] sm:$0xf]
      %v3102 = vld [vmem:[%s5 + $0xa0] sm:$0xf]
      %v3103 = vld [vmem:[%s5 + $0xa4] sm:$0xf]
      %v3104 = vld [vmem:[%s5 + $0xa8] sm:$0xf]
      %v3105 = vld [vmem:[%s5 + $0xac] sm:$0xf]
      %v3106 = vld [vmem:[%s5 + $0xb0] sm:$0xf]
      %v3107 = vld [vmem:[%s5 + $0xb4] sm:$0xf]
      %v3108 = vld [vmem:[%s5 + $0xb8] sm:$0xf]
      %v3109 = vld [vmem:[%s5 + $0xbc] sm:$0xf]
      %s3110 = scalar_lea.vmem %s5, 192
      %v3111 = vld [vmem:[%s3110] sm:$0xf]
      %v3112 = vld [vmem:[%s3110 + $0x4] sm:$0xf]
      %v3113 = vld [vmem:[%s3110 + $0x8] sm:$0xf]
      %v3114 = vld [vmem:[%s3110 + $0xc] sm:$0xf]
      %v3115 = vld [vmem:[%s3110 + $0x10] sm:$0xf]
      %v3116 = vld [vmem:[%s3110 + $0x14] sm:$0xf]
      %v3117 = vld [vmem:[%s3110 + $0x18] sm:$0xf]
      %v3118 = vld [vmem:[%s3110 + $0x1c] sm:$0xf]
      %v3119 = vld [vmem:[%s3110 + $0x20] sm:$0xf]
      %v3120 = vld [vmem:[%s3110 + $0x24] sm:$0xf]
      %v3121 = vld [vmem:[%s3110 + $0x28] sm:$0xf]
      %v3122 = vld [vmem:[%s3110 + $0x2c] sm:$0xf]
      %v3123 = vld [vmem:[%s3110 + $0x30] sm:$0xf]
      %v3124 = vld [vmem:[%s3110 + $0x34] sm:$0xf]
      %v3125 = vld [vmem:[%s3110 + $0x38] sm:$0xf]
      %v3126 = vld [vmem:[%s3110 + $0x3c] sm:$0xf]
      %v3127 = vld [vmem:[%s3110 + $0x40] sm:$0xf]
      %v3128 = vld [vmem:[%s3110 + $0x44] sm:$0xf]
      %v3129 = vld [vmem:[%s3110 + $0x48] sm:$0xf]
      %v3130 = vld [vmem:[%s3110 + $0x4c] sm:$0xf]
      %v3131 = vld [vmem:[%s3110 + $0x50] sm:$0xf]
      %v3132 = vld [vmem:[%s3110 + $0x54] sm:$0xf]
      %v3133 = vld [vmem:[%s3110 + $0x58] sm:$0xf]
      %v3134 = vld [vmem:[%s3110 + $0x5c] sm:$0xf]
      %v3135 = vld [vmem:[%s3110 + $0x60] sm:$0xf]
      %v3136 = vld [vmem:[%s3110 + $0x64] sm:$0xf]
      %v3137 = vld [vmem:[%s3110 + $0x68] sm:$0xf]
      %v3138 = vld [vmem:[%s3110 + $0x6c] sm:$0xf]
      %v3139 = vld [vmem:[%s3110 + $0x70] sm:$0xf]
      %v3140 = vld [vmem:[%s3110 + $0x74] sm:$0xf]
      %v3141 = vld [vmem:[%s3110 + $0x78] sm:$0xf]
      %v3142 = vld [vmem:[%s3110 + $0x7c] sm:$0xf]
      %v3143 = vld [vmem:[%s3110 + $0x80] sm:$0xf]
      %v3144 = vld [vmem:[%s3110 + $0x84] sm:$0xf]
      %v3145 = vld [vmem:[%s3110 + $0x88] sm:$0xf]
      %v3146 = vld [vmem:[%s3110 + $0x8c] sm:$0xf]
      %v3147 = vld [vmem:[%s3110 + $0x90] sm:$0xf]
      %v3148 = vld [vmem:[%s3110 + $0x94] sm:$0xf]
      %v3149 = vld [vmem:[%s3110 + $0x98] sm:$0xf]
      %v3150 = vld [vmem:[%s3110 + $0x9c] sm:$0xf]
      %v3151 = vld [vmem:[%s3110 + $0xa0] sm:$0xf]
      %v3152 = vld [vmem:[%s3110 + $0xa4] sm:$0xf]
      %v3153 = vld [vmem:[%s3110 + $0xa8] sm:$0xf]
      %v3154 = vld [vmem:[%s3110 + $0xac] sm:$0xf]
      %v3155 = vld [vmem:[%s3110 + $0xb0] sm:$0xf]
      %v3156 = vld [vmem:[%s3110 + $0xb4] sm:$0xf]
      %v3157 = vld [vmem:[%s3110 + $0xb8] sm:$0xf]
      %v3158 = vld [vmem:[%s3110 + $0xbc] sm:$0xf]
      %v3207 = vunpack.c.l.b16 %v3111
      %v3208 = vunpack.c.l.b16 %v3112
      %v3209 = vunpack.c.l.b16 %v3113
      %v3210 = vunpack.c.l.b16 %v3114
      %v3211 = vunpack.c.l.b16 %v3115
      %v3212 = vunpack.c.l.b16 %v3116
      %v3213 = vunpack.c.l.b16 %v3117
      %v3214 = vunpack.c.l.b16 %v3118
      %v3215 = vunpack.c.l.b16 %v3119
      %v3216 = vunpack.c.l.b16 %v3120
      %v3217 = vunpack.c.l.b16 %v3121
      %v3218 = vunpack.c.l.b16 %v3122
      %v3219 = vunpack.c.l.b16 %v3123
      %v3220 = vunpack.c.l.b16 %v3124
      %v3221 = vunpack.c.l.b16 %v3125
      %v3222 = vunpack.c.l.b16 %v3126
      %v3223 = vunpack.c.l.b16 %v3127
      %v3224 = vunpack.c.l.b16 %v3128
      %v3225 = vunpack.c.l.b16 %v3129
      %v3226 = vunpack.c.l.b16 %v3130
      %v3227 = vunpack.c.l.b16 %v3131
      %v3228 = vunpack.c.l.b16 %v3132
      %v3229 = vunpack.c.l.b16 %v3133
      %v3230 = vunpack.c.l.b16 %v3134
      %v3231 = vunpack.c.l.b16 %v3135
      %v3232 = vunpack.c.l.b16 %v3136
      %v3233 = vunpack.c.l.b16 %v3137
      %v3234 = vunpack.c.l.b16 %v3138
      %v3235 = vunpack.c.l.b16 %v3139
      %v3236 = vunpack.c.l.b16 %v3140
      %v3237 = vunpack.c.l.b16 %v3141
      %v3238 = vunpack.c.l.b16 %v3142
      %v3239 = vunpack.c.l.b16 %v3143
      %v3240 = vunpack.c.l.b16 %v3144
      %v3241 = vunpack.c.l.b16 %v3145
      %v3242 = vunpack.c.l.b16 %v3146
      %v3243 = vunpack.c.l.b16 %v3147
      %v3244 = vunpack.c.l.b16 %v3148
      %v3245 = vunpack.c.l.b16 %v3149
      %v3246 = vunpack.c.l.b16 %v3150
      %v3247 = vunpack.c.l.b16 %v3151
      %v3248 = vunpack.c.l.b16 %v3152
      %v3249 = vunpack.c.l.b16 %v3153
      %v3250 = vunpack.c.l.b16 %v3154
      %v3251 = vunpack.c.l.b16 %v3155
      %v3252 = vunpack.c.l.b16 %v3156
      %v3253 = vunpack.c.l.b16 %v3157
      %v3254 = vunpack.c.l.b16 %v3158
      %v3255 = vpack.c.b16 %v3208, %v3207
      %v3256 = vpack.c.b16 %v3210, %v3209
      %v3257 = vpack.c.b16 %v3212, %v3211
      %v3258 = vpack.c.b16 %v3214, %v3213
      %v3259 = vpack.c.b16 %v3216, %v3215
      %v3260 = vpack.c.b16 %v3218, %v3217
      %v3261 = vpack.c.b16 %v3220, %v3219
      %v3262 = vpack.c.b16 %v3222, %v3221
      %v3263 = vpack.c.b16 %v3224, %v3223
      %v3264 = vpack.c.b16 %v3226, %v3225
      %v3265 = vpack.c.b16 %v3228, %v3227
      %v3266 = vpack.c.b16 %v3230, %v3229
      %v3267 = vpack.c.b16 %v3232, %v3231
      %v3268 = vpack.c.b16 %v3234, %v3233
      %v3269 = vpack.c.b16 %v3236, %v3235
      %v3270 = vpack.c.b16 %v3238, %v3237
      %v3271 = vpack.c.b16 %v3240, %v3239
      %v3272 = vpack.c.b16 %v3242, %v3241
      %v3273 = vpack.c.b16 %v3244, %v3243
      %v3274 = vpack.c.b16 %v3246, %v3245
      %v3275 = vpack.c.b16 %v3248, %v3247
      %v3276 = vpack.c.b16 %v3250, %v3249
      %v3277 = vpack.c.b16 %v3252, %v3251
      %v3278 = vpack.c.b16 %v3254, %v3253
      %3303 = vmatprep.subr.bf16.mxu0 0
      %3304 = vmatpush1.bf16.msra.mxu0 %v3255
      %3305 = vmatprep.subr.bf16.mxu0 0
      %3306 = vmatpush1.bf16.msra.mxu0 %v3256
      %3307 = vmatprep.subr.bf16.mxu0 0
      %3308 = vmatpush1.bf16.msra.mxu0 %v3257
      %3309 = vmatprep.subr.bf16.mxu0 0
      %3310 = vmatpush1.bf16.msra.mxu0 %v3258
      %3311 = vmatprep.subr.bf16.mxu0 0
      %3312 = vmatpush1.bf16.msra.mxu0 %v3259
      %3313 = vmatprep.subr.bf16.mxu0 0
      %3314 = vmatpush1.bf16.msra.mxu0 %v3260
      %3315 = vmatprep.subr.bf16.mxu0 0
      %3316 = vmatpush1.bf16.msra.mxu0 %v3261
      %3317 = vmatprep.subr.bf16.mxu0 0
      %3318 = vmatpush1.bf16.msra.mxu0 %v3262
      %3319 = vmatprep.subr.bf16.mxu0 0
      %3320 = vmatpush1.bf16.msra.mxu0 %v3263
      %3321 = vmatprep.subr.bf16.mxu0 0
      %3322 = vmatpush1.bf16.msra.mxu0 %v3264
      %3323 = vmatprep.subr.bf16.mxu0 0
      %3324 = vmatpush1.bf16.msra.mxu0 %v3265
      %3325 = vmatprep.subr.bf16.mxu0 0
      %3326 = vmatpush1.bf16.msra.mxu0 %v3266
      %3327 = vmatprep.subr.bf16.mxu0 0
      %3328 = vmatpush1.bf16.msra.mxu0 %v3267
      %3329 = vmatprep.subr.bf16.mxu0 0
      %3330 = vmatpush1.bf16.msra.mxu0 %v3268
      %3331 = vmatprep.subr.bf16.mxu0 0
      %3332 = vmatpush1.bf16.msra.mxu0 %v3269
      %3333 = vmatprep.subr.bf16.mxu0 0
      %3334 = vmatpush1.bf16.msra.mxu0 %v3270
      %3335 = vmatprep.mubr.bf16.mxu0 %v3041
      %3336 = vmatmul.mubr.bf16.gmra.mrb[0].mxu0 %v3040
      %v3337 = vpop.f32.mrb[0].mxu0
      %v3338 = vadd.f32 0.0, %v3337
      %v3339 = vpop.f32.mrb[0].mxu0
      %v3340 = vpop.f32.mrb[0].mxu0
      %v3341 = vadd.f32 0.0, %v3340
      %v3342 = vpop.f32.mrb[0].mxu0
      %3343 = vmatprep.mubr.bf16.mxu0 %v3042
      %3344 = vmatmul.mubr.bf16.gmra.mrb[0].mxu0 %v3041
      %v3345 = vpop.f32.mrb[0].mxu0
      %v3346 = vadd.f32 0.0, %v3345
      %v3347 = vpop.f32.mrb[0].mxu0
      %v3348 = vpop.f32.mrb[0].mxu0
      %v3349 = vadd.f32 0.0, %v3348
      %v3350 = vpop.f32.mrb[0].mxu0
      %3351 = vmatprep.mubr.bf16.mxu0 %v3043
      %3352 = vmatmul.mubr.bf16.gmra.mrb[0].mxu0 %v3042
      %v3353 = vpop.f32.mrb[0].mxu0
      %v3354 = vadd.f32 0.0, %v3353
      %v3355 = vpop.f32.mrb[0].mxu0
      %v3356 = vpop.f32.mrb[0].mxu0
      %v3357 = vadd.f32 0.0, %v3356
      %v3358 = vpop.f32.mrb[0].mxu0
      %3359 = vmatprep.mubr.bf16.mxu0 %v3044
      %3360 = vmatmul.mubr.bf16.gmra.mrb[0].mxu0 %v3043
      %v3361 = vpop.f32.mrb[0].mxu0
      %v3362 = vadd.f32 0.0, %v3361
      %v3363 = vpop.f32.mrb[0].mxu0
      %v3364 = vpop.f32.mrb[0].mxu0
      %v3365 = vadd.f32 0.0, %v3364
      %v3366 = vpop.f32.mrb[0].mxu0
      %3367 = vmatprep.mubr.bf16.mxu0 %v3045
      %3368 = vmatmul.mubr.bf16.gmra.mrb[0].mxu0 %v3044
      %v3369 = vpop.f32.mrb[0].mxu0
      %v3370 = vadd.f32 0.0, %v3369
      %v3371 = vpop.f32.mrb[0].mxu0
      %v3372 = vpop.f32.mrb[0].mxu0
      %v3373 = vadd.f32 0.0, %v3372
      %v3374 = vpop.f32.mrb[0].mxu0
      %3375 = vmatprep.mubr.bf16.mxu0 %v3046
      %3376 = vmatmul.mubr.bf16.gmra.mrb[0].mxu0 %v3045
      %v3377 = vpop.f32.mrb[0].mxu0
      %v3378 = vadd.f32 0.0, %v3377
      %v3379 = vpop.f32.mrb[0].mxu0
      %v3380 = vpop.f32.mrb[0].mxu0
      %v3381 = vadd.f32 0.0, %v3380
      %v3382 = vpop.f32.mrb[0].mxu0
      %3383 = vmatprep.mubr.bf16.mxu0 %v3047
      %3384 = vmatmul.mubr.bf16.gmra.mrb[0].mxu0 %v3046
      %v3385 = vpop.f32.mrb[0].mxu0
      %v3386 = vadd.f32 0.0, %v3385
      %v3387 = vpop.f32.mrb[0].mxu0
      %v3388 = vpop.f32.mrb[0].mxu0
      %v3389 = vadd.f32 0.0, %v3388
      %v3390 = vpop.f32.mrb[0].mxu0
      %3391 = vmatprep.mubr.bf16.mxu0 %v3048
      %3392 = vmatmul.mubr.bf16.gmra.mrb[0].mxu0 %v3047
      %v3393 = vpop.f32.mrb[0].mxu0
      %v3394 = vadd.f32 0.0, %v3393
      %v3395 = vpop.f32.mrb[0].mxu0
      %v3396 = vpop.f32.mrb[0].mxu0
      %v3397 = vadd.f32 0.0, %v3396
      %v3398 = vpop.f32.mrb[0].mxu0
      %3399 = vdwg.mxu0
      %3400 = vmatprep.subr.bf16.mxu0 0
      %3401 = vmatpush1.bf16.msra.mxu0 %v3271
      %3402 = vmatprep.subr.bf16.mxu0 0
      %3403 = vmatpush1.bf16.msra.mxu0 %v3272
      %3404 = vmatprep.subr.bf16.mxu0 0
      %3405 = vmatpush1.bf16.msra.mxu0 %v3273
      %3406 = vmatprep.subr.bf16.mxu0 0
      %3407 = vmatpush1.bf16.msra.mxu0 %v3274
      %3408 = vmatprep.subr.bf16.mxu0 0
      %3409 = vmatpush1.bf16.msra.mxu0 %v3275
      %3410 = vmatprep.subr.bf16.mxu0 0
      %3411 = vmatpush1.bf16.msra.mxu0 %v3276
      %3412 = vmatprep.subr.bf16.mxu0 0
      %3413 = vmatpush1.bf16.msra.mxu0 %v3277
      %3414 = vmatprep.subr.bf16.mxu0 0
      %3415 = vmatpush1.bf16.msra.mxu0 %v3278
      %3416 = vmatprep.subr.bf16.mxu0 0
      %3417 = vmatpush1.bf16.msra.mxu0 0
      %3418 = vmatprep.subr.bf16.mxu0 0
      %3419 = vmatpush1.bf16.msra.mxu0 0
      %3420 = vmatprep.subr.bf16.mxu0 0
      %3421 = vmatpush1.bf16.msra.mxu0 0
      %3422 = vmatprep.subr.bf16.mxu0 0
      %3423 = vmatpush1.bf16.msra.mxu0 0
      %3424 = vmatprep.subr.bf16.mxu0 0
      %3425 = vmatpush1.bf16.msra.mxu0 0
      %3426 = vmatprep.subr.bf16.mxu0 0
      %3427 = vmatpush1.bf16.msra.mxu0 0
      %3428 = vmatprep.subr.bf16.mxu0 0
      %3429 = vmatpush1.bf16.msra.mxu0 0
      %3430 = vmatprep.subr.bf16.mxu0 0
      %3431 = vmatpush1.bf16.msra.mxu0 0
      %3432 = vmatprep.mubr.bf16.mxu0 0
      %3433 = vmatmul.mubr.bf16.gmra.mrb[0].mxu0 %v3042
      %v3434 = vpop.f32.mrb[0].mxu0
      %v3435 = vadd.f32 %v3338, %v3434
      %v3436 = vpop.f32.mrb[0].mxu0
      %v3437 = vpop.f32.mrb[0].mxu0
      %v3438 = vadd.f32 %v3341, %v3437
      %v3439 = vpop.f32.mrb[0].mxu0
      %3440 = vmatprep.mubr.bf16.mxu0 0
      %3441 = vmatmul.mubr.bf16.gmra.mrb[0].mxu0 %v3043
      %v3442 = vpop.f32.mrb[0].mxu0
      %v3443 = vadd.f32 %v3346, %v3442
      %v3444 = vpop.f32.mrb[0].mxu0
      %v3445 = vpop.f32.mrb[0].mxu0
      %v3446 = vadd.f32 %v3349, %v3445
      %v3447 = vpop.f32.mrb[0].mxu0
      %3448 = vmatprep.mubr.bf16.mxu0 0
      %3449 = vmatmul.mubr.bf16.gmra.mrb[0].mxu0 %v3044
      %v3450 = vpop.f32.mrb[0].mxu0
      %v3451 = vadd.f32 %v3354, %v3450
      %v3452 = vpop.f32.mrb[0].mxu0
      %v3453 = vpop.f32.mrb[0].mxu0
      %v3454 = vadd.f32 %v3357, %v3453
      %v3455 = vpop.f32.mrb[0].mxu0
      %3456 = vmatprep.mubr.bf16.mxu0 0
      %3457 = vmatmul.mubr.bf16.gmra.mrb[0].mxu0 %v3045
      %v3458 = vpop.f32.mrb[0].mxu0
      %v3459 = vadd.f32 %v3362, %v3458
      %v3460 = vpop.f32.mrb[0].mxu0
      %v3461 = vpop.f32.mrb[0].mxu0
      %v3462 = vadd.f32 %v3365, %v3461
      %v3463 = vpop.f32.mrb[0].mxu0
      %3464 = vmatprep.mubr.bf16.mxu0 0
      %3465 = vmatmul.mubr.bf16.gmra.mrb[0].mxu0 %v3046
      %v3466 = vpop.f32.mrb[0].mxu0
      %v3467 = vadd.f32 %v3370, %v3466
      %v3468 = vpop.f32.mrb[0].mxu0
      %v3469 = vpop.f32.mrb[0].mxu0
      %v3470 = vadd.f32 %v3373, %v3469
      %v3471 = vpop.f32.mrb[0].mxu0
      %3472 = vmatprep.mubr.bf16.mxu0 0
      %3473 = vmatmul.mubr.bf16.gmra.mrb[0].mxu0 %v3047
      %v3474 = vpop.f32.mrb[0].mxu0
      %v3475 = vadd.f32 %v3378, %v3474
      %v3476 = vpop.f32.mrb[0].mxu0
      %v3477 = vpop.f32.mrb[0].mxu0
      %v3478 = vadd.f32 %v3381, %v3477
      %v3479 = vpop.f32.mrb[0].mxu0
      %3480 = vmatprep.mubr.bf16.mxu0 0
      %3481 = vmatmul.mubr.bf16.gmra.mrb[0].mxu0 %v3048
      %v3482 = vpop.f32.mrb[0].mxu0
      %v3483 = vadd.f32 %v3386, %v3482
      %v3484 = vpop.f32.mrb[0].mxu0
      %v3485 = vpop.f32.mrb[0].mxu0
      %v3486 = vadd.f32 %v3389, %v3485
      %v3487 = vpop.f32.mrb[0].mxu0
      %3488 = vmatprep.mubr.bf16.mxu0 0
      %3489 = vmatmul.mubr.bf16.gmra.mrb[0].mxu0 %v3049
      %v3490 = vpop.f32.mrb[0].mxu0
      %v3491 = vadd.f32 %v3394, %v3490
      %v3492 = vpop.f32.mrb[0].mxu0
      %v3493 = vpop.f32.mrb[0].mxu0
      %v3494 = vadd.f32 %v3397, %v3493
      %v3495 = vpop.f32.mrb[0].mxu0
      %3496 = vdwg.mxu0
      %v3498 = vshrl.u32 %v3051, 16
      %v3500 = vrot.slane %v3498, 7
      %v3502 = vshrl.u32 %v3052, 16
      %v3504 = vrot.slane %v3502, 7
      %v3505 = vshll.u32 %v3052, 16
      %v3507 = vor.u32 %v3504, %v3505
      %v3508 = vsel %vm1640, %v3500, %v3507
      %v3510 = vshrl.u32 %v3053, 16
      %v3512 = vrot.slane %v3510, 7
      %v3513 = vshll.u32 %v3053, 16
      %v3515 = vor.u32 %v3512, %v3513
      %v3516 = vsel %vm1640, %v3504, %v3515
      %v3518 = vshrl.u32 %v3054, 16
      %v3520 = vrot.slane %v3518, 7
      %v3521 = vshll.u32 %v3054, 16
      %v3523 = vor.u32 %v3520, %v3521
      %v3524 = vsel %vm1640, %v3512, %v3523
      %v3526 = vshrl.u32 %v3055, 16
      %v3528 = vrot.slane %v3526, 7
      %v3529 = vshll.u32 %v3055, 16
      %v3531 = vor.u32 %v3528, %v3529
      %v3532 = vsel %vm1640, %v3520, %v3531
      %v3534 = vshrl.u32 %v3056, 16
      %v3536 = vrot.slane %v3534, 7
      %v3537 = vshll.u32 %v3056, 16
      %v3539 = vor.u32 %v3536, %v3537
      %v3540 = vsel %vm1640, %v3528, %v3539
      %v3542 = vshrl.u32 %v3057, 16
      %v3544 = vrot.slane %v3542, 7
      %v3545 = vshll.u32 %v3057, 16
      %v3547 = vor.u32 %v3544, %v3545
      %v3548 = vsel %vm1640, %v3536, %v3547
      %v3550 = vshrl.u32 %v3058, 16
      %v3552 = vrot.slane %v3550, 7
      %v3553 = vshll.u32 %v3058, 16
      %v3555 = vor.u32 %v3552, %v3553
      %v3556 = vsel %vm1640, %v3544, %v3555
      %v3558 = vshrl.u32 %v3059, 16
      %v3560 = vrot.slane %v3558, 7
      %v3561 = vshll.u32 %v3059, 16
      %v3563 = vor.u32 %v3560, %v3561
      %v3564 = vsel %vm1640, %v3552, %v3563
      %v3566 = vshrl.u32 %v3060, 16
      %v3568 = vrot.slane %v3566, 7
      %v3569 = vshll.u32 %v3060, 16
      %v3571 = vor.u32 %v3568, %v3569
      %v3572 = vsel %vm1640, %v3560, %v3571
      %v3574 = vshrl.u32 %v3061, 16
      %v3576 = vrot.slane %v3574, 7
      %v3577 = vshll.u32 %v3061, 16
      %v3579 = vor.u32 %v3576, %v3577
      %v3580 = vsel %vm1640, %v3568, %v3579
      %v3639 = vunpack.c.l.b16 %v3062
      %v3640 = vunpack.c.l.b16 %v3063
      %v3641 = vunpack.c.l.b16 %v3064
      %v3642 = vunpack.c.l.b16 %v3065
      %v3643 = vunpack.c.l.b16 %v3066
      %v3644 = vunpack.c.l.b16 %v3067
      %v3645 = vunpack.c.l.b16 %v3068
      %v3646 = vunpack.c.l.b16 %v3069
      %v3647 = vunpack.c.l.b16 %v3070
      %v3648 = vunpack.c.l.b16 %v3071
      %v3649 = vunpack.c.l.b16 %v3072
      %v3650 = vunpack.c.l.b16 %v3073
      %v3651 = vunpack.c.l.b16 %v3074
      %v3652 = vunpack.c.l.b16 %v3075
      %v3653 = vunpack.c.l.b16 %v3076
      %v3654 = vunpack.c.l.b16 %v3077
      %v3655 = vunpack.c.l.b16 %v3078
      %v3656 = vunpack.c.l.b16 %v3079
      %v3657 = vunpack.c.l.b16 %v3080
      %v3658 = vunpack.c.l.b16 %v3081
      %v3659 = vunpack.c.l.b16 %v3082
      %v3660 = vunpack.c.l.b16 %v3083
      %v3661 = vunpack.c.l.b16 %v3084
      %v3662 = vunpack.c.l.b16 %v3085
      %v3663 = vunpack.c.l.b16 %v3086
      %v3664 = vunpack.c.l.b16 %v3087
      %v3665 = vunpack.c.l.b16 %v3088
      %v3666 = vunpack.c.l.b16 %v3089
      %v3667 = vunpack.c.l.b16 %v3090
      %v3668 = vunpack.c.l.b16 %v3091
      %v3669 = vunpack.c.l.b16 %v3092
      %v3670 = vunpack.c.l.b16 %v3093
      %v3671 = vunpack.c.l.b16 %v3094
      %v3672 = vunpack.c.l.b16 %v3095
      %v3673 = vunpack.c.l.b16 %v3096
      %v3674 = vunpack.c.l.b16 %v3097
      %v3675 = vunpack.c.l.b16 %v3098
      %v3676 = vunpack.c.l.b16 %v3099
      %v3677 = vunpack.c.l.b16 %v3100
      %v3678 = vunpack.c.l.b16 %v3101
      %v3679 = vunpack.c.l.b16 %v3102
      %v3680 = vunpack.c.l.b16 %v3103
      %v3681 = vunpack.c.l.b16 %v3104
      %v3682 = vunpack.c.l.b16 %v3105
      %v3683 = vunpack.c.l.b16 %v3106
      %v3684 = vunpack.c.l.b16 %v3107
      %v3685 = vunpack.c.l.b16 %v3108
      %v3686 = vunpack.c.l.b16 %v3109
      %v3687 = vpack.c.b16 %v3640, %v3639
      %v3688 = vpack.c.b16 %v3642, %v3641
      %v3689 = vpack.c.b16 %v3644, %v3643
      %v3690 = vpack.c.b16 %v3646, %v3645
      %v3691 = vpack.c.b16 %v3648, %v3647
      %v3692 = vpack.c.b16 %v3650, %v3649
      %v3693 = vpack.c.b16 %v3652, %v3651
      %v3694 = vpack.c.b16 %v3654, %v3653
      %v3695 = vpack.c.b16 %v3656, %v3655
      %v3696 = vpack.c.b16 %v3658, %v3657
      %v3697 = vpack.c.b16 %v3660, %v3659
      %v3698 = vpack.c.b16 %v3662, %v3661
      %v3699 = vpack.c.b16 %v3664, %v3663
      %v3700 = vpack.c.b16 %v3666, %v3665
      %v3701 = vpack.c.b16 %v3668, %v3667
      %v3702 = vpack.c.b16 %v3670, %v3669
      %v3703 = vpack.c.b16 %v3672, %v3671
      %v3704 = vpack.c.b16 %v3674, %v3673
      %v3705 = vpack.c.b16 %v3676, %v3675
      %v3706 = vpack.c.b16 %v3678, %v3677
      %v3707 = vpack.c.b16 %v3680, %v3679
      %v3708 = vpack.c.b16 %v3682, %v3681
      %v3709 = vpack.c.b16 %v3684, %v3683
      %v3710 = vpack.c.b16 %v3686, %v3685
      %3735 = vmatprep.subr.bf16.mxu0 0
      %3736 = vmatpush1.bf16.msra.mxu0 %v3687
      %3737 = vmatprep.subr.bf16.mxu0 0
      %3738 = vmatpush1.bf16.msra.mxu0 %v3688
      %3739 = vmatprep.subr.bf16.mxu0 0
      %3740 = vmatpush1.bf16.msra.mxu0 %v3689
      %3741 = vmatprep.subr.bf16.mxu0 0
      %3742 = vmatpush1.bf16.msra.mxu0 %v3690
      %3743 = vmatprep.subr.bf16.mxu0 0
      %3744 = vmatpush1.bf16.msra.mxu0 %v3691
      %3745 = vmatprep.subr.bf16.mxu0 0
      %3746 = vmatpush1.bf16.msra.mxu0 %v3692
      %3747 = vmatprep.subr.bf16.mxu0 0
      %3748 = vmatpush1.bf16.msra.mxu0 %v3693
      %3749 = vmatprep.subr.bf16.mxu0 0
      %3750 = vmatpush1.bf16.msra.mxu0 %v3694
      %3751 = vmatprep.subr.bf16.mxu0 0
      %3752 = vmatpush1.bf16.msra.mxu0 %v3695
      %3753 = vmatprep.subr.bf16.mxu0 0
      %3754 = vmatpush1.bf16.msra.mxu0 %v3696
      %3755 = vmatprep.subr.bf16.mxu0 0
      %3756 = vmatpush1.bf16.msra.mxu0 %v3697
      %3757 = vmatprep.subr.bf16.mxu0 0
      %3758 = vmatpush1.bf16.msra.mxu0 %v3698
      %3759 = vmatprep.subr.bf16.mxu0 0
      %3760 = vmatpush1.bf16.msra.mxu0 %v3699
      %3761 = vmatprep.subr.bf16.mxu0 0
      %3762 = vmatpush1.bf16.msra.mxu0 %v3700
      %3763 = vmatprep.subr.bf16.mxu0 0
      %3764 = vmatpush1.bf16.msra.mxu0 %v3701
      %3765 = vmatprep.subr.bf16.mxu0 0
      %3766 = vmatpush1.bf16.msra.mxu0 %v3702
      %3767 = vmatprep.mubr.bf16.mxu0 %v3516
      %3768 = vmatmul.mubr.bf16.gmra.mrb[0].mxu0 %v3508
      %v3769 = vpop.f32.mrb[0].mxu0
      %v3770 = vadd.f32 %v3435, %v3769
      %v3771 = vpop.f32.mrb[0].mxu0
      %v3772 = vpop.f32.mrb[0].mxu0
      %v3773 = vadd.f32 %v3438, %v3772
      %v3774 = vpop.f32.mrb[0].mxu0
      %3775 = vmatprep.mubr.bf16.mxu0 %v3524
      %3776 = vmatmul.mubr.bf16.gmra.mrb[0].mxu0 %v3516
      %v3777 = vpop.f32.mrb[0].mxu0
      %v3778 = vadd.f32 %v3443, %v3777
      %v3779 = vpop.f32.mrb[0].mxu0
      %v3780 = vpop.f32.mrb[0].mxu0
      %v3781 = vadd.f32 %v3446, %v3780
      %v3782 = vpop.f32.mrb[0].mxu0
      %3783 = vmatprep.mubr.bf16.mxu0 %v3532
      %3784 = vmatmul.mubr.bf16.gmra.mrb[0].mxu0 %v3524
      %v3785 = vpop.f32.mrb[0].mxu0
      %v3786 = vadd.f32 %v3451, %v3785
      %v3787 = vpop.f32.mrb[0].mxu0
      %v3788 = vpop.f32.mrb[0].mxu0
      %v3789 = vadd.f32 %v3454, %v3788
      %v3790 = vpop.f32.mrb[0].mxu0
      %3791 = vmatprep.mubr.bf16.mxu0 %v3540
      %3792 = vmatmul.mubr.bf16.gmra.mrb[0].mxu0 %v3532
      %v3793 = vpop.f32.mrb[0].mxu0
      %v3794 = vadd.f32 %v3459, %v3793
      %v3795 = vpop.f32.mrb[0].mxu0
      %v3796 = vpop.f32.mrb[0].mxu0
      %v3797 = vadd.f32 %v3462, %v3796
      %v3798 = vpop.f32.mrb[0].mxu0
      %3799 = vmatprep.mubr.bf16.mxu0 %v3548
      %3800 = vmatmul.mubr.bf16.gmra.mrb[0].mxu0 %v3540
      %v3801 = vpop.f32.mrb[0].mxu0
      %v3802 = vadd.f32 %v3467, %v3801
      %v3803 = vpop.f32.mrb[0].mxu0
      %v3804 = vpop.f32.mrb[0].mxu0
      %v3805 = vadd.f32 %v3470, %v3804
      %v3806 = vpop.f32.mrb[0].mxu0
      %3807 = vmatprep.mubr.bf16.mxu0 %v3556
      %3808 = vmatmul.mubr.bf16.gmra.mrb[0].mxu0 %v3548
      %v3809 = vpop.f32.mrb[0].mxu0
      %v3810 = vadd.f32 %v3475, %v3809
      %v3811 = vpop.f32.mrb[0].mxu0
      %v3812 = vpop.f32.mrb[0].mxu0
      %v3813 = vadd.f32 %v3478, %v3812
      %v3814 = vpop.f32.mrb[0].mxu0
      %3815 = vmatprep.mubr.bf16.mxu0 %v3564
      %3816 = vmatmul.mubr.bf16.gmra.mrb[0].mxu0 %v3556
      %v3817 = vpop.f32.mrb[0].mxu0
      %v3818 = vadd.f32 %v3483, %v3817
      %v3819 = vpop.f32.mrb[0].mxu0
      %v3820 = vpop.f32.mrb[0].mxu0
      %v3821 = vadd.f32 %v3486, %v3820
      %v3822 = vpop.f32.mrb[0].mxu0
      %3823 = vmatprep.mubr.bf16.mxu0 %v3572
      %3824 = vmatmul.mubr.bf16.gmra.mrb[0].mxu0 %v3564
      %v3825 = vpop.f32.mrb[0].mxu0
      %v3826 = vadd.f32 %v3491, %v3825
      %v3827 = vpop.f32.mrb[0].mxu0
      %v3828 = vpop.f32.mrb[0].mxu0
      %v3829 = vadd.f32 %v3494, %v3828
      %v3830 = vpop.f32.mrb[0].mxu0
      %3831 = vdwg.mxu0
      %3832 = vmatprep.subr.bf16.mxu0 0
      %3833 = vmatpush1.bf16.msra.mxu0 %v3703
      %3834 = vmatprep.subr.bf16.mxu0 0
      %3835 = vmatpush1.bf16.msra.mxu0 %v3704
      %3836 = vmatprep.subr.bf16.mxu0 0
      %3837 = vmatpush1.bf16.msra.mxu0 %v3705
      %3838 = vmatprep.subr.bf16.mxu0 0
      %3839 = vmatpush1.bf16.msra.mxu0 %v3706
      %3840 = vmatprep.subr.bf16.mxu0 0
      %3841 = vmatpush1.bf16.msra.mxu0 %v3707
      %3842 = vmatprep.subr.bf16.mxu0 0
      %3843 = vmatpush1.bf16.msra.mxu0 %v3708
      %3844 = vmatprep.subr.bf16.mxu0 0
      %3845 = vmatpush1.bf16.msra.mxu0 %v3709
      %3846 = vmatprep.subr.bf16.mxu0 0
      %3847 = vmatpush1.bf16.msra.mxu0 %v3710
      %3848 = vmatprep.subr.bf16.mxu0 0
      %3849 = vmatpush1.bf16.msra.mxu0 0
      %3850 = vmatprep.subr.bf16.mxu0 0
      %3851 = vmatpush1.bf16.msra.mxu0 0
      %3852 = vmatprep.subr.bf16.mxu0 0
      %3853 = vmatpush1.bf16.msra.mxu0 0
      %3854 = vmatprep.subr.bf16.mxu0 0
      %3855 = vmatpush1.bf16.msra.mxu0 0
      %3856 = vmatprep.subr.bf16.mxu0 0
      %3857 = vmatpush1.bf16.msra.mxu0 0
      %3858 = vmatprep.subr.bf16.mxu0 0
      %3859 = vmatpush1.bf16.msra.mxu0 0
      %3860 = vmatprep.subr.bf16.mxu0 0
      %3861 = vmatpush1.bf16.msra.mxu0 0
      %3862 = vmatprep.subr.bf16.mxu0 0
      %3863 = vmatpush1.bf16.msra.mxu0 0
      %3864 = vmatprep.mubr.bf16.mxu0 0
      %3865 = vmatmul.mubr.bf16.gmra.mrb[0].mxu0 %v3524
      %v3866 = vpop.f32.mrb[0].mxu0
      %v3867 = vadd.f32 %v3770, %v3866
      %v3868 = vpop.f32.mrb[0].mxu0
      %v3869 = vpop.f32.mrb[0].mxu0
      %v3870 = vadd.f32 %v3773, %v3869
      %v3871 = vpop.f32.mrb[0].mxu0
      %3872 = vmatprep.mubr.bf16.mxu0 0
      %3873 = vmatmul.mubr.bf16.gmra.mrb[0].mxu0 %v3532
      %v3874 = vpop.f32.mrb[0].mxu0
      %v3875 = vadd.f32 %v3778, %v3874
      %v3876 = vpop.f32.mrb[0].mxu0
      %v3877 = vpop.f32.mrb[0].mxu0
      %v3878 = vadd.f32 %v3781, %v3877
      %v3879 = vpop.f32.mrb[0].mxu0
      %3880 = vmatprep.mubr.bf16.mxu0 0
      %3881 = vmatmul.mubr.bf16.gmra.mrb[0].mxu0 %v3540
      %v3882 = vpop.f32.mrb[0].mxu0
      %v3883 = vadd.f32 %v3786, %v3882
      %v3884 = vpop.f32.mrb[0].mxu0
      %v3885 = vpop.f32.mrb[0].mxu0
      %v3886 = vadd.f32 %v3789, %v3885
      %v3887 = vpop.f32.mrb[0].mxu0
      %3888 = vmatprep.mubr.bf16.mxu0 0
      %3889 = vmatmul.mubr.bf16.gmra.mrb[0].mxu0 %v3548
      %v3890 = vpop.f32.mrb[0].mxu0
      %v3891 = vadd.f32 %v3794, %v3890
      %v3892 = vpop.f32.mrb[0].mxu0
      %v3893 = vpop.f32.mrb[0].mxu0
      %v3894 = vadd.f32 %v3797, %v3893
      %v3895 = vpop.f32.mrb[0].mxu0
      %3896 = vmatprep.mubr.bf16.mxu0 0
      %3897 = vmatmul.mubr.bf16.gmra.mrb[0].mxu0 %v3556
      %v3898 = vpop.f32.mrb[0].mxu0
      %v3899 = vadd.f32 %v3802, %v3898
      %v3900 = vpop.f32.mrb[0].mxu0
      %v3901 = vpop.f32.mrb[0].mxu0
      %v3902 = vadd.f32 %v3805, %v3901
      %v3903 = vpop.f32.mrb[0].mxu0
      %3904 = vmatprep.mubr.bf16.mxu0 0
      %3905 = vmatmul.mubr.bf16.gmra.mrb[0].mxu0 %v3564
      %v3906 = vpop.f32.mrb[0].mxu0
      %v3907 = vadd.f32 %v3810, %v3906
      %v3908 = vpop.f32.mrb[0].mxu0
      %v3909 = vpop.f32.mrb[0].mxu0
      %v3910 = vadd.f32 %v3813, %v3909
      %v3911 = vpop.f32.mrb[0].mxu0
      %3912 = vmatprep.mubr.bf16.mxu0 0
      %3913 = vmatmul.mubr.bf16.gmra.mrb[0].mxu0 %v3572
      %v3914 = vpop.f32.mrb[0].mxu0
      %v3915 = vadd.f32 %v3818, %v3914
      %v3916 = vpop.f32.mrb[0].mxu0
      %v3917 = vpop.f32.mrb[0].mxu0
      %v3918 = vadd.f32 %v3821, %v3917
      %v3919 = vpop.f32.mrb[0].mxu0
      %3920 = vmatprep.mubr.bf16.mxu0 0
      %3921 = vmatmul.mubr.bf16.gmra.mrb[0].mxu0 %v3580
      %v3922 = vpop.f32.mrb[0].mxu0
      %v3923 = vadd.f32 %v3826, %v3922
      %v3924 = vpop.f32.mrb[0].mxu0
      %v3925 = vpop.f32.mrb[0].mxu0
      %v3926 = vadd.f32 %v3829, %v3925
      %v3927 = vpop.f32.mrb[0].mxu0
      %3928 = vdwg.mxu0
      %v3929 = vld [vmem:[#allocation2 + $0x8] sm:$0xff]
      %v3930 = vld [vmem:[#allocation2 + $0x10] sm:$0xff]
      %v3931 = vld [vmem:[#allocation2 + $0x18] sm:$0xff]
      %v3932 = vld [vmem:[#allocation2 + $0x20] sm:$0xff]
      %v3933 = vld [vmem:[#allocation2 + $0x28] sm:$0xff]
      %v3934 = vld [vmem:[#allocation2 + $0x30] sm:$0xff]
      %v3935 = vld [vmem:[#allocation2 + $0x38] sm:$0xff]
      %v3936 = vld [vmem:[#allocation2 + $0x40] sm:$0xff]
      %v3937 = vld [vmem:[#allocation2 + $0x48] sm:$0xff]
      %v3938 = vld [vmem:[#allocation2 + $0x50] sm:$0xff]
      %v3939 = vld [vmem:[#allocation2 + $0x58] sm:$0x1]
      %vm3940 = vcmp.ne.s16.totalorder %v2366, 0
      %v3941 = vsel %vm2387, %v3929, 0
      %v3942 = vsel %vm2388, %v3930, 0
      %v3943 = vsel %vm2389, %v3931, 0
      %v3944 = vsel %vm2390, %v3932, 0
      %v3945 = vsel %vm2391, %v3933, 0
      %v3946 = vsel %vm2392, %v3934, 0
      %v3947 = vsel %vm2393, %v3935, 0
      %v3948 = vsel %vm2394, %v3936, 0
      %v3949 = vsel %vm2395, %v3937, 0
      %v3950 = vsel %vm2396, %v3938, 0
      %v3951 = vsel %vm3940, %v3939, 0
      %s3952 = scalar_lea.vmem %s5, 384
      %v3953 = vld [vmem:[%s3952] sm:$0xf]
      %v3954 = vld [vmem:[%s3952 + $0x4] sm:$0xf]
      %v3955 = vld [vmem:[%s3952 + $0x8] sm:$0xf]
      %v3956 = vld [vmem:[%s3952 + $0xc] sm:$0xf]
      %v3957 = vld [vmem:[%s3952 + $0x10] sm:$0xf]
      %v3958 = vld [vmem:[%s3952 + $0x14] sm:$0xf]
      %v3959 = vld [vmem:[%s3952 + $0x18] sm:$0xf]
      %v3960 = vld [vmem:[%s3952 + $0x1c] sm:$0xf]
      %v3961 = vld [vmem:[%s3952 + $0x20] sm:$0xf]
      %v3962 = vld [vmem:[%s3952 + $0x24] sm:$0xf]
      %v3963 = vld [vmem:[%s3952 + $0x28] sm:$0xf]
      %v3964 = vld [vmem:[%s3952 + $0x2c] sm:$0xf]
      %v3965 = vld [vmem:[%s3952 + $0x30] sm:$0xf]
      %v3966 = vld [vmem:[%s3952 + $0x34] sm:$0xf]
      %v3967 = vld [vmem:[%s3952 + $0x38] sm:$0xf]
      %v3968 = vld [vmem:[%s3952 + $0x3c] sm:$0xf]
      %v3969 = vld [vmem:[%s3952 + $0x40] sm:$0xf]
      %v3970 = vld [vmem:[%s3952 + $0x44] sm:$0xf]
      %v3971 = vld [vmem:[%s3952 + $0x48] sm:$0xf]
      %v3972 = vld [vmem:[%s3952 + $0x4c] sm:$0xf]
      %v3973 = vld [vmem:[%s3952 + $0x50] sm:$0xf]
      %v3974 = vld [vmem:[%s3952 + $0x54] sm:$0xf]
      %v3975 = vld [vmem:[%s3952 + $0x58] sm:$0xf]
      %v3976 = vld [vmem:[%s3952 + $0x5c] sm:$0xf]
      %v3977 = vld [vmem:[%s3952 + $0x60] sm:$0xf]
      %v3978 = vld [vmem:[%s3952 + $0x64] sm:$0xf]
      %v3979 = vld [vmem:[%s3952 + $0x68] sm:$0xf]
      %v3980 = vld [vmem:[%s3952 + $0x6c] sm:$0xf]
      %v3981 = vld [vmem:[%s3952 + $0x70] sm:$0xf]
      %v3982 = vld [vmem:[%s3952 + $0x74] sm:$0xf]
      %v3983 = vld [vmem:[%s3952 + $0x78] sm:$0xf]
      %v3984 = vld [vmem:[%s3952 + $0x7c] sm:$0xf]
      %v3985 = vld [vmem:[%s3952 + $0x80] sm:$0xf]
      %v3986 = vld [vmem:[%s3952 + $0x84] sm:$0xf]
      %v3987 = vld [vmem:[%s3952 + $0x88] sm:$0xf]
      %v3988 = vld [vmem:[%s3952 + $0x8c] sm:$0xf]
      %v3989 = vld [vmem:[%s3952 + $0x90] sm:$0xf]
      %v3990 = vld [vmem:[%s3952 + $0x94] sm:$0xf]
      %v3991 = vld [vmem:[%s3952 + $0x98] sm:$0xf]
      %v3992 = vld [vmem:[%s3952 + $0x9c] sm:$0xf]
      %v3993 = vld [vmem:[%s3952 + $0xa0] sm:$0xf]
      %v3994 = vld [vmem:[%s3952 + $0xa4] sm:$0xf]
      %v3995 = vld [vmem:[%s3952 + $0xa8] sm:$0xf]
      %v3996 = vld [vmem:[%s3952 + $0xac] sm:$0xf]
      %v3997 = vld [vmem:[%s3952 + $0xb0] sm:$0xf]
      %v3998 = vld [vmem:[%s3952 + $0xb4] sm:$0xf]
      %v3999 = vld [vmem:[%s3952 + $0xb8] sm:$0xf]
      %v4000 = vld [vmem:[%s3952 + $0xbc] sm:$0xf]
      %v4002 = vshrl.u32 %v3941, 16
      %v4004 = vshll.u32 %v3941, 16
      %v4006 = vrot.slane %v4004, 1
      %v4007 = vor.u32 %v4002, %v4006
      %v4009 = vshll.u32 %v3942, 16
      %v4011 = vrot.slane %v4009, 1
      %v4012 = vsel %vm1051, %v4007, %v4011
      %v4013 = vshrl.u32 %v3942, 16
      %v4015 = vor.u32 %v4013, %v4011
      %v4017 = vshll.u32 %v3943, 16
      %v4019 = vrot.slane %v4017, 1
      %v4020 = vsel %vm1051, %v4015, %v4019
      %v4021 = vshrl.u32 %v3943, 16
      %v4023 = vor.u32 %v4021, %v4019
      %v4025 = vshll.u32 %v3944, 16
      %v4027 = vrot.slane %v4025, 1
      %v4028 = vsel %vm1051, %v4023, %v4027
      %v4029 = vshrl.u32 %v3944, 16
      %v4031 = vor.u32 %v4029, %v4027
      %v4033 = vshll.u32 %v3945, 16
      %v4035 = vrot.slane %v4033, 1
      %v4036 = vsel %vm1051, %v4031, %v4035
      %v4037 = vshrl.u32 %v3945, 16
      %v4039 = vor.u32 %v4037, %v4035
      %v4041 = vshll.u32 %v3946, 16
      %v4043 = vrot.slane %v4041, 1
      %v4044 = vsel %vm1051, %v4039, %v4043
      %v4045 = vshrl.u32 %v3946, 16
      %v4047 = vor.u32 %v4045, %v4043
      %v4049 = vshll.u32 %v3947, 16
      %v4051 = vrot.slane %v4049, 1
      %v4052 = vsel %vm1051, %v4047, %v4051
      %v4053 = vshrl.u32 %v3947, 16
      %v4055 = vor.u32 %v4053, %v4051
      %v4057 = vshll.u32 %v3948, 16
      %v4059 = vrot.slane %v4057, 1
      %v4060 = vsel %vm1051, %v4055, %v4059
      %v4061 = vshrl.u32 %v3948, 16
      %v4063 = vor.u32 %v4061, %v4059
      %v4065 = vshll.u32 %v3949, 16
      %v4067 = vrot.slane %v4065, 1
      %v4068 = vsel %vm1051, %v4063, %v4067
      %v4069 = vshrl.u32 %v3949, 16
      %v4071 = vor.u32 %v4069, %v4067
      %v4073 = vshll.u32 %v3950, 16
      %v4075 = vrot.slane %v4073, 1
      %v4076 = vsel %vm1051, %v4071, %v4075
      %v4077 = vshrl.u32 %v3950, 16
      %v4079 = vor.u32 %v4077, %v4075
      %v4081 = vshll.u32 %v3951, 16
      %v4083 = vrot.slane %v4081, 1
      %v4084 = vsel %vm1051, %v4079, %v4083
      %v4143 = vunpack.c.l.b16 %v3953
      %v4144 = vunpack.c.l.b16 %v3954
      %v4145 = vunpack.c.l.b16 %v3955
      %v4146 = vunpack.c.l.b16 %v3956
      %v4147 = vunpack.c.l.b16 %v3957
      %v4148 = vunpack.c.l.b16 %v3958
      %v4149 = vunpack.c.l.b16 %v3959
      %v4150 = vunpack.c.l.b16 %v3960
      %v4151 = vunpack.c.l.b16 %v3961
      %v4152 = vunpack.c.l.b16 %v3962
      %v4153 = vunpack.c.l.b16 %v3963
      %v4154 = vunpack.c.l.b16 %v3964
      %v4155 = vunpack.c.l.b16 %v3965
      %v4156 = vunpack.c.l.b16 %v3966
      %v4157 = vunpack.c.l.b16 %v3967
      %v4158 = vunpack.c.l.b16 %v3968
      %v4159 = vunpack.c.l.b16 %v3969
      %v4160 = vunpack.c.l.b16 %v3970
      %v4161 = vunpack.c.l.b16 %v3971
      %v4162 = vunpack.c.l.b16 %v3972
      %v4163 = vunpack.c.l.b16 %v3973
      %v4164 = vunpack.c.l.b16 %v3974
      %v4165 = vunpack.c.l.b16 %v3975
      %v4166 = vunpack.c.l.b16 %v3976
      %v4167 = vunpack.c.l.b16 %v3977
      %v4168 = vunpack.c.l.b16 %v3978
      %v4169 = vunpack.c.l.b16 %v3979
      %v4170 = vunpack.c.l.b16 %v3980
      %v4171 = vunpack.c.l.b16 %v3981
      %v4172 = vunpack.c.l.b16 %v3982
      %v4173 = vunpack.c.l.b16 %v3983
      %v4174 = vunpack.c.l.b16 %v3984
      %v4175 = vunpack.c.l.b16 %v3985
      %v4176 = vunpack.c.l.b16 %v3986
      %v4177 = vunpack.c.l.b16 %v3987
      %v4178 = vunpack.c.l.b16 %v3988
      %v4179 = vunpack.c.l.b16 %v3989
      %v4180 = vunpack.c.l.b16 %v3990
      %v4181 = vunpack.c.l.b16 %v3991
      %v4182 = vunpack.c.l.b16 %v3992
      %v4183 = vunpack.c.l.b16 %v3993
      %v4184 = vunpack.c.l.b16 %v3994
      %v4185 = vunpack.c.l.b16 %v3995
      %v4186 = vunpack.c.l.b16 %v3996
      %v4187 = vunpack.c.l.b16 %v3997
      %v4188 = vunpack.c.l.b16 %v3998
      %v4189 = vunpack.c.l.b16 %v3999
      %v4190 = vunpack.c.l.b16 %v4000
      %v4191 = vpack.c.b16 %v4144, %v4143
      %v4192 = vpack.c.b16 %v4146, %v4145
      %v4193 = vpack.c.b16 %v4148, %v4147
      %v4194 = vpack.c.b16 %v4150, %v4149
      %v4195 = vpack.c.b16 %v4152, %v4151
      %v4196 = vpack.c.b16 %v4154, %v4153
      %v4197 = vpack.c.b16 %v4156, %v4155
      %v4198 = vpack.c.b16 %v4158, %v4157
      %v4199 = vpack.c.b16 %v4160, %v4159
      %v4200 = vpack.c.b16 %v4162, %v4161
      %v4201 = vpack.c.b16 %v4164, %v4163
      %v4202 = vpack.c.b16 %v4166, %v4165
      %v4203 = vpack.c.b16 %v4168, %v4167
      %v4204 = vpack.c.b16 %v4170, %v4169
      %v4205 = vpack.c.b16 %v4172, %v4171
      %v4206 = vpack.c.b16 %v4174, %v4173
      %v4207 = vpack.c.b16 %v4176, %v4175
      %v4208 = vpack.c.b16 %v4178, %v4177
      %v4209 = vpack.c.b16 %v4180, %v4179
      %v4210 = vpack.c.b16 %v4182, %v4181
      %v4211 = vpack.c.b16 %v4184, %v4183
      %v4212 = vpack.c.b16 %v4186, %v4185
      %v4213 = vpack.c.b16 %v4188, %v4187
      %v4214 = vpack.c.b16 %v4190, %v4189
      %4239 = vmatprep.subr.bf16.mxu0 0
      %4240 = vmatpush1.bf16.msra.mxu0 %v4191
      %4241 = vmatprep.subr.bf16.mxu0 0
      %4242 = vmatpush1.bf16.msra.mxu0 %v4192
      %4243 = vmatprep.subr.bf16.mxu0 0
      %4244 = vmatpush1.bf16.msra.mxu0 %v4193
      %4245 = vmatprep.subr.bf16.mxu0 0
      %4246 = vmatpush1.bf16.msra.mxu0 %v4194
      %4247 = vmatprep.subr.bf16.mxu0 0
      %4248 = vmatpush1.bf16.msra.mxu0 %v4195
      %4249 = vmatprep.subr.bf16.mxu0 0
      %4250 = vmatpush1.bf16.msra.mxu0 %v4196
      %4251 = vmatprep.subr.bf16.mxu0 0
      %4252 = vmatpush1.bf16.msra.mxu0 %v4197
      %4253 = vmatprep.subr.bf16.mxu0 0
      %4254 = vmatpush1.bf16.msra.mxu0 %v4198
      %4255 = vmatprep.subr.bf16.mxu0 0
      %4256 = vmatpush1.bf16.msra.mxu0 %v4199
      %4257 = vmatprep.subr.bf16.mxu0 0
      %4258 = vmatpush1.bf16.msra.mxu0 %v4200
      %4259 = vmatprep.subr.bf16.mxu0 0
      %4260 = vmatpush1.bf16.msra.mxu0 %v4201
      %4261 = vmatprep.subr.bf16.mxu0 0
      %4262 = vmatpush1.bf16.msra.mxu0 %v4202
      %4263 = vmatprep.subr.bf16.mxu0 0
      %4264 = vmatpush1.bf16.msra.mxu0 %v4203
      %4265 = vmatprep.subr.bf16.mxu0 0
      %4266 = vmatpush1.bf16.msra.mxu0 %v4204
      %4267 = vmatprep.subr.bf16.mxu0 0
      %4268 = vmatpush1.bf16.msra.mxu0 %v4205
      %4269 = vmatprep.subr.bf16.mxu0 0
      %4270 = vmatpush1.bf16.msra.mxu0 %v4206
      %4271 = vmatprep.mubr.bf16.mxu0 %v4020
      %4272 = vmatmul.mubr.bf16.gmra.mrb[0].mxu0 %v4012
      %v4273 = vpop.f32.mrb[0].mxu0
      %v4274 = vadd.f32 0.0, %v4273
      %v4275 = vpop.f32.mrb[0].mxu0
      %v4276 = vpop.f32.mrb[0].mxu0
      %v4277 = vadd.f32 0.0, %v4276
      %v4278 = vpop.f32.mrb[0].mxu0
      %4279 = vmatprep.mubr.bf16.mxu0 %v4028
      %4280 = vmatmul.mubr.bf16.gmra.mrb[0].mxu0 %v4020
      %v4281 = vpop.f32.mrb[0].mxu0
      %v4282 = vadd.f32 0.0, %v4281
      %v4283 = vpop.f32.mrb[0].mxu0
      %v4284 = vpop.f32.mrb[0].mxu0
      %v4285 = vadd.f32 0.0, %v4284
      %v4286 = vpop.f32.mrb[0].mxu0
      %4287 = vmatprep.mubr.bf16.mxu0 %v4036
      %4288 = vmatmul.mubr.bf16.gmra.mrb[0].mxu0 %v4028
      %v4289 = vpop.f32.mrb[0].mxu0
      %v4290 = vadd.f32 0.0, %v4289
      %v4291 = vpop.f32.mrb[0].mxu0
      %v4292 = vpop.f32.mrb[0].mxu0
      %v4293 = vadd.f32 0.0, %v4292
      %v4294 = vpop.f32.mrb[0].mxu0
      %4295 = vmatprep.mubr.bf16.mxu0 %v4044
      %4296 = vmatmul.mubr.bf16.gmra.mrb[0].mxu0 %v4036
      %v4297 = vpop.f32.mrb[0].mxu0
      %v4298 = vadd.f32 0.0, %v4297
      %v4299 = vpop.f32.mrb[0].mxu0
      %v4300 = vpop.f32.mrb[0].mxu0
      %v4301 = vadd.f32 0.0, %v4300
      %v4302 = vpop.f32.mrb[0].mxu0
      %4303 = vmatprep.mubr.bf16.mxu0 %v4052
      %4304 = vmatmul.mubr.bf16.gmra.mrb[0].mxu0 %v4044
      %v4305 = vpop.f32.mrb[0].mxu0
      %v4306 = vadd.f32 0.0, %v4305
      %v4307 = vpop.f32.mrb[0].mxu0
      %v4308 = vpop.f32.mrb[0].mxu0
      %v4309 = vadd.f32 0.0, %v4308
      %v4310 = vpop.f32.mrb[0].mxu0
      %4311 = vmatprep.mubr.bf16.mxu0 %v4060
      %4312 = vmatmul.mubr.bf16.gmra.mrb[0].mxu0 %v4052
      %v4313 = vpop.f32.mrb[0].mxu0
      %v4314 = vadd.f32 0.0, %v4313
      %v4315 = vpop.f32.mrb[0].mxu0
      %v4316 = vpop.f32.mrb[0].mxu0
      %v4317 = vadd.f32 0.0, %v4316
      %v4318 = vpop.f32.mrb[0].mxu0
      %4319 = vmatprep.mubr.bf16.mxu0 %v4068
      %4320 = vmatmul.mubr.bf16.gmra.mrb[0].mxu0 %v4060
      %v4321 = vpop.f32.mrb[0].mxu0
      %v4322 = vadd.f32 0.0, %v4321
      %v4323 = vpop.f32.mrb[0].mxu0
      %v4324 = vpop.f32.mrb[0].mxu0
      %v4325 = vadd.f32 0.0, %v4324
      %v4326 = vpop.f32.mrb[0].mxu0
      %4327 = vmatprep.mubr.bf16.mxu0 %v4076
      %4328 = vmatmul.mubr.bf16.gmra.mrb[0].mxu0 %v4068
      %v4329 = vpop.f32.mrb[0].mxu0
      %v4330 = vadd.f32 0.0, %v4329
      %v4331 = vpop.f32.mrb[0].mxu0
      %v4332 = vpop.f32.mrb[0].mxu0
      %v4333 = vadd.f32 0.0, %v4332
      %v4334 = vpop.f32.mrb[0].mxu0
      %4335 = vdwg.mxu0
      %4336 = vmatprep.subr.bf16.mxu0 0
      %4337 = vmatpush1.bf16.msra.mxu0 %v4207
      %4338 = vmatprep.subr.bf16.mxu0 0
      %4339 = vmatpush1.bf16.msra.mxu0 %v4208
      %4340 = vmatprep.subr.bf16.mxu0 0
      %4341 = vmatpush1.bf16.msra.mxu0 %v4209
      %4342 = vmatprep.subr.bf16.mxu0 0
      %4343 = vmatpush1.bf16.msra.mxu0 %v4210
      %4344 = vmatprep.subr.bf16.mxu0 0
      %4345 = vmatpush1.bf16.msra.mxu0 %v4211
      %4346 = vmatprep.subr.bf16.mxu0 0
      %4347 = vmatpush1.bf16.msra.mxu0 %v4212
      %4348 = vmatprep.subr.bf16.mxu0 0
      %4349 = vmatpush1.bf16.msra.mxu0 %v4213
      %4350 = vmatprep.subr.bf16.mxu0 0
      %4351 = vmatpush1.bf16.msra.mxu0 %v4214
      %4352 = vmatprep.subr.bf16.mxu0 0
      %4353 = vmatpush1.bf16.msra.mxu0 0
      %4354 = vmatprep.subr.bf16.mxu0 0
      %4355 = vmatpush1.bf16.msra.mxu0 0
      %4356 = vmatprep.subr.bf16.mxu0 0
      %4357 = vmatpush1.bf16.msra.mxu0 0
      %4358 = vmatprep.subr.bf16.mxu0 0
      %4359 = vmatpush1.bf16.msra.mxu0 0
      %4360 = vmatprep.subr.bf16.mxu0 0
      %4361 = vmatpush1.bf16.msra.mxu0 0
      %4362 = vmatprep.subr.bf16.mxu0 0
      %4363 = vmatpush1.bf16.msra.mxu0 0
      %4364 = vmatprep.subr.bf16.mxu0 0
      %4365 = vmatpush1.bf16.msra.mxu0 0
      %4366 = vmatprep.subr.bf16.mxu0 0
      %4367 = vmatpush1.bf16.msra.mxu0 0
      %4368 = vmatprep.mubr.bf16.mxu0 0
      %4369 = vmatmul.mubr.bf16.gmra.mrb[0].mxu0 %v4028
      %v4370 = vpop.f32.mrb[0].mxu0
      %v4371 = vadd.f32 %v4274, %v4370
      %v4372 = vpop.f32.mrb[0].mxu0
      %v4373 = vpop.f32.mrb[0].mxu0
      %v4374 = vadd.f32 %v4277, %v4373
      %v4375 = vpop.f32.mrb[0].mxu0
      %4376 = vmatprep.mubr.bf16.mxu0 0
      %4377 = vmatmul.mubr.bf16.gmra.mrb[0].mxu0 %v4036
      %v4378 = vpop.f32.mrb[0].mxu0
      %v4379 = vadd.f32 %v4282, %v4378
      %v4380 = vpop.f32.mrb[0].mxu0
      %v4381 = vpop.f32.mrb[0].mxu0
      %v4382 = vadd.f32 %v4285, %v4381
      %v4383 = vpop.f32.mrb[0].mxu0
      %4384 = vmatprep.mubr.bf16.mxu0 0
      %4385 = vmatmul.mubr.bf16.gmra.mrb[0].mxu0 %v4044
      %v4386 = vpop.f32.mrb[0].mxu0
      %v4387 = vadd.f32 %v4290, %v4386
      %v4388 = vpop.f32.mrb[0].mxu0
      %v4389 = vpop.f32.mrb[0].mxu0
      %v4390 = vadd.f32 %v4293, %v4389
      %v4391 = vpop.f32.mrb[0].mxu0
      %4392 = vmatprep.mubr.bf16.mxu0 0
      %4393 = vmatmul.mubr.bf16.gmra.mrb[0].mxu0 %v4052
      %v4394 = vpop.f32.mrb[0].mxu0
      %v4395 = vadd.f32 %v4298, %v4394
      %v4396 = vpop.f32.mrb[0].mxu0
      %v4397 = vpop.f32.mrb[0].mxu0
      %v4398 = vadd.f32 %v4301, %v4397
      %v4399 = vpop.f32.mrb[0].mxu0
      %4400 = vmatprep.mubr.bf16.mxu0 0
      %4401 = vmatmul.mubr.bf16.gmra.mrb[0].mxu0 %v4060
      %v4402 = vpop.f32.mrb[0].mxu0
      %v4403 = vadd.f32 %v4306, %v4402
      %v4404 = vpop.f32.mrb[0].mxu0
      %v4405 = vpop.f32.mrb[0].mxu0
      %v4406 = vadd.f32 %v4309, %v4405
      %v4407 = vpop.f32.mrb[0].mxu0
      %4408 = vmatprep.mubr.bf16.mxu0 0
      %4409 = vmatmul.mubr.bf16.gmra.mrb[0].mxu0 %v4068
      %v4410 = vpop.f32.mrb[0].mxu0
      %v4411 = vadd.f32 %v4314, %v4410
      %v4412 = vpop.f32.mrb[0].mxu0
      %v4413 = vpop.f32.mrb[0].mxu0
      %v4414 = vadd.f32 %v4317, %v4413
      %v4415 = vpop.f32.mrb[0].mxu0
      %4416 = vmatprep.mubr.bf16.mxu0 0
      %4417 = vmatmul.mubr.bf16.gmra.mrb[0].mxu0 %v4076
      %v4418 = vpop.f32.mrb[0].mxu0
      %v4419 = vadd.f32 %v4322, %v4418
      %v4420 = vpop.f32.mrb[0].mxu0
      %v4421 = vpop.f32.mrb[0].mxu0
      %v4422 = vadd.f32 %v4325, %v4421
      %v4423 = vpop.f32.mrb[0].mxu0
      %4424 = vmatprep.mubr.bf16.mxu0 0
      %4425 = vmatmul.mubr.bf16.gmra.mrb[0].mxu0 %v4084
      %v4426 = vpop.f32.mrb[0].mxu0
      %v4427 = vadd.f32 %v4330, %v4426
      %v4428 = vpop.f32.mrb[0].mxu0
      %v4429 = vpop.f32.mrb[0].mxu0
      %v4430 = vadd.f32 %v4333, %v4429
      %v4431 = vpop.f32.mrb[0].mxu0
      %4432 = vdwg.mxu0
      %v4433 = vadd.f32 %v3867, %v4371
      %v4434 = vadd.f32 %v3870, %v4374
      %v4435 = vadd.f32 %v3875, %v4379
      %v4436 = vadd.f32 %v3878, %v4382
      %v4437 = vadd.f32 %v3883, %v4387
      %v4438 = vadd.f32 %v3886, %v4390
      %v4439 = vadd.f32 %v3891, %v4395
      %v4440 = vadd.f32 %v3894, %v4398
      %v4441 = vadd.f32 %v3899, %v4403
      %v4442 = vadd.f32 %v3902, %v4406
      %v4443 = vadd.f32 %v3907, %v4411
      %v4444 = vadd.f32 %v3910, %v4414
      %v4445 = vadd.f32 %v3915, %v4419
      %v4446 = vadd.f32 %v3918, %v4422
      %v4447 = vadd.f32 %v3923, %v4427
      %v4448 = vadd.f32 %v3926, %v4430
      %v4449 = vld [vmem:[%s6] sm:$0x1]
      %v4451 = vlaneseq
      %v4452 = vshrl.u32 %v4451, 7
      %v4453 = vsub.s32 0, %v4452
      %v4454 = vrot.slane %v4449, %v4453
      %v4456 = vadd.f32 %v4433, %v4454
      %v4457 = vadd.f32 %v4434, %v4454
      %v4458 = vadd.f32 %v4435, %v4454
      %v4459 = vadd.f32 %v4436, %v4454
      %v4460 = vadd.f32 %v4437, %v4454
      %v4461 = vadd.f32 %v4438, %v4454
      %v4462 = vadd.f32 %v4439, %v4454
      %v4463 = vadd.f32 %v4440, %v4454
      %v4464 = vadd.f32 %v4441, %v4454
      %v4465 = vadd.f32 %v4442, %v4454
      %v4466 = vadd.f32 %v4443, %v4454
      %v4467 = vadd.f32 %v4444, %v4454
      %v4468 = vadd.f32 %v4445, %v4454
      %v4469 = vadd.f32 %v4446, %v4454
      %v4470 = vadd.f32 %v4447, %v4454
      %v4471 = vadd.f32 %v4448, %v4454
      %v4472 = vunpack.c.l.bf16 %v449
      %v4473 = vunpack.c.l.bf16 %v450
      %v4474 = vunpack.c.l.bf16 %v451
      %v4475 = vunpack.c.l.bf16 %v452
      %v4476 = vunpack.c.l.bf16 %v453
      %v4477 = vunpack.c.l.bf16 %v454
      %v4478 = vunpack.c.l.bf16 %v455
      %v4479 = vunpack.c.l.bf16 %v456
      %v4480 = vunpack.c.l.bf16 %v457
      %v4481 = vunpack.c.l.bf16 %v458
      %v4482 = vunpack.c.l.bf16 %v459
      %v4483 = vunpack.c.l.bf16 %v460
      %v4484 = vunpack.c.l.bf16 %v461
      %v4485 = vunpack.c.l.bf16 %v462
      %v4486 = vunpack.c.l.bf16 %v463
      %v4487 = vunpack.c.l.bf16 %v464
      %v4488 = vadd.f32 %v4456, %v4472
      %v4489 = vadd.f32 %v4457, %v4473
      %v4490 = vadd.f32 %v4458, %v4474
      %v4491 = vadd.f32 %v4459, %v4475
      %v4492 = vadd.f32 %v4460, %v4476
      %v4493 = vadd.f32 %v4461, %v4477
      %v4494 = vadd.f32 %v4462, %v4478
      %v4495 = vadd.f32 %v4463, %v4479
      %v4496 = vadd.f32 %v4464, %v4480
      %v4497 = vadd.f32 %v4465, %v4481
      %v4498 = vadd.f32 %v4466, %v4482
      %v4499 = vadd.f32 %v4467, %v4483
      %v4500 = vadd.f32 %v4468, %v4484
      %v4501 = vadd.f32 %v4469, %v4485
      %v4502 = vadd.f32 %v4470, %v4486
      %v4503 = vadd.f32 %v4471, %v4487
      %v4504 = vmax.f32 %v4488, 0.0
      %v4505 = vmax.f32 %v4489, 0.0
      %v4506 = vmax.f32 %v4490, 0.0
      %v4507 = vmax.f32 %v4491, 0.0
      %v4508 = vmax.f32 %v4492, 0.0
      %v4509 = vmax.f32 %v4493, 0.0
      %v4510 = vmax.f32 %v4494, 0.0
      %v4511 = vmax.f32 %v4495, 0.0
      %v4512 = vmax.f32 %v4496, 0.0
      %v4513 = vmax.f32 %v4497, 0.0
      %v4514 = vmax.f32 %v4498, 0.0
      %v4515 = vmax.f32 %v4499, 0.0
      %v4516 = vmax.f32 %v4500, 0.0
      %v4517 = vmax.f32 %v4501, 0.0
      %v4518 = vmax.f32 %v4502, 0.0
      %v4519 = vmax.f32 %v4503, 0.0
      %v4520 = vpack.c.bf16 %v4505, %v4504
      %v4521 = vpack.c.bf16 %v4507, %v4506
      %v4522 = vpack.c.bf16 %v4509, %v4508
      %v4523 = vpack.c.bf16 %v4511, %v4510
      %v4524 = vpack.c.bf16 %v4513, %v4512
      %v4525 = vpack.c.bf16 %v4515, %v4514
      %v4526 = vpack.c.bf16 %v4517, %v4516
      %v4527 = vpack.c.bf16 %v4519, %v4518
      %v4536 = vunpack.c.l.b16 %v4520
      %v4537 = vunpack.c.h.b16 %v4520
      %v4538 = vunpack.c.l.b16 %v4521
      %v4539 = vunpack.c.h.b16 %v4521
      %v4540 = vunpack.c.l.b16 %v4522
      %v4541 = vunpack.c.h.b16 %v4522
      %v4542 = vunpack.c.l.b16 %v4523
      %v4543 = vunpack.c.h.b16 %v4523
      %v4544 = vunpack.c.l.b16 %v4524
      %v4545 = vunpack.c.h.b16 %v4524
      %v4546 = vunpack.c.l.b16 %v4525
      %v4547 = vunpack.c.h.b16 %v4525
      %v4548 = vunpack.c.l.b16 %v4526
      %v4549 = vunpack.c.h.b16 %v4526
      %v4550 = vunpack.c.l.b16 %v4527
      %v4551 = vunpack.c.h.b16 %v4527
      %v4552 = vpack.c.b16 %v4536, %v4536
      %v4553 = vpack.c.b16 %v4537, %v4537
      %v4554 = vpack.c.b16 %v4538, %v4538
      %v4555 = vpack.c.b16 %v4539, %v4539
      %v4556 = vpack.c.b16 %v4540, %v4540
      %v4557 = vpack.c.b16 %v4541, %v4541
      %v4558 = vpack.c.b16 %v4542, %v4542
      %v4559 = vpack.c.b16 %v4543, %v4543
      %v4560 = vpack.c.b16 %v4544, %v4544
      %v4561 = vpack.c.b16 %v4545, %v4545
      %v4562 = vpack.c.b16 %v4546, %v4546
      %v4563 = vpack.c.b16 %v4547, %v4547
      %v4564 = vpack.c.b16 %v4548, %v4548
      %v4565 = vpack.c.b16 %v4549, %v4549
      %v4566 = vpack.c.b16 %v4550, %v4550
      %v4567 = vpack.c.b16 %v4551, %v4551
      %4584 = vst [vmem:[%s444] sm:$0xf] %v4552
      %4585 = vst [vmem:[%s444 + $0x4] sm:$0xf] %v4553
      %4586 = vst [vmem:[%s444 + $0x8] sm:$0xf] %v4554
      %4587 = vst [vmem:[%s444 + $0xc] sm:$0xf] %v4555
      %4588 = vst [vmem:[%s444 + $0x10] sm:$0xf] %v4556
      %4589 = vst [vmem:[%s444 + $0x14] sm:$0xf] %v4557
      %4590 = vst [vmem:[%s444 + $0x18] sm:$0xf] %v4558
      %4591 = vst [vmem:[%s444 + $0x1c] sm:$0xf] %v4559
      %4592 = vst [vmem:[%s444 + $0x20] sm:$0xf] %v4560
      %4593 = vst [vmem:[%s444 + $0x24] sm:$0xf] %v4561
      %4594 = vst [vmem:[%s444 + $0x28] sm:$0xf] %v4562
      %4595 = vst [vmem:[%s444 + $0x2c] sm:$0xf] %v4563
      %4596 = vst [vmem:[%s444 + $0x30] sm:$0xf] %v4564
      %4597 = vst [vmem:[%s444 + $0x34] sm:$0xf] %v4565
      %4598 = vst [vmem:[%s444 + $0x38] sm:$0xf] %v4566
      %4599 = vst [vmem:[%s444 + $0x3c] sm:$0xf] %v4567
      %s4600 = smul.u32 16, %s23
      %p4601 = scmp.lt.s32.totalorder %s22, 1
      %s4602 = scalar_select %p4601, %s22, 1
      %p4603 = scmp.lt.s32.totalorder %s4600, 31
      %s4604 = scalar_select %p4603, %s4600, 31
      %s4605 = smul.addr %s4602, 32
      %s4606 = sadd.s32 %s4604, %s4605
      %s4607 = smul.addr %s4606, 4
      %s4608 = scalar_lea.vmem %s7, %s4607
      // Predicated region
      $region65: #{basic_block_forward.1} parent=47 // pred_check
        %p4609 = pneg %p234
      $region66: #{basic_block_forward.1} parent=47 // pred_check_branch
        %4611 = sbr.rel (%p4609) target = $region68
      $region67: #{basic_block_forward.1} parent=47 // pred_region
        %s4612 = smul.u32 16, %s23
      $region68: #{basic_block_forward.1} parent=47 // pred_fallthru
        _
    $region48: #{basic_block_forward.1} parent=5 // pred_fallthru
      _
    %p4613 = scmp.le.s32.totalorder 2, %s13
    // Predicated region
    $region69: #{basic_block_forward.1} parent=5 // pred_check
      %p4614 = pneg %p4613
    $region70: #{basic_block_forward.1} parent=5 // pred_check_branch
      %4616 = sbr.rel (%p4614) target = $region72
    $region71: #{basic_block_forward.1} parent=5 // pred_region
      %s4617 = ssub.s32 %s13, 2
      // Predicated region
      $region73: #{basic_block_forward.1} parent=71 // pred_check
        %p4618 = pneg %p240
      $region74: #{basic_block_forward.1} parent=71 // pred_check_branch
        %4620 = sbr.rel (%p4618) target = $region76
      $region75: #{basic_block_forward.1} parent=71 // pred_region
        %s4621 = smul.u32 16, %s25
        %p4622 = scmp.lt.s32.totalorder %s24, 1
        %s4623 = scalar_select %p4622, %s24, 1
        %p4624 = scmp.lt.s32.totalorder %s4621, 31
        %s4625 = scalar_select %p4624, %s4621, 31
        %s4626 = smul.addr %s4623, 32
        %s4627 = sadd.s32 %s4625, %s4626
        %s4628 = smul.addr %s4627, 4
        %s4629 = scalar_lea.vmem %s7, %s4628
      $region76: #{basic_block_forward.1} parent=71 // pred_fallthru
        _
    $region72: #{basic_block_forward.1} parent=5 // pred_fallthru
      _
  $region6: #{basic_block_forward.1} parent=0 // loop_footer
    %s17 = sadd.s32 1, %s13
  $region7: #{basic_block_forward.1} parent=0 // loop_footer_branch
    %12 = sbr.rel target = $region3
  $region8: #{basic_block_forward.1} parent=0 // loop_exit
    _

</llo_original>
